<compile_context>
chip_gen: v5e
topology: v5e:2x2
jax: 0.10.0
libtpu: 0.0.40
codegen_flags: <defaults>
</compile_context>

<pallas_src>
import jax
import jax.numpy as jnp
from jax.experimental import pallas as pl
from jax.experimental.pallas import tpu as pltpu

N = 128          # number of graph nodes
D_IN = 32        # in_features
D_OUT = 64       # out_features
HEADS = 8        # n_heads
F_HEAD = D_OUT // HEADS
ALPHA = 0.2      # leaky_relu slope
D_AUG = 128      # lane-padded augmented width: [0:64]=features, 64=ones col, rest 0
OUT_PAD = 2 * D_OUT  # lane-dense output slab width (128)


def _pick_row_tile() -> int:
    """grid=(2,'parallel') only pays off on v7x (2 TensorCores per chip);
    single-TC v5e/v6e use one grid step (no recompute, no per-step cost)."""
    try:
        kind = jax.devices()[0].device_kind.lower()
    except Exception:
        return N
    if "v7" in kind or "7x" in kind:
        return N // 2
    return N


ROW_TILE = _pick_row_tile()
N_PROG = N // ROW_TILE


def gat_kernel(x_ref, wt_ref, b_ref, aw_ref, adj_ref, out_ref):
    T = ROW_TILE

    # Augmented linear over ALL nodes: h1[:, :64] = x@W^T + b, h1[:, 64] = 1,
    # h1[:, 65:] = 0.                                           -> (N, 128)
    h1 = jnp.dot(x_ref[...], wt_ref[...],
                 preferred_element_type=jnp.float32) + b_ref[...]

    # Fused per-head attention projections for all nodes, both terms at once.
    proj = jnp.dot(h1, aw_ref[...],
                   preferred_element_type=jnp.float32)          # (N, 2*HEADS)
    a0t = proj[:, :HEADS].T                                     # (HEADS, N)

    # Query-side term = rows of the SAME projection belonging to this tile
    # (static slices + scalar select; avoids a dynamic value-slice, N_PROG<=2).
    if N_PROG == 1:
        a1 = proj[:, HEADS:]                                    # (T, HEADS)
    else:
        i = pl.program_id(0)
        a1 = proj[0:T, HEADS:]
        for t in range(1, N_PROG):
            a1 = jnp.where(i == t, proj[t * T:(t + 1) * T, HEADS:], a1)
    a1t = a1.T                                                  # (HEADS, T)

    # Adjacency -> one additive bias for this tile's query rows.
    # TODO(synk): isolated nodes (all-zero adj rows) yield ~uniform attention
    # here instead of the reference's NaN row.
    mask_bias = jnp.where(adj_ref[...] != 0.0,
                          jnp.float32(0.0), jnp.float32(-1e9))  # (T, N)

    # Max-free shift (from PRE-mask scores): one tiny XLU reduce replaces
    # HEADS serialized (T, N) row-max reduces on the critical path.
    a0max = jnp.max(a0t, axis=1, keepdims=True)                 # (HEADS, 1)
    mbase = a0max + a1t                                         # (HEADS, T)
    m = jnp.maximum(mbase, ALPHA * mbase)[:, :, None]           # (HEADS, T, 1)

    # All-head scores: e[h, t, j] = leaky(a0[j,h] + a1[t,h]) + mask_bias[t, j].
    e = a0t[:, None, :] + a1t[:, :, None]                       # (HEADS, T, N)
    e = jnp.maximum(e, ALPHA * e)                               # leaky_relu
    p = jnp.exp(e + mask_bias[None, :, :] - m)                  # <= 1, EUP

    # ONE MXU matmul with h1 resident as RHS (instead of 8 reloads):
    # cols [:64] = unnormalized per-head aggregation, col 64 = softmax denom.
    agg = jnp.dot(p.reshape(HEADS * T, N), h1,
                  preferred_element_type=jnp.float32)           # (HEADS*T, 128)

    den = agg[:, D_OUT:D_OUT + 1]                               # (HEADS*T, 1)
    inv = pl.reciprocal(den, approx=True)
    inv = inv * (2.0 - den * inv)   # one Newton step on a thin vector: ~free, f32-accurate
    # TODO(synk): dropout on the attention scores omitted (eval-mode identity).

    outs = []
    for hd in range(HEADS):
        r0 = hd * T
        blk = agg[r0:r0 + T, hd * F_HEAD:(hd + 1) * F_HEAD] * inv[r0:r0 + T]
        outs.append(blk)                                        # (T, F_HEAD)
    # Lane-dense (T, 128) slab: 64 real feature columns + 64 zero-pad columns
    # -> unmasked full-vreg stores (wrapper slices the pad off).
    out_ref[...] = jnp.concatenate(
        outs + [jnp.zeros((T, OUT_PAD - D_OUT), jnp.float32)], axis=1)


@jax.jit
def gat_forward(x, w, b, w2, adj):
    """x:(N,D_IN)  w:(D_OUT,D_IN) torch-Linear weight  b:(D_OUT,)
       w2:(F_HEAD,2) == self.weights.reshape(-1,2)     adj:(N,N) dense 0/1 float."""
    # Lane-padded augmented linear weight / bias: col D_OUT is a constant-ones
    # column (fused softmax denominator), cols D_OUT+1.. are zero.
    wt_aug = jnp.zeros((D_IN, D_AUG), jnp.float32).at[:, :D_OUT].set(w.T)
    b_aug = (jnp.zeros((1, D_AUG), jnp.float32)
             .at[0, :D_OUT].set(b)
             .at[0, D_OUT].set(1.0))

    # Fused block-diagonal attention projections (D_AUG, 2*HEADS):
    #   proj[:, h]       = sum_f h3[:, h, f] * w2[f, 0]   (neighbour term a0)
    #   proj[:, HEADS+h] = sum_f h3[:, h, f] * w2[f, 1]   (query term a1)
    k = jnp.arange(D_OUT)
    head_mask = (k[:, None] // F_HEAD ==
                 jnp.arange(HEADS)[None, :]).astype(jnp.float32)   # (D_OUT, HEADS)
    a0w = head_mask * w2[k % F_HEAD, 0][:, None]
    a1w = head_mask * w2[k % F_HEAD, 1][:, None]
    aw = (jnp.zeros((D_AUG, 2 * HEADS), jnp.float32)
          .at[:D_OUT, :HEADS].set(a0w)
          .at[:D_OUT, HEADS:].set(a1w))

    out_padded = pl.pallas_call(
        gat_kernel,
        out_shape=jax.ShapeDtypeStruct((N, OUT_PAD), jnp.float32),
        grid=(N_PROG,),
        in_specs=[
            pl.BlockSpec((N, D_IN), lambda i: (0, 0)),            # full x (all nodes)
            pl.BlockSpec((D_IN, D_AUG), lambda i: (0, 0)),        # augmented W^T
            pl.BlockSpec((1, D_AUG), lambda i: (0, 0)),           # augmented bias
            pl.BlockSpec((D_AUG, 2 * HEADS), lambda i: (0, 0)),   # fused attn projections
            pl.BlockSpec((ROW_TILE, N), lambda i: (i, 0)),        # adjacency rows of tile
        ],
        out_specs=pl.BlockSpec((ROW_TILE, OUT_PAD), lambda i: (i, 0)),
        compiler_params=pltpu.CompilerParams(
            dimension_semantics=("parallel",)),
    )(x, wt_aug, b_aug, aw, adj)
    return out_padded[:, :D_OUT]


if __name__ == "__main__":
    key = jax.random.PRNGKey(0)
    kx, kw, kb, ka, kadj = jax.random.split(key, 5)

    x = jax.random.normal(kx, (N, D_IN), jnp.float32)

    # xavier_uniform_(gain=1.414) for Linear weight (D_OUT, D_IN)
    lim_w = 1.414 * (6.0 / (D_IN + D_OUT)) ** 0.5
    w = jax.random.uniform(kw, (D_OUT, D_IN), jnp.float32, -lim_w, lim_w)
    # default torch Linear bias init
    lim_b = 1.0 / (D_IN ** 0.5)
    b = jax.random.uniform(kb, (D_OUT,), jnp.float32, -lim_b, lim_b)
    # xavier_uniform_(gain=1.414) for attention weights (2*F_HEAD, 1)
    lim_a = 1.414 * (6.0 / (2 * F_HEAD + 1)) ** 0.5
    weights = jax.random.uniform(ka, (2 * F_HEAD, 1), jnp.float32, -lim_a, lim_a)
    w2 = weights.reshape(F_HEAD, 2)                    # == self.weights.reshape(-1, 2)

    adj = (jax.random.uniform(kadj, (N, N)) < 0.3).astype(jnp.float32)
    adj = jnp.maximum(adj, jnp.eye(N, dtype=jnp.float32))  # self-loops (no empty rows)

    out = gat_forward(x, w, b, w2, adj)
    jax.block_until_ready(out)

    # pure-JAX reference (mirrors the PyTorch forward, eval mode)
    h = x @ w.T + b
    h3 = h.reshape(N, HEADS, F_HEAD)
    attn = jnp.einsum('nhf,fi->nhi', h3, w2)
    e = attn[None, :, :, 0] + attn[:, None, :, 1]      # (N, N, HEADS)
    e = jnp.where(e > 0, e, ALPHA * e)
    e = jnp.where(adj[:, :, None] != 0, e, -jnp.inf)
    s = jax.nn.softmax(e, axis=1)
    ref = jnp.einsum('ijh,jhf->ihf', s, h3).reshape(N, -1)

    assert jnp.allclose(out, ref, atol=2e-4, rtol=2e-4), \
        float(jnp.max(jnp.abs(out - ref)))
    print("KERNEL_OK")
</pallas_src>

<mosaic_0001>
module attributes {stable_mosaic.version = 11 : i64} {
  func.func @gat_kernel(%arg0: i32, %arg1: memref<128x32xf32, #tpu.memory_space<vmem>>, %arg2: memref<32x128xf32, #tpu.memory_space<vmem>>, %arg3: memref<1x128xf32, #tpu.memory_space<vmem>>, %arg4: memref<128x16xf32, #tpu.memory_space<vmem>>, %arg5: memref<128x128xf32, #tpu.memory_space<vmem>>, %arg6: memref<128x128xf32, #tpu.memory_space<vmem>>) attributes {dimension_semantics = [#tpu.dimension_semantics<parallel>], iteration_bounds = array<i64: 1>, scalar_prefetch = 0 : i64, scratch_operands = 0 : i64, tpu.core_type = #tpu.core_type<tc>, window_params = [{pipeline_mode = #tpu.pipeline_mode<synchronous>, transform_indices = @transform_0, window_bounds = array<i64: 128, 32>}, {pipeline_mode = #tpu.pipeline_mode<synchronous>, transform_indices = @transform_1, window_bounds = array<i64: 32, 128>}, {pipeline_mode = #tpu.pipeline_mode<synchronous>, transform_indices = @transform_2, window_bounds = array<i64: 1, 128>}, {pipeline_mode = #tpu.pipeline_mode<synchronous>, transform_indices = @transform_3, window_bounds = array<i64: 128, 16>}, {transform_indices = @transform_4, window_bounds = array<i64: 128, 128>}, {transform_indices = @transform_5, window_bounds = array<i64: 128, 128>}]} {
    %c0 = arith.constant 0 : index
    %c0_0 = arith.constant 0 : index
    %0 = vector.load %arg1[%c0, %c0_0] : memref<128x32xf32, #tpu.memory_space<vmem>>, vector<128x32xf32>
    %c0_1 = arith.constant 0 : index
    %c0_2 = arith.constant 0 : index
    %1 = vector.load %arg2[%c0_1, %c0_2] : memref<32x128xf32, #tpu.memory_space<vmem>>, vector<32x128xf32>
    %cst = arith.constant dense<0.000000e+00> : vector<128x128xf32>
    %2 = tpu.matmul %0, %1, %cst {dimension_numbers = #tpu.dot_dimension_numbers<[1], [0], [0], [1], [0, 0, 1, 1], [], []>} : vector<128x32xf32>, vector<32x128xf32>, vector<128x128xf32> -> vector<128x128xf32>
    %c0_3 = arith.constant 0 : index
    %c0_4 = arith.constant 0 : index
    %3 = vector.load %arg3[%c0_3, %c0_4] : memref<1x128xf32, #tpu.memory_space<vmem>>, vector<1x128xf32>
    %4 = vector.broadcast %3 : vector<1x128xf32> to vector<128x128xf32>
    %5 = arith.addf %2, %4 : vector<128x128xf32>
    %c0_5 = arith.constant 0 : index
    %c0_6 = arith.constant 0 : index
    %6 = vector.load %arg4[%c0_5, %c0_6] : memref<128x16xf32, #tpu.memory_space<vmem>>, vector<128x16xf32>
    %cst_7 = arith.constant dense<0.000000e+00> : vector<128x16xf32>
    %7 = tpu.matmul %5, %6, %cst_7 {dimension_numbers = #tpu.dot_dimension_numbers<[1], [0], [0], [1], [0, 0, 1, 1], [], []>} : vector<128x128xf32>, vector<128x16xf32>, vector<128x16xf32> -> vector<128x16xf32>
    %8 = vector.extract_strided_slice %7 {offsets = [0, 0], sizes = [128, 8], strides = [1, 1]} : vector<128x16xf32> to vector<128x8xf32>
    %9 = tpu.transpose %8, [1, 0] : vector<128x8xf32> -> vector<8x128xf32>
    %10 = vector.extract_strided_slice %7 {offsets = [0, 8], sizes = [128, 8], strides = [1, 1]} : vector<128x16xf32> to vector<128x8xf32>
    %11 = tpu.transpose %10, [1, 0] : vector<128x8xf32> -> vector<8x128xf32>
    %c0_8 = arith.constant 0 : index
    %c0_9 = arith.constant 0 : index
    %12 = vector.load %arg5[%c0_8, %c0_9] : memref<128x128xf32, #tpu.memory_space<vmem>>, vector<128x128xf32>
    %cst_10 = arith.constant 0.000000e+00 : f32
    %13 = vector.broadcast %cst_10 : f32 to vector<128x128xf32>
    %14 = arith.cmpf one, %12, %13 : vector<128x128xf32>
    %cst_11 = arith.constant 0.000000e+00 : f32
    %cst_12 = arith.constant -1.000000e+09 : f32
    %15 = vector.broadcast %cst_11 : f32 to vector<128x128xf32>
    %16 = vector.broadcast %cst_12 : f32 to vector<128x128xf32>
    %17 = arith.select %14, %15, %16 : vector<128x128xi1>, vector<128x128xf32>
    %cst_13 = arith.constant dense<0xFF800000> : vector<8xf32>
    %18 = vector.multi_reduction <maximumf>, %9, %cst_13 [1] : vector<8x128xf32> to vector<8xf32>
    %19 = vector.shape_cast %18 : vector<8xf32> to vector<8x1xf32>
    %20 = vector.broadcast %19 : vector<8x1xf32> to vector<8x128xf32>
    %21 = arith.addf %20, %11 : vector<8x128xf32>
    %cst_14 = arith.constant 2.000000e-01 : f32
    %22 = vector.broadcast %cst_14 : f32 to vector<8x128xf32>
    %23 = arith.mulf %22, %21 : vector<8x128xf32>
    %24 = arith.maximumf %21, %23 : vector<8x128xf32>
    %25 = vector.shape_cast %24 : vector<8x128xf32> to vector<8x128x1xf32>
    %26 = vector.shape_cast %9 : vector<8x128xf32> to vector<8x1x128xf32>
    %27 = vector.shape_cast %11 : vector<8x128xf32> to vector<8x128x1xf32>
    %28 = vector.broadcast %26 : vector<8x1x128xf32> to vector<8x128x128xf32>
    %29 = vector.broadcast %27 : vector<8x128x1xf32> to vector<8x128x128xf32>
    %30 = arith.addf %28, %29 : vector<8x128x128xf32>
    %cst_15 = arith.constant 2.000000e-01 : f32
    %31 = vector.broadcast %cst_15 : f32 to vector<8x128x128xf32>
    %32 = arith.mulf %31, %30 : vector<8x128x128xf32>
    %33 = arith.maximumf %30, %32 : vector<8x128x128xf32>
    %34 = vector.shape_cast %17 : vector<128x128xf32> to vector<1x128x128xf32>
    %35 = vector.broadcast %34 : vector<1x128x128xf32> to vector<8x128x128xf32>
    %36 = arith.addf %33, %35 : vector<8x128x128xf32>
    %37 = vector.broadcast %25 : vector<8x128x1xf32> to vector<8x128x128xf32>
    %38 = arith.subf %36, %37 : vector<8x128x128xf32>
    %39 = math.exp %38 : vector<8x128x128xf32>
    %40 = vector.shape_cast %39 : vector<8x128x128xf32> to vector<1024x128xf32>
    %cst_16 = arith.constant dense<0.000000e+00> : vector<1024x128xf32>
    %41 = tpu.matmul %40, %5, %cst_16 {dimension_numbers = #tpu.dot_dimension_numbers<[1], [0], [0], [1], [0, 0, 1, 1], [], []>} : vector<1024x128xf32>, vector<128x128xf32>, vector<1024x128xf32> -> vector<1024x128xf32>
    %42 = vector.extract_strided_slice %41 {offsets = [0, 64], sizes = [1024, 1], strides = [1, 1]} : vector<1024x128xf32> to vector<1024x1xf32>
    %43 = tpu.reciprocal %42 {approx = true} : vector<1024x1xf32> -> vector<1024x1xf32>
    %44 = arith.mulf %42, %43 : vector<1024x1xf32>
    %cst_17 = arith.constant 2.000000e+00 : f32
    %45 = vector.broadcast %cst_17 : f32 to vector<1024x1xf32>
    %46 = arith.subf %45, %44 : vector<1024x1xf32>
    %47 = arith.mulf %43, %46 : vector<1024x1xf32>
    %48 = vector.extract_strided_slice %41 {offsets = [0, 0], sizes = [128, 8], strides = [1, 1]} : vector<1024x128xf32> to vector<128x8xf32>
    %49 = vector.extract_strided_slice %47 {offsets = [0, 0], sizes = [128, 1], strides = [1, 1]} : vector<1024x1xf32> to vector<128x1xf32>
    %50 = vector.broadcast %49 : vector<128x1xf32> to vector<128x8xf32>
    %51 = arith.mulf %48, %50 : vector<128x8xf32>
    %52 = vector.extract_strided_slice %41 {offsets = [128, 8], sizes = [128, 8], strides = [1, 1]} : vector<1024x128xf32> to vector<128x8xf32>
    %53 = vector.extract_strided_slice %47 {offsets = [128, 0], sizes = [128, 1], strides = [1, 1]} : vector<1024x1xf32> to vector<128x1xf32>
    %54 = vector.broadcast %53 : vector<128x1xf32> to vector<128x8xf32>
    %55 = arith.mulf %52, %54 : vector<128x8xf32>
    %56 = vector.extract_strided_slice %41 {offsets = [256, 16], sizes = [128, 8], strides = [1, 1]} : vector<1024x128xf32> to vector<128x8xf32>
    %57 = vector.extract_strided_slice %47 {offsets = [256, 0], sizes = [128, 1], strides = [1, 1]} : vector<1024x1xf32> to vector<128x1xf32>
    %58 = vector.broadcast %57 : vector<128x1xf32> to vector<128x8xf32>
    %59 = arith.mulf %56, %58 : vector<128x8xf32>
    %60 = vector.extract_strided_slice %41 {offsets = [384, 24], sizes = [128, 8], strides = [1, 1]} : vector<1024x128xf32> to vector<128x8xf32>
    %61 = vector.extract_strided_slice %47 {offsets = [384, 0], sizes = [128, 1], strides = [1, 1]} : vector<1024x1xf32> to vector<128x1xf32>
    %62 = vector.broadcast %61 : vector<128x1xf32> to vector<128x8xf32>
    %63 = arith.mulf %60, %62 : vector<128x8xf32>
    %64 = vector.extract_strided_slice %41 {offsets = [512, 32], sizes = [128, 8], strides = [1, 1]} : vector<1024x128xf32> to vector<128x8xf32>
    %65 = vector.extract_strided_slice %47 {offsets = [512, 0], sizes = [128, 1], strides = [1, 1]} : vector<1024x1xf32> to vector<128x1xf32>
    %66 = vector.broadcast %65 : vector<128x1xf32> to vector<128x8xf32>
    %67 = arith.mulf %64, %66 : vector<128x8xf32>
    %68 = vector.extract_strided_slice %41 {offsets = [640, 40], sizes = [128, 8], strides = [1, 1]} : vector<1024x128xf32> to vector<128x8xf32>
    %69 = vector.extract_strided_slice %47 {offsets = [640, 0], sizes = [128, 1], strides = [1, 1]} : vector<1024x1xf32> to vector<128x1xf32>
    %70 = vector.broadcast %69 : vector<128x1xf32> to vector<128x8xf32>
    %71 = arith.mulf %68, %70 : vector<128x8xf32>
    %72 = vector.extract_strided_slice %41 {offsets = [768, 48], sizes = [128, 8], strides = [1, 1]} : vector<1024x128xf32> to vector<128x8xf32>
    %73 = vector.extract_strided_slice %47 {offsets = [768, 0], sizes = [128, 1], strides = [1, 1]} : vector<1024x1xf32> to vector<128x1xf32>
    %74 = vector.broadcast %73 : vector<128x1xf32> to vector<128x8xf32>
    %75 = arith.mulf %72, %74 : vector<128x8xf32>
    %76 = vector.extract_strided_slice %41 {offsets = [896, 56], sizes = [128, 8], strides = [1, 1]} : vector<1024x128xf32> to vector<128x8xf32>
    %77 = vector.extract_strided_slice %47 {offsets = [896, 0], sizes = [128, 1], strides = [1, 1]} : vector<1024x1xf32> to vector<128x1xf32>
    %78 = vector.broadcast %77 : vector<128x1xf32> to vector<128x8xf32>
    %79 = arith.mulf %76, %78 : vector<128x8xf32>
    %cst_18 = arith.constant 0.000000e+00 : f32
    %80 = vector.broadcast %cst_18 : f32 to vector<128x64xf32>
    %81 = tpu.concatenate %51, %55, %59, %63, %67, %71, %75, %79, %80 in 1 : vector<128x8xf32>, vector<128x8xf32>, vector<128x8xf32>, vector<128x8xf32>, vector<128x8xf32>, vector<128x8xf32>, vector<128x8xf32>, vector<128x8xf32>, vector<128x64xf32> -> vector<128x128xf32>
    %c0_19 = arith.constant 0 : index
    %c0_20 = arith.constant 0 : index
    %82 = vector.load %arg6[%c0_19, %c0_20] : memref<128x128xf32, #tpu.memory_space<vmem>>, vector<128x128xf32>
    tpu.vector_store %arg6[%c0_19, %c0_20], %81 {strides = array<i32>} : memref<128x128xf32, #tpu.memory_space<vmem>>, vector<128x128xf32>,
    return
  }
  func.func @transform_0(%arg0: i32) -> (i32, i32) {
    %c0_i32 = arith.constant 0 : i32
    %c0_i32_0 = arith.constant 0 : i32
    %c0_i32_1 = arith.constant 0 : i32
    return %c0_i32, %c0_i32_0 : i32, i32
  }
  func.func @transform_1(%arg0: i32) -> (i32, i32) {
    %c0_i32 = arith.constant 0 : i32
    %c0_i32_0 = arith.constant 0 : i32
    %c0_i32_1 = arith.constant 0 : i32
    return %c0_i32, %c0_i32_0 : i32, i32
  }
  func.func @transform_2(%arg0: i32) -> (i32, i32) {
    %c0_i32 = arith.constant 0 : i32
    %c0_i32_0 = arith.constant 0 : i32
    %c0_i32_1 = arith.constant 0 : i32
    return %c0_i32, %c0_i32_0 : i32, i32
  }
  func.func @transform_3(%arg0: i32) -> (i32, i32) {
    %c0_i32 = arith.constant 0 : i32
    %c0_i32_0 = arith.constant 0 : i32
    %c0_i32_1 = arith.constant 0 : i32
    return %c0_i32, %c0_i32_0 : i32, i32
  }
  func.func @transform_4(%arg0: i32) -> (i32, i32) {
    %c0_i32 = arith.constant 0 : i32
    %c0_i32_0 = arith.constant 0 : i32
    return %arg0, %c0_i32 : i32, i32
  }
  func.func @transform_5(%arg0: i32) -> (i32, i32) {
    %c0_i32 = arith.constant 0 : i32
    %c0_i32_0 = arith.constant 0 : i32
    return %arg0, %c0_i32 : i32, i32
  }
}

</mosaic_0001>

<llo_original>
// kernel: gat_forward.1
$region0: #{gat_forward.1}
  #allocation0 [shape = 'u32[]', space=smem, size = 0x4, offset = 0x4, fixed_abs, tag = 'smem constant byte address 0x4 - core index']
  #allocation1 [shape = 'u32[72,128]{1,0:T(1,128)}', space=vmem, size = 0x9000, scoped, tag = 'internal scratch']
  %s0 = inlined_call_operand.vmem [shape: f32[128,32], index: 0, kind: input, shape index: {}]
  %s1 = inlined_call_operand.vmem [shape: f32[32,128], index: 1, kind: input, shape index: {}]
  %s2 = inlined_call_operand.vmem [shape: f32[1,128], index: 2, kind: input, shape index: {}]
  %s3 = inlined_call_operand.vmem [shape: f32[128,16], index: 3, kind: input, shape index: {}]
  %s4 = inlined_call_operand.vmem [shape: f32[128,128], index: 4, kind: input, shape index: {}]
  %s5 = inlined_call_operand.vmem [shape: f32[128,128], index: 5, kind: output, shape index: {}]
  %s6 = sld [smem:[#allocation0]]
  $region30: #{gat_forward.1} parent=0
    _
  %s8 = ssub.s32 1, %s6
  %s9 = scalar_select 0, %s8, %s6
  // Predicated region
  $region2: #{gat_forward.1} parent=0 // pred_check
    _
  $region3: #{gat_forward.1} parent=0 // pred_check_branch
    %11 = sbr.rel (0) target = $region5
  $region4: #{gat_forward.1} parent=0 // pred_region
    _
  $region5: #{gat_forward.1} parent=0 // pred_fallthru
    _
  // Predicated region
  $region6: #{gat_forward.1} parent=0 // pred_check
    _
  $region7: #{gat_forward.1} parent=0 // pred_check_branch
    %13 = sbr.rel (0) target = $region9
  $region8: #{gat_forward.1} parent=0 // pred_region
    _
  $region9: #{gat_forward.1} parent=0 // pred_fallthru
    _
  // Predicated region
  $region10: #{gat_forward.1} parent=0 // pred_check
    _
  $region11: #{gat_forward.1} parent=0 // pred_check_branch
    %15 = sbr.rel (0) target = $region13
  $region12: #{gat_forward.1} parent=0 // pred_region
    _
  $region13: #{gat_forward.1} parent=0 // pred_fallthru
    _
  // Predicated region
  $region14: #{gat_forward.1} parent=0 // pred_check
    _
  $region15: #{gat_forward.1} parent=0 // pred_check_branch
    %17 = sbr.rel (0) target = $region17
  $region16: #{gat_forward.1} parent=0 // pred_region
    _
  $region17: #{gat_forward.1} parent=0 // pred_fallthru
    _
  // Predicated region
  $region18: #{gat_forward.1} parent=0 // pred_check
    _
  $region19: #{gat_forward.1} parent=0 // pred_check_branch
    %19 = sbr.rel (0) target = $region21
  $region20: #{gat_forward.1} parent=0 // pred_region
    _
  $region21: #{gat_forward.1} parent=0 // pred_fallthru
    _
  %v20 = vld [vmem:[%s0] sm:$0xff]
  %v21 = vld [vmem:[%s0 + $0x8] sm:$0xff]
  %v22 = vld [vmem:[%s0 + $0x10] sm:$0xff]
  %v23 = vld [vmem:[%s0 + $0x18] sm:$0xff]
  %v24 = vld [vmem:[%s0 + $0x20] sm:$0xff]
  %v25 = vld [vmem:[%s0 + $0x28] sm:$0xff]
  %v26 = vld [vmem:[%s0 + $0x30] sm:$0xff]
  %v27 = vld [vmem:[%s0 + $0x38] sm:$0xff]
  %v28 = vld [vmem:[%s0 + $0x40] sm:$0xff]
  %v29 = vld [vmem:[%s0 + $0x48] sm:$0xff]
  %v30 = vld [vmem:[%s0 + $0x50] sm:$0xff]
  %v31 = vld [vmem:[%s0 + $0x58] sm:$0xff]
  %v32 = vld [vmem:[%s0 + $0x60] sm:$0xff]
  %v33 = vld [vmem:[%s0 + $0x68] sm:$0xff]
  %v34 = vld [vmem:[%s0 + $0x70] sm:$0xff]
  %v35 = vld [vmem:[%s0 + $0x78] sm:$0xff]
  %v36 = vld [vmem:[%s1] sm:$0xff]
  %v37 = vld [vmem:[%s1 + $0x8] sm:$0xff]
  %v38 = vld [vmem:[%s1 + $0x10] sm:$0xff]
  %v39 = vld [vmem:[%s1 + $0x18] sm:$0xff]
  %v40 = vld [vmem:[%s2] sm:$0x1]
  %v42 = vperm.slane %v40, 0
  %vm44 = vcmask 261120
  %v46 = vsel %vm44, %v20, 0
  %v49 = vsel %vm44, %v21, 0
  %v52 = vsel %vm44, %v22, 0
  %v55 = vsel %vm44, %v23, 0
  %v58 = vsel %vm44, %v24, 0
  %v61 = vsel %vm44, %v25, 0
  %v64 = vsel %vm44, %v26, 0
  %v67 = vsel %vm44, %v27, 0
  %v70 = vsel %vm44, %v28, 0
  %v73 = vsel %vm44, %v29, 0
  %v76 = vsel %vm44, %v30, 0
  %v79 = vsel %vm44, %v31, 0
  %v82 = vsel %vm44, %v32, 0
  %v85 = vsel %vm44, %v33, 0
  %v88 = vsel %vm44, %v34, 0
  %v91 = vsel %vm44, %v35, 0
  %93 = vmatpush.msra.mxu0 0.0
  %94 = vmatpush.msra.mxu0 0.0
  %95 = vmatpush.msra.mxu0 0.0
  %96 = vmatpush.msra.mxu0 0.0
  %97 = vmatpush.msra.mxu0 0.0
  %98 = vmatpush.msra.mxu0 0.0
  %99 = vmatpush.msra.mxu0 0.0
  %100 = vmatpush.msra.mxu0 0.0
  %101 = vmatpush.msra.mxu0 0.0
  %102 = vmatpush.msra.mxu0 0.0
  %103 = vmatpush.msra.mxu0 0.0
  %104 = vmatpush.msra.mxu0 0.0
  %105 = vmatpush.msra.mxu0 %v39
  %106 = vmatpush.msra.mxu0 %v38
  %107 = vmatpush.msra.mxu0 %v37
  %108 = vmatpush.msra.mxu0 %v36
  %109 = vmatmul.f32.gmra.mxu0 %v46
  %v110 = vpop.f32.mrf.mxu0
  %v111 = vadd.f32 %v42, %v110
  %112 = vmatmul.f32.gmra.mxu0 %v49
  %v113 = vpop.f32.mrf.mxu0
  %v114 = vadd.f32 %v42, %v113
  %115 = vmatmul.f32.gmra.mxu0 %v52
  %v116 = vpop.f32.mrf.mxu0
  %v117 = vadd.f32 %v42, %v116
  %118 = vmatmul.f32.gmra.mxu0 %v55
  %v119 = vpop.f32.mrf.mxu0
  %v120 = vadd.f32 %v42, %v119
  %121 = vmatmul.f32.gmra.mxu0 %v58
  %v122 = vpop.f32.mrf.mxu0
  %v123 = vadd.f32 %v42, %v122
  %124 = vmatmul.f32.gmra.mxu0 %v61
  %v125 = vpop.f32.mrf.mxu0
  %v126 = vadd.f32 %v42, %v125
  %127 = vmatmul.f32.gmra.mxu0 %v64
  %v128 = vpop.f32.mrf.mxu0
  %v129 = vadd.f32 %v42, %v128
  %130 = vmatmul.f32.gmra.mxu0 %v67
  %v131 = vpop.f32.mrf.mxu0
  %v132 = vadd.f32 %v42, %v131
  %133 = vmatmul.f32.gmra.mxu0 %v70
  %v134 = vpop.f32.mrf.mxu0
  %v135 = vadd.f32 %v42, %v134
  %136 = vmatmul.f32.gmra.mxu0 %v73
  %v137 = vpop.f32.mrf.mxu0
  %v138 = vadd.f32 %v42, %v137
  %139 = vmatmul.f32.gmra.mxu0 %v76
  %v140 = vpop.f32.mrf.mxu0
  %v141 = vadd.f32 %v42, %v140
  %142 = vmatmul.f32.gmra.mxu0 %v79
  %v143 = vpop.f32.mrf.mxu0
  %v144 = vadd.f32 %v42, %v143
  %145 = vmatmul.f32.gmra.mxu0 %v82
  %v146 = vpop.f32.mrf.mxu0
  %v147 = vadd.f32 %v42, %v146
  %148 = vmatmul.f32.gmra.mxu0 %v85
  %v149 = vpop.f32.mrf.mxu0
  %v150 = vadd.f32 %v42, %v149
  %151 = vmatmul.f32.gmra.mxu0 %v88
  %v152 = vpop.f32.mrf.mxu0
  %v153 = vadd.f32 %v42, %v152
  %154 = vmatmul.f32.gmra.mxu0 %v91
  %v155 = vpop.f32.mrf.mxu0
  %v156 = vadd.f32 %v42, %v155
  %157 = vdwg.mxu0
  %v158 = vld [vmem:[%s3] sm:$0xff]
  %v159 = vld [vmem:[%s3 + $0x8] sm:$0xff]
  %v160 = vld [vmem:[%s3 + $0x10] sm:$0xff]
  %v161 = vld [vmem:[%s3 + $0x18] sm:$0xff]
  %v162 = vld [vmem:[%s3 + $0x20] sm:$0xff]
  %v163 = vld [vmem:[%s3 + $0x28] sm:$0xff]
  %v164 = vld [vmem:[%s3 + $0x30] sm:$0xff]
  %v165 = vld [vmem:[%s3 + $0x38] sm:$0xff]
  %v166 = vld [vmem:[%s3 + $0x40] sm:$0xff]
  %v167 = vld [vmem:[%s3 + $0x48] sm:$0xff]
  %v168 = vld [vmem:[%s3 + $0x50] sm:$0xff]
  %v169 = vld [vmem:[%s3 + $0x58] sm:$0xff]
  %v170 = vld [vmem:[%s3 + $0x60] sm:$0xff]
  %v171 = vld [vmem:[%s3 + $0x68] sm:$0xff]
  %v172 = vld [vmem:[%s3 + $0x70] sm:$0xff]
  %v173 = vld [vmem:[%s3 + $0x78] sm:$0xff]
  %174 = vmatpush.msra.mxu0 %v173
  %175 = vmatpush.msra.mxu0 %v172
  %176 = vmatpush.msra.mxu0 %v171
  %177 = vmatpush.msra.mxu0 %v170
  %178 = vmatpush.msra.mxu0 %v169
  %179 = vmatpush.msra.mxu0 %v168
  %180 = vmatpush.msra.mxu0 %v167
  %181 = vmatpush.msra.mxu0 %v166
  %182 = vmatpush.msra.mxu0 %v165
  %183 = vmatpush.msra.mxu0 %v164
  %184 = vmatpush.msra.mxu0 %v163
  %185 = vmatpush.msra.mxu0 %v162
  %186 = vmatpush.msra.mxu0 %v161
  %187 = vmatpush.msra.mxu0 %v160
  %188 = vmatpush.msra.mxu0 %v159
  %189 = vmatpush.msra.mxu0 %v158
  %190 = vmatmul.f32.gmra.mxu0 %v111
  %v191 = vpop.f32.mrf.mxu0
  %v192 = vadd.f32 0.0, %v191
  %193 = vmatmul.f32.gmra.mxu0 %v114
  %v194 = vpop.f32.mrf.mxu0
  %v195 = vadd.f32 0.0, %v194
  %196 = vmatmul.f32.gmra.mxu0 %v117
  %v197 = vpop.f32.mrf.mxu0
  %v198 = vadd.f32 0.0, %v197
  %199 = vmatmul.f32.gmra.mxu0 %v120
  %v200 = vpop.f32.mrf.mxu0
  %v201 = vadd.f32 0.0, %v200
  %202 = vmatmul.f32.gmra.mxu0 %v123
  %v203 = vpop.f32.mrf.mxu0
  %v204 = vadd.f32 0.0, %v203
  %205 = vmatmul.f32.gmra.mxu0 %v126
  %v206 = vpop.f32.mrf.mxu0
  %v207 = vadd.f32 0.0, %v206
  %208 = vmatmul.f32.gmra.mxu0 %v129
  %v209 = vpop.f32.mrf.mxu0
  %v210 = vadd.f32 0.0, %v209
  %211 = vmatmul.f32.gmra.mxu0 %v132
  %v212 = vpop.f32.mrf.mxu0
  %v213 = vadd.f32 0.0, %v212
  %214 = vmatmul.f32.gmra.mxu0 %v135
  %v215 = vpop.f32.mrf.mxu0
  %v216 = vadd.f32 0.0, %v215
  %217 = vmatmul.f32.gmra.mxu0 %v138
  %v218 = vpop.f32.mrf.mxu0
  %v219 = vadd.f32 0.0, %v218
  %220 = vmatmul.f32.gmra.mxu0 %v141
  %v221 = vpop.f32.mrf.mxu0
  %v222 = vadd.f32 0.0, %v221
  %223 = vmatmul.f32.gmra.mxu0 %v144
  %v224 = vpop.f32.mrf.mxu0
  %v225 = vadd.f32 0.0, %v224
  %226 = vmatmul.f32.gmra.mxu0 %v147
  %v227 = vpop.f32.mrf.mxu0
  %v228 = vadd.f32 0.0, %v227
  %229 = vmatmul.f32.gmra.mxu0 %v150
  %v230 = vpop.f32.mrf.mxu0
  %v231 = vadd.f32 0.0, %v230
  %232 = vmatmul.f32.gmra.mxu0 %v153
  %v233 = vpop.f32.mrf.mxu0
  %v234 = vadd.f32 0.0, %v233
  %235 = vmatmul.f32.gmra.mxu0 %v156
  %v236 = vpop.f32.mrf.mxu0
  %v237 = vadd.f32 0.0, %v236
  %238 = vdwg.mxu0
  %239 = vxpose.xlu0.b32.start [1/16] %v192, 128
  %240 = vxpose.xlu0.b32.cont [2/16] %v195, 128
  %241 = vxpose.xlu0.b32.cont [3/16] %v198, 128
  %242 = vxpose.xlu0.b32.cont [4/16] %v201, 128
  %243 = vxpose.xlu0.b32.cont [5/16] %v204, 128
  %244 = vxpose.xlu0.b32.cont [6/16] %v207, 128
  %245 = vxpose.xlu0.b32.cont [7/16] %v210, 128
  %246 = vxpose.xlu0.b32.cont [8/16] %v213, 128
  %247 = vxpose.xlu0.b32.cont [9/16] %v216, 128
  %248 = vxpose.xlu0.b32.cont [10/16] %v219, 128
  %249 = vxpose.xlu0.b32.cont [11/16] %v222, 128
  %250 = vxpose.xlu0.b32.cont [12/16] %v225, 128
  %251 = vxpose.xlu0.b32.cont [13/16] %v228, 128
  %252 = vxpose.xlu0.b32.cont [14/16] %v231, 128
  %253 = vxpose.xlu0.b32.cont [15/16] %v234, 128
  %254 = vxpose.xlu0.b32.end [16/16] %v237, 128
  %v255 = vpop.trf.xlu0
  %v256 = vpop.trf.xlu0
  %v257 = vpop.trf.xlu0
  %v258 = vpop.trf.xlu0
  %v259 = vpop.trf.xlu0
  %v260 = vpop.trf.xlu0
  %v261 = vpop.trf.xlu0
  %v262 = vpop.trf.xlu0
  %v263 = vpop.trf.xlu0
  %v264 = vpop.trf.xlu0
  %v265 = vpop.trf.xlu0
  %v266 = vpop.trf.xlu0
  %v267 = vpop.trf.xlu0
  %v268 = vpop.trf.xlu0
  %v269 = vpop.trf.xlu0
  %v270 = vpop.trf.xlu0
  %287 = vrot.lane.b32.xlu0 %v192, 120
  %v288 = vpop.permute.xlu0 %287
  %289 = vrot.lane.b32.xlu0 %v195, 120
  %v290 = vpop.permute.xlu0 %289
  %291 = vrot.lane.b32.xlu0 %v198, 120
  %v292 = vpop.permute.xlu0 %291
  %293 = vrot.lane.b32.xlu0 %v201, 120
  %v294 = vpop.permute.xlu0 %293
  %295 = vrot.lane.b32.xlu0 %v204, 120
  %v296 = vpop.permute.xlu0 %295
  %297 = vrot.lane.b32.xlu0 %v207, 120
  %v298 = vpop.permute.xlu0 %297
  %299 = vrot.lane.b32.xlu0 %v210, 120
  %v300 = vpop.permute.xlu0 %299
  %301 = vrot.lane.b32.xlu0 %v213, 120
  %v302 = vpop.permute.xlu0 %301
  %303 = vrot.lane.b32.xlu0 %v216, 120
  %v304 = vpop.permute.xlu0 %303
  %305 = vrot.lane.b32.xlu0 %v219, 120
  %v306 = vpop.permute.xlu0 %305
  %307 = vrot.lane.b32.xlu0 %v222, 120
  %v308 = vpop.permute.xlu0 %307
  %309 = vrot.lane.b32.xlu0 %v225, 120
  %v310 = vpop.permute.xlu0 %309
  %311 = vrot.lane.b32.xlu0 %v228, 120
  %v312 = vpop.permute.xlu0 %311
  %313 = vrot.lane.b32.xlu0 %v231, 120
  %v314 = vpop.permute.xlu0 %313
  %315 = vrot.lane.b32.xlu0 %v234, 120
  %v316 = vpop.permute.xlu0 %315
  %317 = vrot.lane.b32.xlu0 %v237, 120
  %v318 = vpop.permute.xlu0 %317
  %335 = vxpose.xlu0.b32.start [1/16] %v288, 128
  %336 = vxpose.xlu0.b32.cont [2/16] %v290, 128
  %337 = vxpose.xlu0.b32.cont [3/16] %v292, 128
  %338 = vxpose.xlu0.b32.cont [4/16] %v294, 128
  %339 = vxpose.xlu0.b32.cont [5/16] %v296, 128
  %340 = vxpose.xlu0.b32.cont [6/16] %v298, 128
  %341 = vxpose.xlu0.b32.cont [7/16] %v300, 128
  %342 = vxpose.xlu0.b32.cont [8/16] %v302, 128
  %343 = vxpose.xlu0.b32.cont [9/16] %v304, 128
  %344 = vxpose.xlu0.b32.cont [10/16] %v306, 128
  %345 = vxpose.xlu0.b32.cont [11/16] %v308, 128
  %346 = vxpose.xlu0.b32.cont [12/16] %v310, 128
  %347 = vxpose.xlu0.b32.cont [13/16] %v312, 128
  %348 = vxpose.xlu0.b32.cont [14/16] %v314, 128
  %349 = vxpose.xlu0.b32.cont [15/16] %v316, 128
  %350 = vxpose.xlu0.b32.end [16/16] %v318, 128
  %v351 = vpop.trf.xlu0
  %v352 = vpop.trf.xlu0
  %v353 = vpop.trf.xlu0
  %v354 = vpop.trf.xlu0
  %v355 = vpop.trf.xlu0
  %v356 = vpop.trf.xlu0
  %v357 = vpop.trf.xlu0
  %v358 = vpop.trf.xlu0
  %v359 = vpop.trf.xlu0
  %v360 = vpop.trf.xlu0
  %v361 = vpop.trf.xlu0
  %v362 = vpop.trf.xlu0
  %v363 = vpop.trf.xlu0
  %v364 = vpop.trf.xlu0
  %v365 = vpop.trf.xlu0
  %v366 = vpop.trf.xlu0
  %v367 = vld [vmem:[%s4] sm:$0xff]
  %v368 = vld [vmem:[%s4 + $0x8] sm:$0xff]
  %v369 = vld [vmem:[%s4 + $0x10] sm:$0xff]
  %v370 = vld [vmem:[%s4 + $0x18] sm:$0xff]
  %v371 = vld [vmem:[%s4 + $0x20] sm:$0xff]
  %v372 = vld [vmem:[%s4 + $0x28] sm:$0xff]
  %v373 = vld [vmem:[%s4 + $0x30] sm:$0xff]
  %v374 = vld [vmem:[%s4 + $0x38] sm:$0xff]
  %v375 = vld [vmem:[%s4 + $0x40] sm:$0xff]
  %v376 = vld [vmem:[%s4 + $0x48] sm:$0xff]
  %v377 = vld [vmem:[%s4 + $0x50] sm:$0xff]
  %v378 = vld [vmem:[%s4 + $0x58] sm:$0xff]
  %v379 = vld [vmem:[%s4 + $0x60] sm:$0xff]
  %v380 = vld [vmem:[%s4 + $0x68] sm:$0xff]
  %v381 = vld [vmem:[%s4 + $0x70] sm:$0xff]
  %v382 = vld [vmem:[%s4 + $0x78] sm:$0xff]
  %vm383 = vcmp.ne.f32.partialorder %v367, 0.0
  %vm384 = vcmp.ne.f32.partialorder %v368, 0.0
  %vm385 = vcmp.ne.f32.partialorder %v369, 0.0
  %vm386 = vcmp.ne.f32.partialorder %v370, 0.0
  %vm387 = vcmp.ne.f32.partialorder %v371, 0.0
  %vm388 = vcmp.ne.f32.partialorder %v372, 0.0
  %vm389 = vcmp.ne.f32.partialorder %v373, 0.0
  %vm390 = vcmp.ne.f32.partialorder %v374, 0.0
  %vm391 = vcmp.ne.f32.partialorder %v375, 0.0
  %vm392 = vcmp.ne.f32.partialorder %v376, 0.0
  %vm393 = vcmp.ne.f32.partialorder %v377, 0.0
  %vm394 = vcmp.ne.f32.partialorder %v378, 0.0
  %vm395 = vcmp.ne.f32.partialorder %v379, 0.0
  %vm396 = vcmp.ne.f32.partialorder %v380, 0.0
  %vm397 = vcmp.ne.f32.partialorder %v381, 0.0
  %vm398 = vcmp.ne.f32.partialorder %v382, 0.0
  %v399 = vsel %vm383, 0.0, -1e+09
  %v400 = vsel %vm384, 0.0, -1e+09
  %v401 = vsel %vm385, 0.0, -1e+09
  %v402 = vsel %vm386, 0.0, -1e+09
  %v403 = vsel %vm387, 0.0, -1e+09
  %v404 = vsel %vm388, 0.0, -1e+09
  %v405 = vsel %vm389, 0.0, -1e+09
  %v406 = vsel %vm390, 0.0, -1e+09
  %v407 = vsel %vm391, 0.0, -1e+09
  %v408 = vsel %vm392, 0.0, -1e+09
  %v409 = vsel %vm393, 0.0, -1e+09
  %v410 = vsel %vm394, 0.0, -1e+09
  %v411 = vsel %vm395, 0.0, -1e+09
  %v412 = vsel %vm396, 0.0, -1e+09
  %v413 = vsel %vm397, 0.0, -1e+09
  %v414 = vsel %vm398, 0.0, -1e+09
  %415 = vmax.xlane.f32.xlu0 %v255
  %v416 = vpop.xlane.xlu0 %415
  %v417 = vadd.f32 %v416, %v351
  %v418 = vmul.f32 %v417, 0.2
  %v419 = vmax.f32 %v417, %v418
  %v420 = vperm.slane %v419, 0
  %v421 = vlaneseq
  %v422 = vshrl.u32 %v421, 7
  %424 = vset.pattern.permute.xlu0 %v422
  %425 = vperm.xlu0 %424, %v420
  %v426 = vpop.permute.xlu0 %425
  %v427 = vlaneseq
  %v428 = vshrl.u32 %v427, 7
  %v429 = vadd.s32 %v428, 8
  %430 = vset.pattern.permute.xlu0 %v429
  %431 = vperm.xlu0 %430, %v420
  %v432 = vpop.permute.xlu0 %431
  %v433 = vlaneseq
  %v434 = vshrl.u32 %v433, 7
  %v435 = vadd.s32 %v434, 16
  %436 = vset.pattern.permute.xlu0 %v435
  %437 = vperm.xlu0 %436, %v420
  %v438 = vpop.permute.xlu0 %437
  %v439 = vlaneseq
  %v440 = vshrl.u32 %v439, 7
  %v441 = vadd.s32 %v440, 24
  %442 = vset.pattern.permute.xlu0 %v441
  %443 = vperm.xlu0 %442, %v420
  %v444 = vpop.permute.xlu0 %443
  %v445 = vlaneseq
  %v446 = vshrl.u32 %v445, 7
  %v447 = vadd.s32 %v446, 32
  %448 = vset.pattern.permute.xlu0 %v447
  %449 = vperm.xlu0 %448, %v420
  %v450 = vpop.permute.xlu0 %449
  %v451 = vlaneseq
  %v452 = vshrl.u32 %v451, 7
  %v453 = vadd.s32 %v452, 40
  %454 = vset.pattern.permute.xlu0 %v453
  %455 = vperm.xlu0 %454, %v420
  %v456 = vpop.permute.xlu0 %455
  %v457 = vlaneseq
  %v458 = vshrl.u32 %v457, 7
  %v459 = vadd.s32 %v458, 48
  %460 = vset.pattern.permute.xlu0 %v459
  %461 = vperm.xlu0 %460, %v420
  %v462 = vpop.permute.xlu0 %461
  %v463 = vlaneseq
  %v464 = vshrl.u32 %v463, 7
  %v465 = vadd.s32 %v464, 56
  %466 = vset.pattern.permute.xlu0 %v465
  %467 = vperm.xlu0 %466, %v420
  %v468 = vpop.permute.xlu0 %467
  %v469 = vlaneseq
  %v470 = vshrl.u32 %v469, 7
  %v471 = vadd.s32 %v470, 64
  %472 = vset.pattern.permute.xlu0 %v471
  %473 = vperm.xlu0 %472, %v420
  %v474 = vpop.permute.xlu0 %473
  %v475 = vlaneseq
  %v476 = vshrl.u32 %v475, 7
  %v477 = vadd.s32 %v476, 72
  %478 = vset.pattern.permute.xlu0 %v477
  %479 = vperm.xlu0 %478, %v420
  %v480 = vpop.permute.xlu0 %479
  %v481 = vlaneseq
  %v482 = vshrl.u32 %v481, 7
  %v483 = vadd.s32 %v482, 80
  %484 = vset.pattern.permute.xlu0 %v483
  %485 = vperm.xlu0 %484, %v420
  %v486 = vpop.permute.xlu0 %485
  %v487 = vlaneseq
  %v488 = vshrl.u32 %v487, 7
  %v489 = vadd.s32 %v488, 88
  %490 = vset.pattern.permute.xlu0 %v489
  %491 = vperm.xlu0 %490, %v420
  %v492 = vpop.permute.xlu0 %491
  %v493 = vlaneseq
  %v494 = vshrl.u32 %v493, 7
  %v495 = vadd.s32 %v494, 96
  %496 = vset.pattern.permute.xlu0 %v495
  %497 = vperm.xlu0 %496, %v420
  %v498 = vpop.permute.xlu0 %497
  %v499 = vlaneseq
  %v500 = vshrl.u32 %v499, 7
  %v501 = vadd.s32 %v500, 104
  %502 = vset.pattern.permute.xlu0 %v501
  %503 = vperm.xlu0 %502, %v420
  %v504 = vpop.permute.xlu0 %503
  %v505 = vlaneseq
  %v506 = vshrl.u32 %v505, 7
  %v507 = vadd.s32 %v506, 112
  %508 = vset.pattern.permute.xlu0 %v507
  %509 = vperm.xlu0 %508, %v420
  %v510 = vpop.permute.xlu0 %509
  %v511 = vlaneseq
  %v512 = vshrl.u32 %v511, 7
  %v513 = vadd.s32 %v512, 120
  %514 = vset.pattern.permute.xlu0 %v513
  %515 = vperm.xlu0 %514, %v420
  %v516 = vpop.permute.xlu0 %515
  %v517 = vperm.slane %v419, 1
  %v518 = vlaneseq
  %v519 = vshrl.u32 %v518, 7
  %521 = vset.pattern.permute.xlu0 %v519
  %522 = vperm.xlu0 %521, %v517
  %v523 = vpop.permute.xlu0 %522
  %v524 = vlaneseq
  %v525 = vshrl.u32 %v524, 7
  %v526 = vadd.s32 %v525, 8
  %527 = vset.pattern.permute.xlu0 %v526
  %528 = vperm.xlu0 %527, %v517
  %v529 = vpop.permute.xlu0 %528
  %v530 = vlaneseq
  %v531 = vshrl.u32 %v530, 7
  %v532 = vadd.s32 %v531, 16
  %533 = vset.pattern.permute.xlu0 %v532
  %534 = vperm.xlu0 %533, %v517
  %v535 = vpop.permute.xlu0 %534
  %v536 = vlaneseq
  %v537 = vshrl.u32 %v536, 7
  %v538 = vadd.s32 %v537, 24
  %539 = vset.pattern.permute.xlu0 %v538
  %540 = vperm.xlu0 %539, %v517
  %v541 = vpop.permute.xlu0 %540
  %v542 = vlaneseq
  %v543 = vshrl.u32 %v542, 7
  %v544 = vadd.s32 %v543, 32
  %545 = vset.pattern.permute.xlu0 %v544
  %546 = vperm.xlu0 %545, %v517
  %v547 = vpop.permute.xlu0 %546
  %v548 = vlaneseq
  %v549 = vshrl.u32 %v548, 7
  %v550 = vadd.s32 %v549, 40
  %551 = vset.pattern.permute.xlu0 %v550
  %552 = vperm.xlu0 %551, %v517
  %v553 = vpop.permute.xlu0 %552
  %v554 = vlaneseq
  %v555 = vshrl.u32 %v554, 7
  %v556 = vadd.s32 %v555, 48
  %557 = vset.pattern.permute.xlu0 %v556
  %558 = vperm.xlu0 %557, %v517
  %v559 = vpop.permute.xlu0 %558
  %v560 = vlaneseq
  %v561 = vshrl.u32 %v560, 7
  %v562 = vadd.s32 %v561, 56
  %563 = vset.pattern.permute.xlu0 %v562
  %564 = vperm.xlu0 %563, %v517
  %v565 = vpop.permute.xlu0 %564
  %v566 = vlaneseq
  %v567 = vshrl.u32 %v566, 7
  %v568 = vadd.s32 %v567, 64
  %569 = vset.pattern.permute.xlu0 %v568
  %570 = vperm.xlu0 %569, %v517
  %v571 = vpop.permute.xlu0 %570
  %v572 = vlaneseq
  %v573 = vshrl.u32 %v572, 7
  %v574 = vadd.s32 %v573, 72
  %575 = vset.pattern.permute.xlu0 %v574
  %576 = vperm.xlu0 %575, %v517
  %v577 = vpop.permute.xlu0 %576
  %v578 = vlaneseq
  %v579 = vshrl.u32 %v578, 7
  %v580 = vadd.s32 %v579, 80
  %581 = vset.pattern.permute.xlu0 %v580
  %582 = vperm.xlu0 %581, %v517
  %v583 = vpop.permute.xlu0 %582
  %v584 = vlaneseq
  %v585 = vshrl.u32 %v584, 7
  %v586 = vadd.s32 %v585, 88
  %587 = vset.pattern.permute.xlu0 %v586
  %588 = vperm.xlu0 %587, %v517
  %v589 = vpop.permute.xlu0 %588
  %v590 = vlaneseq
  %v591 = vshrl.u32 %v590, 7
  %v592 = vadd.s32 %v591, 96
  %593 = vset.pattern.permute.xlu0 %v592
  %594 = vperm.xlu0 %593, %v517
  %v595 = vpop.permute.xlu0 %594
  %v596 = vlaneseq
  %v597 = vshrl.u32 %v596, 7
  %v598 = vadd.s32 %v597, 104
  %599 = vset.pattern.permute.xlu0 %v598
  %600 = vperm.xlu0 %599, %v517
  %v601 = vpop.permute.xlu0 %600
  %v602 = vlaneseq
  %v603 = vshrl.u32 %v602, 7
  %v604 = vadd.s32 %v603, 112
  %605 = vset.pattern.permute.xlu0 %v604
  %606 = vperm.xlu0 %605, %v517
  %v607 = vpop.permute.xlu0 %606
  %v608 = vlaneseq
  %v609 = vshrl.u32 %v608, 7
  %v610 = vadd.s32 %v609, 120
  %611 = vset.pattern.permute.xlu0 %v610
  %612 = vperm.xlu0 %611, %v517
  %v613 = vpop.permute.xlu0 %612
  %v614 = vperm.slane %v419, 2
  %v615 = vlaneseq
  %v616 = vshrl.u32 %v615, 7
  %618 = vset.pattern.permute.xlu0 %v616
  %619 = vperm.xlu0 %618, %v614
  %v620 = vpop.permute.xlu0 %619
  %v621 = vlaneseq
  %v622 = vshrl.u32 %v621, 7
  %v623 = vadd.s32 %v622, 8
  %624 = vset.pattern.permute.xlu0 %v623
  %625 = vperm.xlu0 %624, %v614
  %v626 = vpop.permute.xlu0 %625
  %v627 = vlaneseq
  %v628 = vshrl.u32 %v627, 7
  %v629 = vadd.s32 %v628, 16
  %630 = vset.pattern.permute.xlu0 %v629
  %631 = vperm.xlu0 %630, %v614
  %v632 = vpop.permute.xlu0 %631
  %v633 = vlaneseq
  %v634 = vshrl.u32 %v633, 7
  %v635 = vadd.s32 %v634, 24
  %636 = vset.pattern.permute.xlu0 %v635
  %637 = vperm.xlu0 %636, %v614
  %v638 = vpop.permute.xlu0 %637
  %v639 = vlaneseq
  %v640 = vshrl.u32 %v639, 7
  %v641 = vadd.s32 %v640, 32
  %642 = vset.pattern.permute.xlu0 %v641
  %643 = vperm.xlu0 %642, %v614
  %v644 = vpop.permute.xlu0 %643
  %v645 = vlaneseq
  %v646 = vshrl.u32 %v645, 7
  %v647 = vadd.s32 %v646, 40
  %648 = vset.pattern.permute.xlu0 %v647
  %649 = vperm.xlu0 %648, %v614
  %v650 = vpop.permute.xlu0 %649
  %v651 = vlaneseq
  %v652 = vshrl.u32 %v651, 7
  %v653 = vadd.s32 %v652, 48
  %654 = vset.pattern.permute.xlu0 %v653
  %655 = vperm.xlu0 %654, %v614
  %v656 = vpop.permute.xlu0 %655
  %v657 = vlaneseq
  %v658 = vshrl.u32 %v657, 7
  %v659 = vadd.s32 %v658, 56
  %660 = vset.pattern.permute.xlu0 %v659
  %661 = vperm.xlu0 %660, %v614
  %v662 = vpop.permute.xlu0 %661
  %v663 = vlaneseq
  %v664 = vshrl.u32 %v663, 7
  %v665 = vadd.s32 %v664, 64
  %666 = vset.pattern.permute.xlu0 %v665
  %667 = vperm.xlu0 %666, %v614
  %v668 = vpop.permute.xlu0 %667
  %v669 = vlaneseq
  %v670 = vshrl.u32 %v669, 7
  %v671 = vadd.s32 %v670, 72
  %672 = vset.pattern.permute.xlu0 %v671
  %673 = vperm.xlu0 %672, %v614
  %v674 = vpop.permute.xlu0 %673
  %v675 = vlaneseq
  %v676 = vshrl.u32 %v675, 7
  %v677 = vadd.s32 %v676, 80
  %678 = vset.pattern.permute.xlu0 %v677
  %679 = vperm.xlu0 %678, %v614
  %v680 = vpop.permute.xlu0 %679
  %v681 = vlaneseq
  %v682 = vshrl.u32 %v681, 7
  %v683 = vadd.s32 %v682, 88
  %684 = vset.pattern.permute.xlu0 %v683
  %685 = vperm.xlu0 %684, %v614
  %v686 = vpop.permute.xlu0 %685
  %v687 = vlaneseq
  %v688 = vshrl.u32 %v687, 7
  %v689 = vadd.s32 %v688, 96
  %690 = vset.pattern.permute.xlu0 %v689
  %691 = vperm.xlu0 %690, %v614
  %v692 = vpop.permute.xlu0 %691
  %v693 = vlaneseq
  %v694 = vshrl.u32 %v693, 7
  %v695 = vadd.s32 %v694, 104
  %696 = vset.pattern.permute.xlu0 %v695
  %697 = vperm.xlu0 %696, %v614
  %v698 = vpop.permute.xlu0 %697
  %v699 = vlaneseq
  %v700 = vshrl.u32 %v699, 7
  %v701 = vadd.s32 %v700, 112
  %702 = vset.pattern.permute.xlu0 %v701
  %703 = vperm.xlu0 %702, %v614
  %v704 = vpop.permute.xlu0 %703
  %v705 = vlaneseq
  %v706 = vshrl.u32 %v705, 7
  %v707 = vadd.s32 %v706, 120
  %708 = vset.pattern.permute.xlu0 %v707
  %709 = vperm.xlu0 %708, %v614
  %v710 = vpop.permute.xlu0 %709
  %v711 = vperm.slane %v419, 3
  %v712 = vlaneseq
  %v713 = vshrl.u32 %v712, 7
  %715 = vset.pattern.permute.xlu0 %v713
  %716 = vperm.xlu0 %715, %v711
  %v717 = vpop.permute.xlu0 %716
  %v718 = vlaneseq
  %v719 = vshrl.u32 %v718, 7
  %v720 = vadd.s32 %v719, 8
  %721 = vset.pattern.permute.xlu0 %v720
  %722 = vperm.xlu0 %721, %v711
  %v723 = vpop.permute.xlu0 %722
  %v724 = vlaneseq
  %v725 = vshrl.u32 %v724, 7
  %v726 = vadd.s32 %v725, 16
  %727 = vset.pattern.permute.xlu0 %v726
  %728 = vperm.xlu0 %727, %v711
  %v729 = vpop.permute.xlu0 %728
  %v730 = vlaneseq
  %v731 = vshrl.u32 %v730, 7
  %v732 = vadd.s32 %v731, 24
  %733 = vset.pattern.permute.xlu0 %v732
  %734 = vperm.xlu0 %733, %v711
  %v735 = vpop.permute.xlu0 %734
  %v736 = vlaneseq
  %v737 = vshrl.u32 %v736, 7
  %v738 = vadd.s32 %v737, 32
  %739 = vset.pattern.permute.xlu0 %v738
  %740 = vperm.xlu0 %739, %v711
  %v741 = vpop.permute.xlu0 %740
  %v742 = vlaneseq
  %v743 = vshrl.u32 %v742, 7
  %v744 = vadd.s32 %v743, 40
  %745 = vset.pattern.permute.xlu0 %v744
  %746 = vperm.xlu0 %745, %v711
  %v747 = vpop.permute.xlu0 %746
  %v748 = vlaneseq
  %v749 = vshrl.u32 %v748, 7
  %v750 = vadd.s32 %v749, 48
  %751 = vset.pattern.permute.xlu0 %v750
  %752 = vperm.xlu0 %751, %v711
  %v753 = vpop.permute.xlu0 %752
  %v754 = vlaneseq
  %v755 = vshrl.u32 %v754, 7
  %v756 = vadd.s32 %v755, 56
  %757 = vset.pattern.permute.xlu0 %v756
  %758 = vperm.xlu0 %757, %v711
  %v759 = vpop.permute.xlu0 %758
  %v760 = vlaneseq
  %v761 = vshrl.u32 %v760, 7
  %v762 = vadd.s32 %v761, 64
  %763 = vset.pattern.permute.xlu0 %v762
  %764 = vperm.xlu0 %763, %v711
  %v765 = vpop.permute.xlu0 %764
  %v766 = vlaneseq
  %v767 = vshrl.u32 %v766, 7
  %v768 = vadd.s32 %v767, 72
  %769 = vset.pattern.permute.xlu0 %v768
  %770 = vperm.xlu0 %769, %v711
  %v771 = vpop.permute.xlu0 %770
  %v772 = vlaneseq
  %v773 = vshrl.u32 %v772, 7
  %v774 = vadd.s32 %v773, 80
  %775 = vset.pattern.permute.xlu0 %v774
  %776 = vperm.xlu0 %775, %v711
  %v777 = vpop.permute.xlu0 %776
  %v778 = vlaneseq
  %v779 = vshrl.u32 %v778, 7
  %v780 = vadd.s32 %v779, 88
  %781 = vset.pattern.permute.xlu0 %v780
  %782 = vperm.xlu0 %781, %v711
  %v783 = vpop.permute.xlu0 %782
  %v784 = vlaneseq
  %v785 = vshrl.u32 %v784, 7
  %v786 = vadd.s32 %v785, 96
  %787 = vset.pattern.permute.xlu0 %v786
  %788 = vperm.xlu0 %787, %v711
  %v789 = vpop.permute.xlu0 %788
  %v790 = vlaneseq
  %v791 = vshrl.u32 %v790, 7
  %v792 = vadd.s32 %v791, 104
  %793 = vset.pattern.permute.xlu0 %v792
  %794 = vperm.xlu0 %793, %v711
  %v795 = vpop.permute.xlu0 %794
  %v796 = vlaneseq
  %v797 = vshrl.u32 %v796, 7
  %v798 = vadd.s32 %v797, 112
  %799 = vset.pattern.permute.xlu0 %v798
  %800 = vperm.xlu0 %799, %v711
  %v801 = vpop.permute.xlu0 %800
  %v802 = vlaneseq
  %v803 = vshrl.u32 %v802, 7
  %v804 = vadd.s32 %v803, 120
  %805 = vset.pattern.permute.xlu0 %v804
  %806 = vperm.xlu0 %805, %v711
  %v807 = vpop.permute.xlu0 %806
  %v808 = vperm.slane %v419, 4
  %v809 = vlaneseq
  %v810 = vshrl.u32 %v809, 7
  %812 = vset.pattern.permute.xlu0 %v810
  %813 = vperm.xlu0 %812, %v808
  %v814 = vpop.permute.xlu0 %813
  %v815 = vlaneseq
  %v816 = vshrl.u32 %v815, 7
  %v817 = vadd.s32 %v816, 8
  %818 = vset.pattern.permute.xlu0 %v817
  %819 = vperm.xlu0 %818, %v808
  %v820 = vpop.permute.xlu0 %819
  %v821 = vlaneseq
  %v822 = vshrl.u32 %v821, 7
  %v823 = vadd.s32 %v822, 16
  %824 = vset.pattern.permute.xlu0 %v823
  %825 = vperm.xlu0 %824, %v808
  %v826 = vpop.permute.xlu0 %825
  %v827 = vlaneseq
  %v828 = vshrl.u32 %v827, 7
  %v829 = vadd.s32 %v828, 24
  %830 = vset.pattern.permute.xlu0 %v829
  %831 = vperm.xlu0 %830, %v808
  %v832 = vpop.permute.xlu0 %831
  %v833 = vlaneseq
  %v834 = vshrl.u32 %v833, 7
  %v835 = vadd.s32 %v834, 32
  %836 = vset.pattern.permute.xlu0 %v835
  %837 = vperm.xlu0 %836, %v808
  %v838 = vpop.permute.xlu0 %837
  %v839 = vlaneseq
  %v840 = vshrl.u32 %v839, 7
  %v841 = vadd.s32 %v840, 40
  %842 = vset.pattern.permute.xlu0 %v841
  %843 = vperm.xlu0 %842, %v808
  %v844 = vpop.permute.xlu0 %843
  %v845 = vlaneseq
  %v846 = vshrl.u32 %v845, 7
  %v847 = vadd.s32 %v846, 48
  %848 = vset.pattern.permute.xlu0 %v847
  %849 = vperm.xlu0 %848, %v808
  %v850 = vpop.permute.xlu0 %849
  %v851 = vlaneseq
  %v852 = vshrl.u32 %v851, 7
  %v853 = vadd.s32 %v852, 56
  %854 = vset.pattern.permute.xlu0 %v853
  %855 = vperm.xlu0 %854, %v808
  %v856 = vpop.permute.xlu0 %855
  %v857 = vlaneseq
  %v858 = vshrl.u32 %v857, 7
  %v859 = vadd.s32 %v858, 64
  %860 = vset.pattern.permute.xlu0 %v859
  %861 = vperm.xlu0 %860, %v808
  %v862 = vpop.permute.xlu0 %861
  %v863 = vlaneseq
  %v864 = vshrl.u32 %v863, 7
  %v865 = vadd.s32 %v864, 72
  %866 = vset.pattern.permute.xlu0 %v865
  %867 = vperm.xlu0 %866, %v808
  %v868 = vpop.permute.xlu0 %867
  %v869 = vlaneseq
  %v870 = vshrl.u32 %v869, 7
  %v871 = vadd.s32 %v870, 80
  %872 = vset.pattern.permute.xlu0 %v871
  %873 = vperm.xlu0 %872, %v808
  %v874 = vpop.permute.xlu0 %873
  %v875 = vlaneseq
  %v876 = vshrl.u32 %v875, 7
  %v877 = vadd.s32 %v876, 88
  %878 = vset.pattern.permute.xlu0 %v877
  %879 = vperm.xlu0 %878, %v808
  %v880 = vpop.permute.xlu0 %879
  %v881 = vlaneseq
  %v882 = vshrl.u32 %v881, 7
  %v883 = vadd.s32 %v882, 96
  %884 = vset.pattern.permute.xlu0 %v883
  %885 = vperm.xlu0 %884, %v808
  %v886 = vpop.permute.xlu0 %885
  %v887 = vlaneseq
  %v888 = vshrl.u32 %v887, 7
  %v889 = vadd.s32 %v888, 104
  %890 = vset.pattern.permute.xlu0 %v889
  %891 = vperm.xlu0 %890, %v808
  %v892 = vpop.permute.xlu0 %891
  %v893 = vlaneseq
  %v894 = vshrl.u32 %v893, 7
  %v895 = vadd.s32 %v894, 112
  %896 = vset.pattern.permute.xlu0 %v895
  %897 = vperm.xlu0 %896, %v808
  %v898 = vpop.permute.xlu0 %897
  %v899 = vlaneseq
  %v900 = vshrl.u32 %v899, 7
  %v901 = vadd.s32 %v900, 120
  %902 = vset.pattern.permute.xlu0 %v901
  %903 = vperm.xlu0 %902, %v808
  %v904 = vpop.permute.xlu0 %903
  %v905 = vperm.slane %v419, 5
  %v906 = vlaneseq
  %v907 = vshrl.u32 %v906, 7
  %909 = vset.pattern.permute.xlu0 %v907
  %910 = vperm.xlu0 %909, %v905
  %v911 = vpop.permute.xlu0 %910
  %v912 = vlaneseq
  %v913 = vshrl.u32 %v912, 7
  %v914 = vadd.s32 %v913, 8
  %915 = vset.pattern.permute.xlu0 %v914
  %916 = vperm.xlu0 %915, %v905
  %v917 = vpop.permute.xlu0 %916
  %v918 = vlaneseq
  %v919 = vshrl.u32 %v918, 7
  %v920 = vadd.s32 %v919, 16
  %921 = vset.pattern.permute.xlu0 %v920
  %922 = vperm.xlu0 %921, %v905
  %v923 = vpop.permute.xlu0 %922
  %v924 = vlaneseq
  %v925 = vshrl.u32 %v924, 7
  %v926 = vadd.s32 %v925, 24
  %927 = vset.pattern.permute.xlu0 %v926
  %928 = vperm.xlu0 %927, %v905
  %v929 = vpop.permute.xlu0 %928
  %v930 = vlaneseq
  %v931 = vshrl.u32 %v930, 7
  %v932 = vadd.s32 %v931, 32
  %933 = vset.pattern.permute.xlu0 %v932
  %934 = vperm.xlu0 %933, %v905
  %v935 = vpop.permute.xlu0 %934
  %v936 = vlaneseq
  %v937 = vshrl.u32 %v936, 7
  %v938 = vadd.s32 %v937, 40
  %939 = vset.pattern.permute.xlu0 %v938
  %940 = vperm.xlu0 %939, %v905
  %v941 = vpop.permute.xlu0 %940
  %v942 = vlaneseq
  %v943 = vshrl.u32 %v942, 7
  %v944 = vadd.s32 %v943, 48
  %945 = vset.pattern.permute.xlu0 %v944
  %946 = vperm.xlu0 %945, %v905
  %v947 = vpop.permute.xlu0 %946
  %v948 = vlaneseq
  %v949 = vshrl.u32 %v948, 7
  %v950 = vadd.s32 %v949, 56
  %951 = vset.pattern.permute.xlu0 %v950
  %952 = vperm.xlu0 %951, %v905
  %v953 = vpop.permute.xlu0 %952
  %v954 = vlaneseq
  %v955 = vshrl.u32 %v954, 7
  %v956 = vadd.s32 %v955, 64
  %957 = vset.pattern.permute.xlu0 %v956
  %958 = vperm.xlu0 %957, %v905
  %v959 = vpop.permute.xlu0 %958
  %v960 = vlaneseq
  %v961 = vshrl.u32 %v960, 7
  %v962 = vadd.s32 %v961, 72
  %963 = vset.pattern.permute.xlu0 %v962
  %964 = vperm.xlu0 %963, %v905
  %v965 = vpop.permute.xlu0 %964
  %v966 = vlaneseq
  %v967 = vshrl.u32 %v966, 7
  %v968 = vadd.s32 %v967, 80
  %969 = vset.pattern.permute.xlu0 %v968
  %970 = vperm.xlu0 %969, %v905
  %v971 = vpop.permute.xlu0 %970
  %v972 = vlaneseq
  %v973 = vshrl.u32 %v972, 7
  %v974 = vadd.s32 %v973, 88
  %975 = vset.pattern.permute.xlu0 %v974
  %976 = vperm.xlu0 %975, %v905
  %v977 = vpop.permute.xlu0 %976
  %v978 = vlaneseq
  %v979 = vshrl.u32 %v978, 7
  %v980 = vadd.s32 %v979, 96
  %981 = vset.pattern.permute.xlu0 %v980
  %982 = vperm.xlu0 %981, %v905
  %v983 = vpop.permute.xlu0 %982
  %v984 = vlaneseq
  %v985 = vshrl.u32 %v984, 7
  %v986 = vadd.s32 %v985, 104
  %987 = vset.pattern.permute.xlu0 %v986
  %988 = vperm.xlu0 %987, %v905
  %v989 = vpop.permute.xlu0 %988
  %v990 = vlaneseq
  %v991 = vshrl.u32 %v990, 7
  %v992 = vadd.s32 %v991, 112
  %993 = vset.pattern.permute.xlu0 %v992
  %994 = vperm.xlu0 %993, %v905
  %v995 = vpop.permute.xlu0 %994
  %v996 = vlaneseq
  %v997 = vshrl.u32 %v996, 7
  %v998 = vadd.s32 %v997, 120
  %999 = vset.pattern.permute.xlu0 %v998
  %1000 = vperm.xlu0 %999, %v905
  %v1001 = vpop.permute.xlu0 %1000
  %v1002 = vperm.slane %v419, 6
  %v1003 = vlaneseq
  %v1004 = vshrl.u32 %v1003, 7
  %1006 = vset.pattern.permute.xlu0 %v1004
  %1007 = vperm.xlu0 %1006, %v1002
  %v1008 = vpop.permute.xlu0 %1007
  %v1009 = vlaneseq
  %v1010 = vshrl.u32 %v1009, 7
  %v1011 = vadd.s32 %v1010, 8
  %1012 = vset.pattern.permute.xlu0 %v1011
  %1013 = vperm.xlu0 %1012, %v1002
  %v1014 = vpop.permute.xlu0 %1013
  %v1015 = vlaneseq
  %v1016 = vshrl.u32 %v1015, 7
  %v1017 = vadd.s32 %v1016, 16
  %1018 = vset.pattern.permute.xlu0 %v1017
  %1019 = vperm.xlu0 %1018, %v1002
  %v1020 = vpop.permute.xlu0 %1019
  %v1021 = vlaneseq
  %v1022 = vshrl.u32 %v1021, 7
  %v1023 = vadd.s32 %v1022, 24
  %1024 = vset.pattern.permute.xlu0 %v1023
  %1025 = vperm.xlu0 %1024, %v1002
  %v1026 = vpop.permute.xlu0 %1025
  %v1027 = vlaneseq
  %v1028 = vshrl.u32 %v1027, 7
  %v1029 = vadd.s32 %v1028, 32
  %1030 = vset.pattern.permute.xlu0 %v1029
  %1031 = vperm.xlu0 %1030, %v1002
  %v1032 = vpop.permute.xlu0 %1031
  %v1033 = vlaneseq
  %v1034 = vshrl.u32 %v1033, 7
  %v1035 = vadd.s32 %v1034, 40
  %1036 = vset.pattern.permute.xlu0 %v1035
  %1037 = vperm.xlu0 %1036, %v1002
  %v1038 = vpop.permute.xlu0 %1037
  %v1039 = vlaneseq
  %v1040 = vshrl.u32 %v1039, 7
  %v1041 = vadd.s32 %v1040, 48
  %1042 = vset.pattern.permute.xlu0 %v1041
  %1043 = vperm.xlu0 %1042, %v1002
  %v1044 = vpop.permute.xlu0 %1043
  %v1045 = vlaneseq
  %v1046 = vshrl.u32 %v1045, 7
  %v1047 = vadd.s32 %v1046, 56
  %1048 = vset.pattern.permute.xlu0 %v1047
  %1049 = vperm.xlu0 %1048, %v1002
  %v1050 = vpop.permute.xlu0 %1049
  %v1051 = vlaneseq
  %v1052 = vshrl.u32 %v1051, 7
  %v1053 = vadd.s32 %v1052, 64
  %1054 = vset.pattern.permute.xlu0 %v1053
  %1055 = vperm.xlu0 %1054, %v1002
  %v1056 = vpop.permute.xlu0 %1055
  %v1057 = vlaneseq
  %v1058 = vshrl.u32 %v1057, 7
  %v1059 = vadd.s32 %v1058, 72
  %1060 = vset.pattern.permute.xlu0 %v1059
  %1061 = vperm.xlu0 %1060, %v1002
  %v1062 = vpop.permute.xlu0 %1061
  %v1063 = vlaneseq
  %v1064 = vshrl.u32 %v1063, 7
  %v1065 = vadd.s32 %v1064, 80
  %1066 = vset.pattern.permute.xlu0 %v1065
  %1067 = vperm.xlu0 %1066, %v1002
  %v1068 = vpop.permute.xlu0 %1067
  %v1069 = vlaneseq
  %v1070 = vshrl.u32 %v1069, 7
  %v1071 = vadd.s32 %v1070, 88
  %1072 = vset.pattern.permute.xlu0 %v1071
  %1073 = vperm.xlu0 %1072, %v1002
  %v1074 = vpop.permute.xlu0 %1073
  %v1075 = vlaneseq
  %v1076 = vshrl.u32 %v1075, 7
  %v1077 = vadd.s32 %v1076, 96
  %1078 = vset.pattern.permute.xlu0 %v1077
  %1079 = vperm.xlu0 %1078, %v1002
  %v1080 = vpop.permute.xlu0 %1079
  %v1081 = vlaneseq
  %v1082 = vshrl.u32 %v1081, 7
  %v1083 = vadd.s32 %v1082, 104
  %1084 = vset.pattern.permute.xlu0 %v1083
  %1085 = vperm.xlu0 %1084, %v1002
  %v1086 = vpop.permute.xlu0 %1085
  %v1087 = vlaneseq
  %v1088 = vshrl.u32 %v1087, 7
  %v1089 = vadd.s32 %v1088, 112
  %1090 = vset.pattern.permute.xlu0 %v1089
  %1091 = vperm.xlu0 %1090, %v1002
  %v1092 = vpop.permute.xlu0 %1091
  %v1093 = vlaneseq
  %v1094 = vshrl.u32 %v1093, 7
  %v1095 = vadd.s32 %v1094, 120
  %1096 = vset.pattern.permute.xlu0 %v1095
  %1097 = vperm.xlu0 %1096, %v1002
  %v1098 = vpop.permute.xlu0 %1097
  %v1099 = vperm.slane %v419, 7
  %v1100 = vlaneseq
  %v1101 = vshrl.u32 %v1100, 7
  %1103 = vset.pattern.permute.xlu0 %v1101
  %1104 = vperm.xlu0 %1103, %v1099
  %v1105 = vpop.permute.xlu0 %1104
  %v1106 = vlaneseq
  %v1107 = vshrl.u32 %v1106, 7
  %v1108 = vadd.s32 %v1107, 8
  %1109 = vset.pattern.permute.xlu0 %v1108
  %1110 = vperm.xlu0 %1109, %v1099
  %v1111 = vpop.permute.xlu0 %1110
  %v1112 = vlaneseq
  %v1113 = vshrl.u32 %v1112, 7
  %v1114 = vadd.s32 %v1113, 16
  %1115 = vset.pattern.permute.xlu0 %v1114
  %1116 = vperm.xlu0 %1115, %v1099
  %v1117 = vpop.permute.xlu0 %1116
  %v1118 = vlaneseq
  %v1119 = vshrl.u32 %v1118, 7
  %v1120 = vadd.s32 %v1119, 24
  %1121 = vset.pattern.permute.xlu0 %v1120
  %1122 = vperm.xlu0 %1121, %v1099
  %v1123 = vpop.permute.xlu0 %1122
  %v1124 = vlaneseq
  %v1125 = vshrl.u32 %v1124, 7
  %v1126 = vadd.s32 %v1125, 32
  %1127 = vset.pattern.permute.xlu0 %v1126
  %1128 = vperm.xlu0 %1127, %v1099
  %v1129 = vpop.permute.xlu0 %1128
  %v1130 = vlaneseq
  %v1131 = vshrl.u32 %v1130, 7
  %v1132 = vadd.s32 %v1131, 40
  %1133 = vset.pattern.permute.xlu0 %v1132
  %1134 = vperm.xlu0 %1133, %v1099
  %v1135 = vpop.permute.xlu0 %1134
  %v1136 = vlaneseq
  %v1137 = vshrl.u32 %v1136, 7
  %v1138 = vadd.s32 %v1137, 48
  %1139 = vset.pattern.permute.xlu0 %v1138
  %1140 = vperm.xlu0 %1139, %v1099
  %v1141 = vpop.permute.xlu0 %1140
  %v1142 = vlaneseq
  %v1143 = vshrl.u32 %v1142, 7
  %v1144 = vadd.s32 %v1143, 56
  %1145 = vset.pattern.permute.xlu0 %v1144
  %1146 = vperm.xlu0 %1145, %v1099
  %v1147 = vpop.permute.xlu0 %1146
  %v1148 = vlaneseq
  %v1149 = vshrl.u32 %v1148, 7
  %v1150 = vadd.s32 %v1149, 64
  %1151 = vset.pattern.permute.xlu0 %v1150
  %1152 = vperm.xlu0 %1151, %v1099
  %v1153 = vpop.permute.xlu0 %1152
  %v1154 = vlaneseq
  %v1155 = vshrl.u32 %v1154, 7
  %v1156 = vadd.s32 %v1155, 72
  %1157 = vset.pattern.permute.xlu0 %v1156
  %1158 = vperm.xlu0 %1157, %v1099
  %v1159 = vpop.permute.xlu0 %1158
  %v1160 = vlaneseq
  %v1161 = vshrl.u32 %v1160, 7
  %v1162 = vadd.s32 %v1161, 80
  %1163 = vset.pattern.permute.xlu0 %v1162
  %1164 = vperm.xlu0 %1163, %v1099
  %v1165 = vpop.permute.xlu0 %1164
  %v1166 = vlaneseq
  %v1167 = vshrl.u32 %v1166, 7
  %v1168 = vadd.s32 %v1167, 88
  %1169 = vset.pattern.permute.xlu0 %v1168
  %1170 = vperm.xlu0 %1169, %v1099
  %v1171 = vpop.permute.xlu0 %1170
  %v1172 = vlaneseq
  %v1173 = vshrl.u32 %v1172, 7
  %v1174 = vadd.s32 %v1173, 96
  %1175 = vset.pattern.permute.xlu0 %v1174
  %1176 = vperm.xlu0 %1175, %v1099
  %v1177 = vpop.permute.xlu0 %1176
  %v1178 = vlaneseq
  %v1179 = vshrl.u32 %v1178, 7
  %v1180 = vadd.s32 %v1179, 104
  %1181 = vset.pattern.permute.xlu0 %v1180
  %1182 = vperm.xlu0 %1181, %v1099
  %v1183 = vpop.permute.xlu0 %1182
  %v1184 = vlaneseq
  %v1185 = vshrl.u32 %v1184, 7
  %v1186 = vadd.s32 %v1185, 112
  %1187 = vset.pattern.permute.xlu0 %v1186
  %1188 = vperm.xlu0 %1187, %v1099
  %v1189 = vpop.permute.xlu0 %1188
  %v1190 = vlaneseq
  %v1191 = vshrl.u32 %v1190, 7
  %v1192 = vadd.s32 %v1191, 120
  %1193 = vset.pattern.permute.xlu0 %v1192
  %1194 = vperm.xlu0 %1193, %v1099
  %v1195 = vpop.permute.xlu0 %1194
  %v1197 = vrot.slane %v255, 1
  %v1198 = vrot.slane %v255, 2
  %v1199 = vrot.slane %v255, 3
  %v1200 = vrot.slane %v255, 4
  %v1201 = vrot.slane %v255, 5
  %v1202 = vrot.slane %v255, 6
  %v1203 = vrot.slane %v255, 7
  %v1204 = vperm.slane %v351, 0
  %v1205 = vlaneseq
  %v1206 = vshrl.u32 %v1205, 7
  %1208 = vset.pattern.permute.xlu0 %v1206
  %1209 = vperm.xlu0 %1208, %v1204
  %v1210 = vpop.permute.xlu0 %1209
  %v1211 = vlaneseq
  %v1212 = vshrl.u32 %v1211, 7
  %v1213 = vadd.s32 %v1212, 8
  %1214 = vset.pattern.permute.xlu0 %v1213
  %1215 = vperm.xlu0 %1214, %v1204
  %v1216 = vpop.permute.xlu0 %1215
  %v1217 = vlaneseq
  %v1218 = vshrl.u32 %v1217, 7
  %v1219 = vadd.s32 %v1218, 16
  %1220 = vset.pattern.permute.xlu0 %v1219
  %1221 = vperm.xlu0 %1220, %v1204
  %v1222 = vpop.permute.xlu0 %1221
  %v1223 = vlaneseq
  %v1224 = vshrl.u32 %v1223, 7
  %v1225 = vadd.s32 %v1224, 24
  %1226 = vset.pattern.permute.xlu0 %v1225
  %1227 = vperm.xlu0 %1226, %v1204
  %v1228 = vpop.permute.xlu0 %1227
  %v1229 = vlaneseq
  %v1230 = vshrl.u32 %v1229, 7
  %v1231 = vadd.s32 %v1230, 32
  %1232 = vset.pattern.permute.xlu0 %v1231
  %1233 = vperm.xlu0 %1232, %v1204
  %v1234 = vpop.permute.xlu0 %1233
  %v1235 = vlaneseq
  %v1236 = vshrl.u32 %v1235, 7
  %v1237 = vadd.s32 %v1236, 40
  %1238 = vset.pattern.permute.xlu0 %v1237
  %1239 = vperm.xlu0 %1238, %v1204
  %v1240 = vpop.permute.xlu0 %1239
  %v1241 = vlaneseq
  %v1242 = vshrl.u32 %v1241, 7
  %v1243 = vadd.s32 %v1242, 48
  %1244 = vset.pattern.permute.xlu0 %v1243
  %1245 = vperm.xlu0 %1244, %v1204
  %v1246 = vpop.permute.xlu0 %1245
  %v1247 = vlaneseq
  %v1248 = vshrl.u32 %v1247, 7
  %v1249 = vadd.s32 %v1248, 56
  %1250 = vset.pattern.permute.xlu0 %v1249
  %1251 = vperm.xlu0 %1250, %v1204
  %v1252 = vpop.permute.xlu0 %1251
  %v1253 = vlaneseq
  %v1254 = vshrl.u32 %v1253, 7
  %v1255 = vadd.s32 %v1254, 64
  %1256 = vset.pattern.permute.xlu0 %v1255
  %1257 = vperm.xlu0 %1256, %v1204
  %v1258 = vpop.permute.xlu0 %1257
  %v1259 = vlaneseq
  %v1260 = vshrl.u32 %v1259, 7
  %v1261 = vadd.s32 %v1260, 72
  %1262 = vset.pattern.permute.xlu0 %v1261
  %1263 = vperm.xlu0 %1262, %v1204
  %v1264 = vpop.permute.xlu0 %1263
  %v1265 = vlaneseq
  %v1266 = vshrl.u32 %v1265, 7
  %v1267 = vadd.s32 %v1266, 80
  %1268 = vset.pattern.permute.xlu0 %v1267
  %1269 = vperm.xlu0 %1268, %v1204
  %v1270 = vpop.permute.xlu0 %1269
  %v1271 = vlaneseq
  %v1272 = vshrl.u32 %v1271, 7
  %v1273 = vadd.s32 %v1272, 88
  %1274 = vset.pattern.permute.xlu0 %v1273
  %1275 = vperm.xlu0 %1274, %v1204
  %v1276 = vpop.permute.xlu0 %1275
  %v1277 = vlaneseq
  %v1278 = vshrl.u32 %v1277, 7
  %v1279 = vadd.s32 %v1278, 96
  %1280 = vset.pattern.permute.xlu0 %v1279
  %1281 = vperm.xlu0 %1280, %v1204
  %v1282 = vpop.permute.xlu0 %1281
  %v1283 = vlaneseq
  %v1284 = vshrl.u32 %v1283, 7
  %v1285 = vadd.s32 %v1284, 104
  %1286 = vset.pattern.permute.xlu0 %v1285
  %1287 = vperm.xlu0 %1286, %v1204
  %v1288 = vpop.permute.xlu0 %1287
  %v1289 = vlaneseq
  %v1290 = vshrl.u32 %v1289, 7
  %v1291 = vadd.s32 %v1290, 112
  %1292 = vset.pattern.permute.xlu0 %v1291
  %1293 = vperm.xlu0 %1292, %v1204
  %v1294 = vpop.permute.xlu0 %1293
  %v1295 = vlaneseq
  %v1296 = vshrl.u32 %v1295, 7
  %v1297 = vadd.s32 %v1296, 120
  %1298 = vset.pattern.permute.xlu0 %v1297
  %1299 = vperm.xlu0 %1298, %v1204
  %v1300 = vpop.permute.xlu0 %1299
  %v1301 = vperm.slane %v351, 1
  %v1302 = vlaneseq
  %v1303 = vshrl.u32 %v1302, 7
  %1305 = vset.pattern.permute.xlu0 %v1303
  %1306 = vperm.xlu0 %1305, %v1301
  %v1307 = vpop.permute.xlu0 %1306
  %v1308 = vlaneseq
  %v1309 = vshrl.u32 %v1308, 7
  %v1310 = vadd.s32 %v1309, 8
  %1311 = vset.pattern.permute.xlu0 %v1310
  %1312 = vperm.xlu0 %1311, %v1301
  %v1313 = vpop.permute.xlu0 %1312
  %v1314 = vlaneseq
  %v1315 = vshrl.u32 %v1314, 7
  %v1316 = vadd.s32 %v1315, 16
  %1317 = vset.pattern.permute.xlu0 %v1316
  %1318 = vperm.xlu0 %1317, %v1301
  %v1319 = vpop.permute.xlu0 %1318
  %v1320 = vlaneseq
  %v1321 = vshrl.u32 %v1320, 7
  %v1322 = vadd.s32 %v1321, 24
  %1323 = vset.pattern.permute.xlu0 %v1322
  %1324 = vperm.xlu0 %1323, %v1301
  %v1325 = vpop.permute.xlu0 %1324
  %v1326 = vlaneseq
  %v1327 = vshrl.u32 %v1326, 7
  %v1328 = vadd.s32 %v1327, 32
  %1329 = vset.pattern.permute.xlu0 %v1328
  %1330 = vperm.xlu0 %1329, %v1301
  %v1331 = vpop.permute.xlu0 %1330
  %v1332 = vlaneseq
  %v1333 = vshrl.u32 %v1332, 7
  %v1334 = vadd.s32 %v1333, 40
  %1335 = vset.pattern.permute.xlu0 %v1334
  %1336 = vperm.xlu0 %1335, %v1301
  %v1337 = vpop.permute.xlu0 %1336
  %v1338 = vlaneseq
  %v1339 = vshrl.u32 %v1338, 7
  %v1340 = vadd.s32 %v1339, 48
  %1341 = vset.pattern.permute.xlu0 %v1340
  %1342 = vperm.xlu0 %1341, %v1301
  %v1343 = vpop.permute.xlu0 %1342
  %v1344 = vlaneseq
  %v1345 = vshrl.u32 %v1344, 7
  %v1346 = vadd.s32 %v1345, 56
  %1347 = vset.pattern.permute.xlu0 %v1346
  %1348 = vperm.xlu0 %1347, %v1301
  %v1349 = vpop.permute.xlu0 %1348
  %v1350 = vlaneseq
  %v1351 = vshrl.u32 %v1350, 7
  %v1352 = vadd.s32 %v1351, 64
  %1353 = vset.pattern.permute.xlu0 %v1352
  %1354 = vperm.xlu0 %1353, %v1301
  %v1355 = vpop.permute.xlu0 %1354
  %v1356 = vlaneseq
  %v1357 = vshrl.u32 %v1356, 7
  %v1358 = vadd.s32 %v1357, 72
  %1359 = vset.pattern.permute.xlu0 %v1358
  %1360 = vperm.xlu0 %1359, %v1301
  %v1361 = vpop.permute.xlu0 %1360
  %v1362 = vlaneseq
  %v1363 = vshrl.u32 %v1362, 7
  %v1364 = vadd.s32 %v1363, 80
  %1365 = vset.pattern.permute.xlu0 %v1364
  %1366 = vperm.xlu0 %1365, %v1301
  %v1367 = vpop.permute.xlu0 %1366
  %v1368 = vlaneseq
  %v1369 = vshrl.u32 %v1368, 7
  %v1370 = vadd.s32 %v1369, 88
  %1371 = vset.pattern.permute.xlu0 %v1370
  %1372 = vperm.xlu0 %1371, %v1301
  %v1373 = vpop.permute.xlu0 %1372
  %v1374 = vlaneseq
  %v1375 = vshrl.u32 %v1374, 7
  %v1376 = vadd.s32 %v1375, 96
  %1377 = vset.pattern.permute.xlu0 %v1376
  %1378 = vperm.xlu0 %1377, %v1301
  %v1379 = vpop.permute.xlu0 %1378
  %v1380 = vlaneseq
  %v1381 = vshrl.u32 %v1380, 7
  %v1382 = vadd.s32 %v1381, 104
  %1383 = vset.pattern.permute.xlu0 %v1382
  %1384 = vperm.xlu0 %1383, %v1301
  %v1385 = vpop.permute.xlu0 %1384
  %v1386 = vlaneseq
  %v1387 = vshrl.u32 %v1386, 7
  %v1388 = vadd.s32 %v1387, 112
  %1389 = vset.pattern.permute.xlu0 %v1388
  %1390 = vperm.xlu0 %1389, %v1301
  %v1391 = vpop.permute.xlu0 %1390
  %v1392 = vlaneseq
  %v1393 = vshrl.u32 %v1392, 7
  %v1394 = vadd.s32 %v1393, 120
  %1395 = vset.pattern.permute.xlu0 %v1394
  %1396 = vperm.xlu0 %1395, %v1301
  %v1397 = vpop.permute.xlu0 %1396
  %v1398 = vperm.slane %v351, 2
  %v1399 = vlaneseq
  %v1400 = vshrl.u32 %v1399, 7
  %1402 = vset.pattern.permute.xlu0 %v1400
  %1403 = vperm.xlu0 %1402, %v1398
  %v1404 = vpop.permute.xlu0 %1403
  %v1405 = vlaneseq
  %v1406 = vshrl.u32 %v1405, 7
  %v1407 = vadd.s32 %v1406, 8
  %1408 = vset.pattern.permute.xlu0 %v1407
  %1409 = vperm.xlu0 %1408, %v1398
  %v1410 = vpop.permute.xlu0 %1409
  %v1411 = vlaneseq
  %v1412 = vshrl.u32 %v1411, 7
  %v1413 = vadd.s32 %v1412, 16
  %1414 = vset.pattern.permute.xlu0 %v1413
  %1415 = vperm.xlu0 %1414, %v1398
  %v1416 = vpop.permute.xlu0 %1415
  %v1417 = vlaneseq
  %v1418 = vshrl.u32 %v1417, 7
  %v1419 = vadd.s32 %v1418, 24
  %1420 = vset.pattern.permute.xlu0 %v1419
  %1421 = vperm.xlu0 %1420, %v1398
  %v1422 = vpop.permute.xlu0 %1421
  %v1423 = vlaneseq
  %v1424 = vshrl.u32 %v1423, 7
  %v1425 = vadd.s32 %v1424, 32
  %1426 = vset.pattern.permute.xlu0 %v1425
  %1427 = vperm.xlu0 %1426, %v1398
  %v1428 = vpop.permute.xlu0 %1427
  %v1429 = vlaneseq
  %v1430 = vshrl.u32 %v1429, 7
  %v1431 = vadd.s32 %v1430, 40
  %1432 = vset.pattern.permute.xlu0 %v1431
  %1433 = vperm.xlu0 %1432, %v1398
  %v1434 = vpop.permute.xlu0 %1433
  %v1435 = vlaneseq
  %v1436 = vshrl.u32 %v1435, 7
  %v1437 = vadd.s32 %v1436, 48
  %1438 = vset.pattern.permute.xlu0 %v1437
  %1439 = vperm.xlu0 %1438, %v1398
  %v1440 = vpop.permute.xlu0 %1439
  %v1441 = vlaneseq
  %v1442 = vshrl.u32 %v1441, 7
  %v1443 = vadd.s32 %v1442, 56
  %1444 = vset.pattern.permute.xlu0 %v1443
  %1445 = vperm.xlu0 %1444, %v1398
  %v1446 = vpop.permute.xlu0 %1445
  %v1447 = vlaneseq
  %v1448 = vshrl.u32 %v1447, 7
  %v1449 = vadd.s32 %v1448, 64
  %1450 = vset.pattern.permute.xlu0 %v1449
  %1451 = vperm.xlu0 %1450, %v1398
  %v1452 = vpop.permute.xlu0 %1451
  %v1453 = vlaneseq
  %v1454 = vshrl.u32 %v1453, 7
  %v1455 = vadd.s32 %v1454, 72
  %1456 = vset.pattern.permute.xlu0 %v1455
  %1457 = vperm.xlu0 %1456, %v1398
  %v1458 = vpop.permute.xlu0 %1457
  %v1459 = vlaneseq
  %v1460 = vshrl.u32 %v1459, 7
  %v1461 = vadd.s32 %v1460, 80
  %1462 = vset.pattern.permute.xlu0 %v1461
  %1463 = vperm.xlu0 %1462, %v1398
  %v1464 = vpop.permute.xlu0 %1463
  %v1465 = vlaneseq
  %v1466 = vshrl.u32 %v1465, 7
  %v1467 = vadd.s32 %v1466, 88
  %1468 = vset.pattern.permute.xlu0 %v1467
  %1469 = vperm.xlu0 %1468, %v1398
  %v1470 = vpop.permute.xlu0 %1469
  %v1471 = vlaneseq
  %v1472 = vshrl.u32 %v1471, 7
  %v1473 = vadd.s32 %v1472, 96
  %1474 = vset.pattern.permute.xlu0 %v1473
  %1475 = vperm.xlu0 %1474, %v1398
  %v1476 = vpop.permute.xlu0 %1475
  %v1477 = vlaneseq
  %v1478 = vshrl.u32 %v1477, 7
  %v1479 = vadd.s32 %v1478, 104
  %1480 = vset.pattern.permute.xlu0 %v1479
  %1481 = vperm.xlu0 %1480, %v1398
  %v1482 = vpop.permute.xlu0 %1481
  %v1483 = vlaneseq
  %v1484 = vshrl.u32 %v1483, 7
  %v1485 = vadd.s32 %v1484, 112
  %1486 = vset.pattern.permute.xlu0 %v1485
  %1487 = vperm.xlu0 %1486, %v1398
  %v1488 = vpop.permute.xlu0 %1487
  %v1489 = vlaneseq
  %v1490 = vshrl.u32 %v1489, 7
  %v1491 = vadd.s32 %v1490, 120
  %1492 = vset.pattern.permute.xlu0 %v1491
  %1493 = vperm.xlu0 %1492, %v1398
  %v1494 = vpop.permute.xlu0 %1493
  %v1495 = vperm.slane %v351, 3
  %v1496 = vlaneseq
  %v1497 = vshrl.u32 %v1496, 7
  %1499 = vset.pattern.permute.xlu0 %v1497
  %1500 = vperm.xlu0 %1499, %v1495
  %v1501 = vpop.permute.xlu0 %1500
  %v1502 = vlaneseq
  %v1503 = vshrl.u32 %v1502, 7
  %v1504 = vadd.s32 %v1503, 8
  %1505 = vset.pattern.permute.xlu0 %v1504
  %1506 = vperm.xlu0 %1505, %v1495
  %v1507 = vpop.permute.xlu0 %1506
  %v1508 = vlaneseq
  %v1509 = vshrl.u32 %v1508, 7
  %v1510 = vadd.s32 %v1509, 16
  %1511 = vset.pattern.permute.xlu0 %v1510
  %1512 = vperm.xlu0 %1511, %v1495
  %v1513 = vpop.permute.xlu0 %1512
  %v1514 = vlaneseq
  %v1515 = vshrl.u32 %v1514, 7
  %v1516 = vadd.s32 %v1515, 24
  %1517 = vset.pattern.permute.xlu0 %v1516
  %1518 = vperm.xlu0 %1517, %v1495
  %v1519 = vpop.permute.xlu0 %1518
  %v1520 = vlaneseq
  %v1521 = vshrl.u32 %v1520, 7
  %v1522 = vadd.s32 %v1521, 32
  %1523 = vset.pattern.permute.xlu0 %v1522
  %1524 = vperm.xlu0 %1523, %v1495
  %v1525 = vpop.permute.xlu0 %1524
  %v1526 = vlaneseq
  %v1527 = vshrl.u32 %v1526, 7
  %v1528 = vadd.s32 %v1527, 40
  %1529 = vset.pattern.permute.xlu0 %v1528
  %1530 = vperm.xlu0 %1529, %v1495
  %v1531 = vpop.permute.xlu0 %1530
  %v1532 = vlaneseq
  %v1533 = vshrl.u32 %v1532, 7
  %v1534 = vadd.s32 %v1533, 48
  %1535 = vset.pattern.permute.xlu0 %v1534
  %1536 = vperm.xlu0 %1535, %v1495
  %v1537 = vpop.permute.xlu0 %1536
  %v1538 = vlaneseq
  %v1539 = vshrl.u32 %v1538, 7
  %v1540 = vadd.s32 %v1539, 56
  %1541 = vset.pattern.permute.xlu0 %v1540
  %1542 = vperm.xlu0 %1541, %v1495
  %v1543 = vpop.permute.xlu0 %1542
  %v1544 = vlaneseq
  %v1545 = vshrl.u32 %v1544, 7
  %v1546 = vadd.s32 %v1545, 64
  %1547 = vset.pattern.permute.xlu0 %v1546
  %1548 = vperm.xlu0 %1547, %v1495
  %v1549 = vpop.permute.xlu0 %1548
  %v1550 = vlaneseq
  %v1551 = vshrl.u32 %v1550, 7
  %v1552 = vadd.s32 %v1551, 72
  %1553 = vset.pattern.permute.xlu0 %v1552
  %1554 = vperm.xlu0 %1553, %v1495
  %v1555 = vpop.permute.xlu0 %1554
  %v1556 = vlaneseq
  %v1557 = vshrl.u32 %v1556, 7
  %v1558 = vadd.s32 %v1557, 80
  %1559 = vset.pattern.permute.xlu0 %v1558
  %1560 = vperm.xlu0 %1559, %v1495
  %v1561 = vpop.permute.xlu0 %1560
  %v1562 = vlaneseq
  %v1563 = vshrl.u32 %v1562, 7
  %v1564 = vadd.s32 %v1563, 88
  %1565 = vset.pattern.permute.xlu0 %v1564
  %1566 = vperm.xlu0 %1565, %v1495
  %v1567 = vpop.permute.xlu0 %1566
  %v1568 = vlaneseq
  %v1569 = vshrl.u32 %v1568, 7
  %v1570 = vadd.s32 %v1569, 96
  %1571 = vset.pattern.permute.xlu0 %v1570
  %1572 = vperm.xlu0 %1571, %v1495
  %v1573 = vpop.permute.xlu0 %1572
  %v1574 = vlaneseq
  %v1575 = vshrl.u32 %v1574, 7
  %v1576 = vadd.s32 %v1575, 104
  %1577 = vset.pattern.permute.xlu0 %v1576
  %1578 = vperm.xlu0 %1577, %v1495
  %v1579 = vpop.permute.xlu0 %1578
  %v1580 = vlaneseq
  %v1581 = vshrl.u32 %v1580, 7
  %v1582 = vadd.s32 %v1581, 112
  %1583 = vset.pattern.permute.xlu0 %v1582
  %1584 = vperm.xlu0 %1583, %v1495
  %v1585 = vpop.permute.xlu0 %1584
  %v1586 = vlaneseq
  %v1587 = vshrl.u32 %v1586, 7
  %v1588 = vadd.s32 %v1587, 120
  %1589 = vset.pattern.permute.xlu0 %v1588
  %1590 = vperm.xlu0 %1589, %v1495
  %v1591 = vpop.permute.xlu0 %1590
  %v1592 = vperm.slane %v351, 4
  %v1593 = vlaneseq
  %v1594 = vshrl.u32 %v1593, 7
  %1596 = vset.pattern.permute.xlu0 %v1594
  %1597 = vperm.xlu0 %1596, %v1592
  %v1598 = vpop.permute.xlu0 %1597
  %v1599 = vlaneseq
  %v1600 = vshrl.u32 %v1599, 7
  %v1601 = vadd.s32 %v1600, 8
  %1602 = vset.pattern.permute.xlu0 %v1601
  %1603 = vperm.xlu0 %1602, %v1592
  %v1604 = vpop.permute.xlu0 %1603
  %v1605 = vlaneseq
  %v1606 = vshrl.u32 %v1605, 7
  %v1607 = vadd.s32 %v1606, 16
  %1608 = vset.pattern.permute.xlu0 %v1607
  %1609 = vperm.xlu0 %1608, %v1592
  %v1610 = vpop.permute.xlu0 %1609
  %v1611 = vlaneseq
  %v1612 = vshrl.u32 %v1611, 7
  %v1613 = vadd.s32 %v1612, 24
  %1614 = vset.pattern.permute.xlu0 %v1613
  %1615 = vperm.xlu0 %1614, %v1592
  %v1616 = vpop.permute.xlu0 %1615
  %v1617 = vlaneseq
  %v1618 = vshrl.u32 %v1617, 7
  %v1619 = vadd.s32 %v1618, 32
  %1620 = vset.pattern.permute.xlu0 %v1619
  %1621 = vperm.xlu0 %1620, %v1592
  %v1622 = vpop.permute.xlu0 %1621
  %v1623 = vlaneseq
  %v1624 = vshrl.u32 %v1623, 7
  %v1625 = vadd.s32 %v1624, 40
  %1626 = vset.pattern.permute.xlu0 %v1625
  %1627 = vperm.xlu0 %1626, %v1592
  %v1628 = vpop.permute.xlu0 %1627
  %v1629 = vlaneseq
  %v1630 = vshrl.u32 %v1629, 7
  %v1631 = vadd.s32 %v1630, 48
  %1632 = vset.pattern.permute.xlu0 %v1631
  %1633 = vperm.xlu0 %1632, %v1592
  %v1634 = vpop.permute.xlu0 %1633
  %v1635 = vlaneseq
  %v1636 = vshrl.u32 %v1635, 7
  %v1637 = vadd.s32 %v1636, 56
  %1638 = vset.pattern.permute.xlu0 %v1637
  %1639 = vperm.xlu0 %1638, %v1592
  %v1640 = vpop.permute.xlu0 %1639
  %v1641 = vlaneseq
  %v1642 = vshrl.u32 %v1641, 7
  %v1643 = vadd.s32 %v1642, 64
  %1644 = vset.pattern.permute.xlu0 %v1643
  %1645 = vperm.xlu0 %1644, %v1592
  %v1646 = vpop.permute.xlu0 %1645
  %v1647 = vlaneseq
  %v1648 = vshrl.u32 %v1647, 7
  %v1649 = vadd.s32 %v1648, 72
  %1650 = vset.pattern.permute.xlu0 %v1649
  %1651 = vperm.xlu0 %1650, %v1592
  %v1652 = vpop.permute.xlu0 %1651
  %v1653 = vlaneseq
  %v1654 = vshrl.u32 %v1653, 7
  %v1655 = vadd.s32 %v1654, 80
  %1656 = vset.pattern.permute.xlu0 %v1655
  %1657 = vperm.xlu0 %1656, %v1592
  %v1658 = vpop.permute.xlu0 %1657
  %v1659 = vlaneseq
  %v1660 = vshrl.u32 %v1659, 7
  %v1661 = vadd.s32 %v1660, 88
  %1662 = vset.pattern.permute.xlu0 %v1661
  %1663 = vperm.xlu0 %1662, %v1592
  %v1664 = vpop.permute.xlu0 %1663
  %v1665 = vlaneseq
  %v1666 = vshrl.u32 %v1665, 7
  %v1667 = vadd.s32 %v1666, 96
  %1668 = vset.pattern.permute.xlu0 %v1667
  %1669 = vperm.xlu0 %1668, %v1592
  %v1670 = vpop.permute.xlu0 %1669
  %v1671 = vlaneseq
  %v1672 = vshrl.u32 %v1671, 7
  %v1673 = vadd.s32 %v1672, 104
  %1674 = vset.pattern.permute.xlu0 %v1673
  %1675 = vperm.xlu0 %1674, %v1592
  %v1676 = vpop.permute.xlu0 %1675
  %v1677 = vlaneseq
  %v1678 = vshrl.u32 %v1677, 7
  %v1679 = vadd.s32 %v1678, 112
  %1680 = vset.pattern.permute.xlu0 %v1679
  %1681 = vperm.xlu0 %1680, %v1592
  %v1682 = vpop.permute.xlu0 %1681
  %v1683 = vlaneseq
  %v1684 = vshrl.u32 %v1683, 7
  %v1685 = vadd.s32 %v1684, 120
  %1686 = vset.pattern.permute.xlu0 %v1685
  %1687 = vperm.xlu0 %1686, %v1592
  %v1688 = vpop.permute.xlu0 %1687
  %v1689 = vperm.slane %v351, 5
  %v1690 = vlaneseq
  %v1691 = vshrl.u32 %v1690, 7
  %1693 = vset.pattern.permute.xlu0 %v1691
  %1694 = vperm.xlu0 %1693, %v1689
  %v1695 = vpop.permute.xlu0 %1694
  %v1696 = vlaneseq
  %v1697 = vshrl.u32 %v1696, 7
  %v1698 = vadd.s32 %v1697, 8
  %1699 = vset.pattern.permute.xlu0 %v1698
  %1700 = vperm.xlu0 %1699, %v1689
  %v1701 = vpop.permute.xlu0 %1700
  %v1702 = vlaneseq
  %v1703 = vshrl.u32 %v1702, 7
  %v1704 = vadd.s32 %v1703, 16
  %1705 = vset.pattern.permute.xlu0 %v1704
  %1706 = vperm.xlu0 %1705, %v1689
  %v1707 = vpop.permute.xlu0 %1706
  %v1708 = vlaneseq
  %v1709 = vshrl.u32 %v1708, 7
  %v1710 = vadd.s32 %v1709, 24
  %1711 = vset.pattern.permute.xlu0 %v1710
  %1712 = vperm.xlu0 %1711, %v1689
  %v1713 = vpop.permute.xlu0 %1712
  %v1714 = vlaneseq
  %v1715 = vshrl.u32 %v1714, 7
  %v1716 = vadd.s32 %v1715, 32
  %1717 = vset.pattern.permute.xlu0 %v1716
  %1718 = vperm.xlu0 %1717, %v1689
  %v1719 = vpop.permute.xlu0 %1718
  %v1720 = vlaneseq
  %v1721 = vshrl.u32 %v1720, 7
  %v1722 = vadd.s32 %v1721, 40
  %1723 = vset.pattern.permute.xlu0 %v1722
  %1724 = vperm.xlu0 %1723, %v1689
  %v1725 = vpop.permute.xlu0 %1724
  %v1726 = vlaneseq
  %v1727 = vshrl.u32 %v1726, 7
  %v1728 = vadd.s32 %v1727, 48
  %1729 = vset.pattern.permute.xlu0 %v1728
  %1730 = vperm.xlu0 %1729, %v1689
  %v1731 = vpop.permute.xlu0 %1730
  %v1732 = vlaneseq
  %v1733 = vshrl.u32 %v1732, 7
  %v1734 = vadd.s32 %v1733, 56
  %1735 = vset.pattern.permute.xlu0 %v1734
  %1736 = vperm.xlu0 %1735, %v1689
  %v1737 = vpop.permute.xlu0 %1736
  %v1738 = vlaneseq
  %v1739 = vshrl.u32 %v1738, 7
  %v1740 = vadd.s32 %v1739, 64
  %1741 = vset.pattern.permute.xlu0 %v1740
  %1742 = vperm.xlu0 %1741, %v1689
  %v1743 = vpop.permute.xlu0 %1742
  %v1744 = vlaneseq
  %v1745 = vshrl.u32 %v1744, 7
  %v1746 = vadd.s32 %v1745, 72
  %1747 = vset.pattern.permute.xlu0 %v1746
  %1748 = vperm.xlu0 %1747, %v1689
  %v1749 = vpop.permute.xlu0 %1748
  %v1750 = vlaneseq
  %v1751 = vshrl.u32 %v1750, 7
  %v1752 = vadd.s32 %v1751, 80
  %1753 = vset.pattern.permute.xlu0 %v1752
  %1754 = vperm.xlu0 %1753, %v1689
  %v1755 = vpop.permute.xlu0 %1754
  %v1756 = vlaneseq
  %v1757 = vshrl.u32 %v1756, 7
  %v1758 = vadd.s32 %v1757, 88
  %1759 = vset.pattern.permute.xlu0 %v1758
  %1760 = vperm.xlu0 %1759, %v1689
  %v1761 = vpop.permute.xlu0 %1760
  %v1762 = vlaneseq
  %v1763 = vshrl.u32 %v1762, 7
  %v1764 = vadd.s32 %v1763, 96
  %1765 = vset.pattern.permute.xlu0 %v1764
  %1766 = vperm.xlu0 %1765, %v1689
  %v1767 = vpop.permute.xlu0 %1766
  %v1768 = vlaneseq
  %v1769 = vshrl.u32 %v1768, 7
  %v1770 = vadd.s32 %v1769, 104
  %1771 = vset.pattern.permute.xlu0 %v1770
  %1772 = vperm.xlu0 %1771, %v1689
  %v1773 = vpop.permute.xlu0 %1772
  %v1774 = vlaneseq
  %v1775 = vshrl.u32 %v1774, 7
  %v1776 = vadd.s32 %v1775, 112
  %1777 = vset.pattern.permute.xlu0 %v1776
  %1778 = vperm.xlu0 %1777, %v1689
  %v1779 = vpop.permute.xlu0 %1778
  %v1780 = vlaneseq
  %v1781 = vshrl.u32 %v1780, 7
  %v1782 = vadd.s32 %v1781, 120
  %1783 = vset.pattern.permute.xlu0 %v1782
  %1784 = vperm.xlu0 %1783, %v1689
  %v1785 = vpop.permute.xlu0 %1784
  %v1786 = vperm.slane %v351, 6
  %v1787 = vlaneseq
  %v1788 = vshrl.u32 %v1787, 7
  %1790 = vset.pattern.permute.xlu0 %v1788
  %1791 = vperm.xlu0 %1790, %v1786
  %v1792 = vpop.permute.xlu0 %1791
  %v1793 = vlaneseq
  %v1794 = vshrl.u32 %v1793, 7
  %v1795 = vadd.s32 %v1794, 8
  %1796 = vset.pattern.permute.xlu0 %v1795
  %1797 = vperm.xlu0 %1796, %v1786
  %v1798 = vpop.permute.xlu0 %1797
  %v1799 = vlaneseq
  %v1800 = vshrl.u32 %v1799, 7
  %v1801 = vadd.s32 %v1800, 16
  %1802 = vset.pattern.permute.xlu0 %v1801
  %1803 = vperm.xlu0 %1802, %v1786
  %v1804 = vpop.permute.xlu0 %1803
  %v1805 = vlaneseq
  %v1806 = vshrl.u32 %v1805, 7
  %v1807 = vadd.s32 %v1806, 24
  %1808 = vset.pattern.permute.xlu0 %v1807
  %1809 = vperm.xlu0 %1808, %v1786
  %v1810 = vpop.permute.xlu0 %1809
  %v1811 = vlaneseq
  %v1812 = vshrl.u32 %v1811, 7
  %v1813 = vadd.s32 %v1812, 32
  %1814 = vset.pattern.permute.xlu0 %v1813
  %1815 = vperm.xlu0 %1814, %v1786
  %v1816 = vpop.permute.xlu0 %1815
  %v1817 = vlaneseq
  %v1818 = vshrl.u32 %v1817, 7
  %v1819 = vadd.s32 %v1818, 40
  %1820 = vset.pattern.permute.xlu0 %v1819
  %1821 = vperm.xlu0 %1820, %v1786
  %v1822 = vpop.permute.xlu0 %1821
  %v1823 = vlaneseq
  %v1824 = vshrl.u32 %v1823, 7
  %v1825 = vadd.s32 %v1824, 48
  %1826 = vset.pattern.permute.xlu0 %v1825
  %1827 = vperm.xlu0 %1826, %v1786
  %v1828 = vpop.permute.xlu0 %1827
  %v1829 = vlaneseq
  %v1830 = vshrl.u32 %v1829, 7
  %v1831 = vadd.s32 %v1830, 56
  %1832 = vset.pattern.permute.xlu0 %v1831
  %1833 = vperm.xlu0 %1832, %v1786
  %v1834 = vpop.permute.xlu0 %1833
  %v1835 = vlaneseq
  %v1836 = vshrl.u32 %v1835, 7
  %v1837 = vadd.s32 %v1836, 64
  %1838 = vset.pattern.permute.xlu0 %v1837
  %1839 = vperm.xlu0 %1838, %v1786
  %v1840 = vpop.permute.xlu0 %1839
  %v1841 = vlaneseq
  %v1842 = vshrl.u32 %v1841, 7
  %v1843 = vadd.s32 %v1842, 72
  %1844 = vset.pattern.permute.xlu0 %v1843
  %1845 = vperm.xlu0 %1844, %v1786
  %v1846 = vpop.permute.xlu0 %1845
  %v1847 = vlaneseq
  %v1848 = vshrl.u32 %v1847, 7
  %v1849 = vadd.s32 %v1848, 80
  %1850 = vset.pattern.permute.xlu0 %v1849
  %1851 = vperm.xlu0 %1850, %v1786
  %v1852 = vpop.permute.xlu0 %1851
  %v1853 = vlaneseq
  %v1854 = vshrl.u32 %v1853, 7
  %v1855 = vadd.s32 %v1854, 88
  %1856 = vset.pattern.permute.xlu0 %v1855
  %1857 = vperm.xlu0 %1856, %v1786
  %v1858 = vpop.permute.xlu0 %1857
  %v1859 = vlaneseq
  %v1860 = vshrl.u32 %v1859, 7
  %v1861 = vadd.s32 %v1860, 96
  %1862 = vset.pattern.permute.xlu0 %v1861
  %1863 = vperm.xlu0 %1862, %v1786
  %v1864 = vpop.permute.xlu0 %1863
  %v1865 = vlaneseq
  %v1866 = vshrl.u32 %v1865, 7
  %v1867 = vadd.s32 %v1866, 104
  %1868 = vset.pattern.permute.xlu0 %v1867
  %1869 = vperm.xlu0 %1868, %v1786
  %v1870 = vpop.permute.xlu0 %1869
  %v1871 = vlaneseq
  %v1872 = vshrl.u32 %v1871, 7
  %v1873 = vadd.s32 %v1872, 112
  %1874 = vset.pattern.permute.xlu0 %v1873
  %1875 = vperm.xlu0 %1874, %v1786
  %v1876 = vpop.permute.xlu0 %1875
  %v1877 = vlaneseq
  %v1878 = vshrl.u32 %v1877, 7
  %v1879 = vadd.s32 %v1878, 120
  %1880 = vset.pattern.permute.xlu0 %v1879
  %1881 = vperm.xlu0 %1880, %v1786
  %v1882 = vpop.permute.xlu0 %1881
  %v1883 = vperm.slane %v351, 7
  %v1884 = vlaneseq
  %v1885 = vshrl.u32 %v1884, 7
  %1887 = vset.pattern.permute.xlu0 %v1885
  %1888 = vperm.xlu0 %1887, %v1883
  %v1889 = vpop.permute.xlu0 %1888
  %v1890 = vlaneseq
  %v1891 = vshrl.u32 %v1890, 7
  %v1892 = vadd.s32 %v1891, 8
  %1893 = vset.pattern.permute.xlu0 %v1892
  %1894 = vperm.xlu0 %1893, %v1883
  %v1895 = vpop.permute.xlu0 %1894
  %v1896 = vlaneseq
  %v1897 = vshrl.u32 %v1896, 7
  %v1898 = vadd.s32 %v1897, 16
  %1899 = vset.pattern.permute.xlu0 %v1898
  %1900 = vperm.xlu0 %1899, %v1883
  %v1901 = vpop.permute.xlu0 %1900
  %v1902 = vlaneseq
  %v1903 = vshrl.u32 %v1902, 7
  %v1904 = vadd.s32 %v1903, 24
  %1905 = vset.pattern.permute.xlu0 %v1904
  %1906 = vperm.xlu0 %1905, %v1883
  %v1907 = vpop.permute.xlu0 %1906
  %v1908 = vlaneseq
  %v1909 = vshrl.u32 %v1908, 7
  %v1910 = vadd.s32 %v1909, 32
  %1911 = vset.pattern.permute.xlu0 %v1910
  %1912 = vperm.xlu0 %1911, %v1883
  %v1913 = vpop.permute.xlu0 %1912
  %v1914 = vlaneseq
  %v1915 = vshrl.u32 %v1914, 7
  %v1916 = vadd.s32 %v1915, 40
  %1917 = vset.pattern.permute.xlu0 %v1916
  %1918 = vperm.xlu0 %1917, %v1883
  %v1919 = vpop.permute.xlu0 %1918
  %v1920 = vlaneseq
  %v1921 = vshrl.u32 %v1920, 7
  %v1922 = vadd.s32 %v1921, 48
  %1923 = vset.pattern.permute.xlu0 %v1922
  %1924 = vperm.xlu0 %1923, %v1883
  %v1925 = vpop.permute.xlu0 %1924
  %v1926 = vlaneseq
  %v1927 = vshrl.u32 %v1926, 7
  %v1928 = vadd.s32 %v1927, 56
  %1929 = vset.pattern.permute.xlu0 %v1928
  %1930 = vperm.xlu0 %1929, %v1883
  %v1931 = vpop.permute.xlu0 %1930
  %v1932 = vlaneseq
  %v1933 = vshrl.u32 %v1932, 7
  %v1934 = vadd.s32 %v1933, 64
  %1935 = vset.pattern.permute.xlu0 %v1934
  %1936 = vperm.xlu0 %1935, %v1883
  %v1937 = vpop.permute.xlu0 %1936
  %v1938 = vlaneseq
  %v1939 = vshrl.u32 %v1938, 7
  %v1940 = vadd.s32 %v1939, 72
  %1941 = vset.pattern.permute.xlu0 %v1940
  %1942 = vperm.xlu0 %1941, %v1883
  %v1943 = vpop.permute.xlu0 %1942
  %v1944 = vlaneseq
  %v1945 = vshrl.u32 %v1944, 7
  %v1946 = vadd.s32 %v1945, 80
  %1947 = vset.pattern.permute.xlu0 %v1946
  %1948 = vperm.xlu0 %1947, %v1883
  %v1949 = vpop.permute.xlu0 %1948
  %v1950 = vlaneseq
  %v1951 = vshrl.u32 %v1950, 7
  %v1952 = vadd.s32 %v1951, 88
  %1953 = vset.pattern.permute.xlu0 %v1952
  %1954 = vperm.xlu0 %1953, %v1883
  %v1955 = vpop.permute.xlu0 %1954
  %v1956 = vlaneseq
  %v1957 = vshrl.u32 %v1956, 7
  %v1958 = vadd.s32 %v1957, 96
  %1959 = vset.pattern.permute.xlu0 %v1958
  %1960 = vperm.xlu0 %1959, %v1883
  %v1961 = vpop.permute.xlu0 %1960
  %v1962 = vlaneseq
  %v1963 = vshrl.u32 %v1962, 7
  %v1964 = vadd.s32 %v1963, 104
  %1965 = vset.pattern.permute.xlu0 %v1964
  %1966 = vperm.xlu0 %1965, %v1883
  %v1967 = vpop.permute.xlu0 %1966
  %v1968 = vlaneseq
  %v1969 = vshrl.u32 %v1968, 7
  %v1970 = vadd.s32 %v1969, 112
  %1971 = vset.pattern.permute.xlu0 %v1970
  %1972 = vperm.xlu0 %1971, %v1883
  %v1973 = vpop.permute.xlu0 %1972
  %v1974 = vlaneseq
  %v1975 = vshrl.u32 %v1974, 7
  %v1976 = vadd.s32 %v1975, 120
  %1977 = vset.pattern.permute.xlu0 %v1976
  %1978 = vperm.xlu0 %1977, %v1883
  %v1979 = vpop.permute.xlu0 %1978
  %v1980 = vperm.slane %v255, 0
  %v1981 = vperm.slane %v1197, 0
  %v1982 = vperm.slane %v1198, 0
  %v1983 = vperm.slane %v1199, 0
  %v1984 = vperm.slane %v1200, 0
  %v1985 = vperm.slane %v1201, 0
  %v1986 = vperm.slane %v1202, 0
  %v1987 = vperm.slane %v1203, 0
  %v1996 = vadd.f32 %v1980, %v1210
  %v1997 = vadd.f32 %v1980, %v1216
  %v1998 = vadd.f32 %v1980, %v1222
  %v1999 = vadd.f32 %v1980, %v1228
  %v2000 = vadd.f32 %v1980, %v1234
  %v2001 = vadd.f32 %v1980, %v1240
  %v2002 = vadd.f32 %v1980, %v1246
  %v2003 = vadd.f32 %v1980, %v1252
  %v2004 = vadd.f32 %v1980, %v1258
  %v2005 = vadd.f32 %v1980, %v1264
  %v2006 = vadd.f32 %v1980, %v1270
  %v2007 = vadd.f32 %v1980, %v1276
  %v2008 = vadd.f32 %v1980, %v1282
  %v2009 = vadd.f32 %v1980, %v1288
  %v2010 = vadd.f32 %v1980, %v1294
  %v2011 = vadd.f32 %v1980, %v1300
  %v2012 = vadd.f32 %v1981, %v1307
  %v2013 = vadd.f32 %v1981, %v1313
  %v2014 = vadd.f32 %v1981, %v1319
  %v2015 = vadd.f32 %v1981, %v1325
  %v2016 = vadd.f32 %v1981, %v1331
  %v2017 = vadd.f32 %v1981, %v1337
  %v2018 = vadd.f32 %v1981, %v1343
  %v2019 = vadd.f32 %v1981, %v1349
  %v2020 = vadd.f32 %v1981, %v1355
  %v2021 = vadd.f32 %v1981, %v1361
  %v2022 = vadd.f32 %v1981, %v1367
  %v2023 = vadd.f32 %v1981, %v1373
  %v2024 = vadd.f32 %v1981, %v1379
  %v2025 = vadd.f32 %v1981, %v1385
  %v2026 = vadd.f32 %v1981, %v1391
  %v2027 = vadd.f32 %v1981, %v1397
  %v2028 = vadd.f32 %v1982, %v1404
  %v2029 = vadd.f32 %v1982, %v1410
  %v2030 = vadd.f32 %v1982, %v1416
  %v2031 = vadd.f32 %v1982, %v1422
  %v2032 = vadd.f32 %v1982, %v1428
  %v2033 = vadd.f32 %v1982, %v1434
  %v2034 = vadd.f32 %v1982, %v1440
  %v2035 = vadd.f32 %v1982, %v1446
  %v2036 = vadd.f32 %v1982, %v1452
  %v2037 = vadd.f32 %v1982, %v1458
  %v2038 = vadd.f32 %v1982, %v1464
  %v2039 = vadd.f32 %v1982, %v1470
  %v2040 = vadd.f32 %v1982, %v1476
  %v2041 = vadd.f32 %v1982, %v1482
  %v2042 = vadd.f32 %v1982, %v1488
  %v2043 = vadd.f32 %v1982, %v1494
  %v2044 = vadd.f32 %v1983, %v1501
  %v2045 = vadd.f32 %v1983, %v1507
  %v2046 = vadd.f32 %v1983, %v1513
  %v2047 = vadd.f32 %v1983, %v1519
  %v2048 = vadd.f32 %v1983, %v1525
  %v2049 = vadd.f32 %v1983, %v1531
  %v2050 = vadd.f32 %v1983, %v1537
  %v2051 = vadd.f32 %v1983, %v1543
  %v2052 = vadd.f32 %v1983, %v1549
  %v2053 = vadd.f32 %v1983, %v1555
  %v2054 = vadd.f32 %v1983, %v1561
  %v2055 = vadd.f32 %v1983, %v1567
  %v2056 = vadd.f32 %v1983, %v1573
  %v2057 = vadd.f32 %v1983, %v1579
  %v2058 = vadd.f32 %v1983, %v1585
  %v2059 = vadd.f32 %v1983, %v1591
  %v2060 = vadd.f32 %v1984, %v1598
  %v2061 = vadd.f32 %v1984, %v1604
  %v2062 = vadd.f32 %v1984, %v1610
  %v2063 = vadd.f32 %v1984, %v1616
  %v2064 = vadd.f32 %v1984, %v1622
  %v2065 = vadd.f32 %v1984, %v1628
  %v2066 = vadd.f32 %v1984, %v1634
  %v2067 = vadd.f32 %v1984, %v1640
  %v2068 = vadd.f32 %v1984, %v1646
  %v2069 = vadd.f32 %v1984, %v1652
  %v2070 = vadd.f32 %v1984, %v1658
  %v2071 = vadd.f32 %v1984, %v1664
  %v2072 = vadd.f32 %v1984, %v1670
  %v2073 = vadd.f32 %v1984, %v1676
  %v2074 = vadd.f32 %v1984, %v1682
  %v2075 = vadd.f32 %v1984, %v1688
  %v2076 = vadd.f32 %v1985, %v1695
  %v2077 = vadd.f32 %v1985, %v1701
  %v2078 = vadd.f32 %v1985, %v1707
  %v2079 = vadd.f32 %v1985, %v1713
  %v2080 = vadd.f32 %v1985, %v1719
  %v2081 = vadd.f32 %v1985, %v1725
  %v2082 = vadd.f32 %v1985, %v1731
  %v2083 = vadd.f32 %v1985, %v1737
  %v2084 = vadd.f32 %v1985, %v1743
  %v2085 = vadd.f32 %v1985, %v1749
  %v2086 = vadd.f32 %v1985, %v1755
  %v2087 = vadd.f32 %v1985, %v1761
  %v2088 = vadd.f32 %v1985, %v1767
  %v2089 = vadd.f32 %v1985, %v1773
  %v2090 = vadd.f32 %v1985, %v1779
  %v2091 = vadd.f32 %v1985, %v1785
  %v2092 = vadd.f32 %v1986, %v1792
  %v2093 = vadd.f32 %v1986, %v1798
  %v2094 = vadd.f32 %v1986, %v1804
  %v2095 = vadd.f32 %v1986, %v1810
  %v2096 = vadd.f32 %v1986, %v1816
  %v2097 = vadd.f32 %v1986, %v1822
  %v2098 = vadd.f32 %v1986, %v1828
  %v2099 = vadd.f32 %v1986, %v1834
  %v2100 = vadd.f32 %v1986, %v1840
  %v2101 = vadd.f32 %v1986, %v1846
  %v2102 = vadd.f32 %v1986, %v1852
  %v2103 = vadd.f32 %v1986, %v1858
  %v2104 = vadd.f32 %v1986, %v1864
  %v2105 = vadd.f32 %v1986, %v1870
  %v2106 = vadd.f32 %v1986, %v1876
  %v2107 = vadd.f32 %v1986, %v1882
  %v2108 = vadd.f32 %v1987, %v1889
  %v2109 = vadd.f32 %v1987, %v1895
  %v2110 = vadd.f32 %v1987, %v1901
  %v2111 = vadd.f32 %v1987, %v1907
  %v2112 = vadd.f32 %v1987, %v1913
  %v2113 = vadd.f32 %v1987, %v1919
  %v2114 = vadd.f32 %v1987, %v1925
  %v2115 = vadd.f32 %v1987, %v1931
  %v2116 = vadd.f32 %v1987, %v1937
  %v2117 = vadd.f32 %v1987, %v1943
  %v2118 = vadd.f32 %v1987, %v1949
  %v2119 = vadd.f32 %v1987, %v1955
  %v2120 = vadd.f32 %v1987, %v1961
  %v2121 = vadd.f32 %v1987, %v1967
  %v2122 = vadd.f32 %v1987, %v1973
  %v2123 = vadd.f32 %v1987, %v1979
  %v2124 = vmul.f32 %v1996, 0.2
  %v2125 = vmul.f32 %v1997, 0.2
  %v2126 = vmul.f32 %v1998, 0.2
  %v2127 = vmul.f32 %v1999, 0.2
  %v2128 = vmul.f32 %v2000, 0.2
  %v2129 = vmul.f32 %v2001, 0.2
  %v2130 = vmul.f32 %v2002, 0.2
  %v2131 = vmul.f32 %v2003, 0.2
  %v2132 = vmul.f32 %v2004, 0.2
  %v2133 = vmul.f32 %v2005, 0.2
  %v2134 = vmul.f32 %v2006, 0.2
  %v2135 = vmul.f32 %v2007, 0.2
  %v2136 = vmul.f32 %v2008, 0.2
  %v2137 = vmul.f32 %v2009, 0.2
  %v2138 = vmul.f32 %v2010, 0.2
  %v2139 = vmul.f32 %v2011, 0.2
  %v2140 = vmul.f32 %v2012, 0.2
  %v2141 = vmul.f32 %v2013, 0.2
  %v2142 = vmul.f32 %v2014, 0.2
  %v2143 = vmul.f32 %v2015, 0.2
  %v2144 = vmul.f32 %v2016, 0.2
  %v2145 = vmul.f32 %v2017, 0.2
  %v2146 = vmul.f32 %v2018, 0.2
  %v2147 = vmul.f32 %v2019, 0.2
  %v2148 = vmul.f32 %v2020, 0.2
  %v2149 = vmul.f32 %v2021, 0.2
  %v2150 = vmul.f32 %v2022, 0.2
  %v2151 = vmul.f32 %v2023, 0.2
  %v2152 = vmul.f32 %v2024, 0.2
  %v2153 = vmul.f32 %v2025, 0.2
  %v2154 = vmul.f32 %v2026, 0.2
  %v2155 = vmul.f32 %v2027, 0.2
  %v2156 = vmul.f32 %v2028, 0.2
  %v2157 = vmul.f32 %v2029, 0.2
  %v2158 = vmul.f32 %v2030, 0.2
  %v2159 = vmul.f32 %v2031, 0.2
  %v2160 = vmul.f32 %v2032, 0.2
  %v2161 = vmul.f32 %v2033, 0.2
  %v2162 = vmul.f32 %v2034, 0.2
  %v2163 = vmul.f32 %v2035, 0.2
  %v2164 = vmul.f32 %v2036, 0.2
  %v2165 = vmul.f32 %v2037, 0.2
  %v2166 = vmul.f32 %v2038, 0.2
  %v2167 = vmul.f32 %v2039, 0.2
  %v2168 = vmul.f32 %v2040, 0.2
  %v2169 = vmul.f32 %v2041, 0.2
  %v2170 = vmul.f32 %v2042, 0.2
  %v2171 = vmul.f32 %v2043, 0.2
  %v2172 = vmul.f32 %v2044, 0.2
  %v2173 = vmul.f32 %v2045, 0.2
  %v2174 = vmul.f32 %v2046, 0.2
  %v2175 = vmul.f32 %v2047, 0.2
  %v2176 = vmul.f32 %v2048, 0.2
  %v2177 = vmul.f32 %v2049, 0.2
  %v2178 = vmul.f32 %v2050, 0.2
  %v2179 = vmul.f32 %v2051, 0.2
  %v2180 = vmul.f32 %v2052, 0.2
  %v2181 = vmul.f32 %v2053, 0.2
  %v2182 = vmul.f32 %v2054, 0.2
  %v2183 = vmul.f32 %v2055, 0.2
  %v2184 = vmul.f32 %v2056, 0.2
  %v2185 = vmul.f32 %v2057, 0.2
  %v2186 = vmul.f32 %v2058, 0.2
  %v2187 = vmul.f32 %v2059, 0.2
  %v2188 = vmul.f32 %v2060, 0.2
  %v2189 = vmul.f32 %v2061, 0.2
  %v2190 = vmul.f32 %v2062, 0.2
  %v2191 = vmul.f32 %v2063, 0.2
  %v2192 = vmul.f32 %v2064, 0.2
  %v2193 = vmul.f32 %v2065, 0.2
  %v2194 = vmul.f32 %v2066, 0.2
  %v2195 = vmul.f32 %v2067, 0.2
  %v2196 = vmul.f32 %v2068, 0.2
  %v2197 = vmul.f32 %v2069, 0.2
  %v2198 = vmul.f32 %v2070, 0.2
  %v2199 = vmul.f32 %v2071, 0.2
  %v2200 = vmul.f32 %v2072, 0.2
  %v2201 = vmul.f32 %v2073, 0.2
  %v2202 = vmul.f32 %v2074, 0.2
  %v2203 = vmul.f32 %v2075, 0.2
  %v2204 = vmul.f32 %v2076, 0.2
  %v2205 = vmul.f32 %v2077, 0.2
  %v2206 = vmul.f32 %v2078, 0.2
  %v2207 = vmul.f32 %v2079, 0.2
  %v2208 = vmul.f32 %v2080, 0.2
  %v2209 = vmul.f32 %v2081, 0.2
  %v2210 = vmul.f32 %v2082, 0.2
  %v2211 = vmul.f32 %v2083, 0.2
  %v2212 = vmul.f32 %v2084, 0.2
  %v2213 = vmul.f32 %v2085, 0.2
  %v2214 = vmul.f32 %v2086, 0.2
  %v2215 = vmul.f32 %v2087, 0.2
  %v2216 = vmul.f32 %v2088, 0.2
  %v2217 = vmul.f32 %v2089, 0.2
  %v2218 = vmul.f32 %v2090, 0.2
  %v2219 = vmul.f32 %v2091, 0.2
  %v2220 = vmul.f32 %v2092, 0.2
  %v2221 = vmul.f32 %v2093, 0.2
  %v2222 = vmul.f32 %v2094, 0.2
  %v2223 = vmul.f32 %v2095, 0.2
  %v2224 = vmul.f32 %v2096, 0.2
  %v2225 = vmul.f32 %v2097, 0.2
  %v2226 = vmul.f32 %v2098, 0.2
  %v2227 = vmul.f32 %v2099, 0.2
  %v2228 = vmul.f32 %v2100, 0.2
  %v2229 = vmul.f32 %v2101, 0.2
  %v2230 = vmul.f32 %v2102, 0.2
  %v2231 = vmul.f32 %v2103, 0.2
  %v2232 = vmul.f32 %v2104, 0.2
  %v2233 = vmul.f32 %v2105, 0.2
  %v2234 = vmul.f32 %v2106, 0.2
  %v2235 = vmul.f32 %v2107, 0.2
  %v2236 = vmul.f32 %v2108, 0.2
  %v2237 = vmul.f32 %v2109, 0.2
  %v2238 = vmul.f32 %v2110, 0.2
  %v2239 = vmul.f32 %v2111, 0.2
  %v2240 = vmul.f32 %v2112, 0.2
  %v2241 = vmul.f32 %v2113, 0.2
  %v2242 = vmul.f32 %v2114, 0.2
  %v2243 = vmul.f32 %v2115, 0.2
  %v2244 = vmul.f32 %v2116, 0.2
  %v2245 = vmul.f32 %v2117, 0.2
  %v2246 = vmul.f32 %v2118, 0.2
  %v2247 = vmul.f32 %v2119, 0.2
  %v2248 = vmul.f32 %v2120, 0.2
  %v2249 = vmul.f32 %v2121, 0.2
  %v2250 = vmul.f32 %v2122, 0.2
  %v2251 = vmul.f32 %v2123, 0.2
  %v2252 = vmax.f32 %v1996, %v2124
  %v2253 = vmax.f32 %v1997, %v2125
  %v2254 = vmax.f32 %v1998, %v2126
  %v2255 = vmax.f32 %v1999, %v2127
  %v2256 = vmax.f32 %v2000, %v2128
  %v2257 = vmax.f32 %v2001, %v2129
  %v2258 = vmax.f32 %v2002, %v2130
  %v2259 = vmax.f32 %v2003, %v2131
  %v2260 = vmax.f32 %v2004, %v2132
  %v2261 = vmax.f32 %v2005, %v2133
  %v2262 = vmax.f32 %v2006, %v2134
  %v2263 = vmax.f32 %v2007, %v2135
  %v2264 = vmax.f32 %v2008, %v2136
  %v2265 = vmax.f32 %v2009, %v2137
  %v2266 = vmax.f32 %v2010, %v2138
  %v2267 = vmax.f32 %v2011, %v2139
  %v2268 = vmax.f32 %v2012, %v2140
  %v2269 = vmax.f32 %v2013, %v2141
  %v2270 = vmax.f32 %v2014, %v2142
  %v2271 = vmax.f32 %v2015, %v2143
  %v2272 = vmax.f32 %v2016, %v2144
  %v2273 = vmax.f32 %v2017, %v2145
  %v2274 = vmax.f32 %v2018, %v2146
  %v2275 = vmax.f32 %v2019, %v2147
  %v2276 = vmax.f32 %v2020, %v2148
  %v2277 = vmax.f32 %v2021, %v2149
  %v2278 = vmax.f32 %v2022, %v2150
  %v2279 = vmax.f32 %v2023, %v2151
  %v2280 = vmax.f32 %v2024, %v2152
  %v2281 = vmax.f32 %v2025, %v2153
  %v2282 = vmax.f32 %v2026, %v2154
  %v2283 = vmax.f32 %v2027, %v2155
  %v2284 = vmax.f32 %v2028, %v2156
  %v2285 = vmax.f32 %v2029, %v2157
  %v2286 = vmax.f32 %v2030, %v2158
  %v2287 = vmax.f32 %v2031, %v2159
  %v2288 = vmax.f32 %v2032, %v2160
  %v2289 = vmax.f32 %v2033, %v2161
  %v2290 = vmax.f32 %v2034, %v2162
  %v2291 = vmax.f32 %v2035, %v2163
  %v2292 = vmax.f32 %v2036, %v2164
  %v2293 = vmax.f32 %v2037, %v2165
  %v2294 = vmax.f32 %v2038, %v2166
  %v2295 = vmax.f32 %v2039, %v2167
  %v2296 = vmax.f32 %v2040, %v2168
  %v2297 = vmax.f32 %v2041, %v2169
  %v2298 = vmax.f32 %v2042, %v2170
  %v2299 = vmax.f32 %v2043, %v2171
  %v2300 = vmax.f32 %v2044, %v2172
  %v2301 = vmax.f32 %v2045, %v2173
  %v2302 = vmax.f32 %v2046, %v2174
  %v2303 = vmax.f32 %v2047, %v2175
  %v2304 = vmax.f32 %v2048, %v2176
  %v2305 = vmax.f32 %v2049, %v2177
  %v2306 = vmax.f32 %v2050, %v2178
  %v2307 = vmax.f32 %v2051, %v2179
  %v2308 = vmax.f32 %v2052, %v2180
  %v2309 = vmax.f32 %v2053, %v2181
  %v2310 = vmax.f32 %v2054, %v2182
  %v2311 = vmax.f32 %v2055, %v2183
  %v2312 = vmax.f32 %v2056, %v2184
  %v2313 = vmax.f32 %v2057, %v2185
  %v2314 = vmax.f32 %v2058, %v2186
  %v2315 = vmax.f32 %v2059, %v2187
  %v2316 = vmax.f32 %v2060, %v2188
  %v2317 = vmax.f32 %v2061, %v2189
  %v2318 = vmax.f32 %v2062, %v2190
  %v2319 = vmax.f32 %v2063, %v2191
  %v2320 = vmax.f32 %v2064, %v2192
  %v2321 = vmax.f32 %v2065, %v2193
  %v2322 = vmax.f32 %v2066, %v2194
  %v2323 = vmax.f32 %v2067, %v2195
  %v2324 = vmax.f32 %v2068, %v2196
  %v2325 = vmax.f32 %v2069, %v2197
  %v2326 = vmax.f32 %v2070, %v2198
  %v2327 = vmax.f32 %v2071, %v2199
  %v2328 = vmax.f32 %v2072, %v2200
  %v2329 = vmax.f32 %v2073, %v2201
  %v2330 = vmax.f32 %v2074, %v2202
  %v2331 = vmax.f32 %v2075, %v2203
  %v2332 = vmax.f32 %v2076, %v2204
  %v2333 = vmax.f32 %v2077, %v2205
  %v2334 = vmax.f32 %v2078, %v2206
  %v2335 = vmax.f32 %v2079, %v2207
  %v2336 = vmax.f32 %v2080, %v2208
  %v2337 = vmax.f32 %v2081, %v2209
  %v2338 = vmax.f32 %v2082, %v2210
  %v2339 = vmax.f32 %v2083, %v2211
  %v2340 = vmax.f32 %v2084, %v2212
  %v2341 = vmax.f32 %v2085, %v2213
  %v2342 = vmax.f32 %v2086, %v2214
  %v2343 = vmax.f32 %v2087, %v2215
  %v2344 = vmax.f32 %v2088, %v2216
  %v2345 = vmax.f32 %v2089, %v2217
  %v2346 = vmax.f32 %v2090, %v2218
  %v2347 = vmax.f32 %v2091, %v2219
  %v2348 = vmax.f32 %v2092, %v2220
  %v2349 = vmax.f32 %v2093, %v2221
  %v2350 = vmax.f32 %v2094, %v2222
  %v2351 = vmax.f32 %v2095, %v2223
  %v2352 = vmax.f32 %v2096, %v2224
  %v2353 = vmax.f32 %v2097, %v2225
  %v2354 = vmax.f32 %v2098, %v2226
  %v2355 = vmax.f32 %v2099, %v2227
  %v2356 = vmax.f32 %v2100, %v2228
  %v2357 = vmax.f32 %v2101, %v2229
  %v2358 = vmax.f32 %v2102, %v2230
  %v2359 = vmax.f32 %v2103, %v2231
  %v2360 = vmax.f32 %v2104, %v2232
  %v2361 = vmax.f32 %v2105, %v2233
  %v2362 = vmax.f32 %v2106, %v2234
  %v2363 = vmax.f32 %v2107, %v2235
  %v2364 = vmax.f32 %v2108, %v2236
  %v2365 = vmax.f32 %v2109, %v2237
  %v2366 = vmax.f32 %v2110, %v2238
  %v2367 = vmax.f32 %v2111, %v2239
  %v2368 = vmax.f32 %v2112, %v2240
  %v2369 = vmax.f32 %v2113, %v2241
  %v2370 = vmax.f32 %v2114, %v2242
  %v2371 = vmax.f32 %v2115, %v2243
  %v2372 = vmax.f32 %v2116, %v2244
  %v2373 = vmax.f32 %v2117, %v2245
  %v2374 = vmax.f32 %v2118, %v2246
  %v2375 = vmax.f32 %v2119, %v2247
  %v2376 = vmax.f32 %v2120, %v2248
  %v2377 = vmax.f32 %v2121, %v2249
  %v2378 = vmax.f32 %v2122, %v2250
  %v2379 = vmax.f32 %v2123, %v2251
  %v2380 = vadd.f32 %v2252, %v399
  %v2381 = vadd.f32 %v2253, %v400
  %v2382 = vadd.f32 %v2254, %v401
  %v2383 = vadd.f32 %v2255, %v402
  %v2384 = vadd.f32 %v2256, %v403
  %v2385 = vadd.f32 %v2257, %v404
  %v2386 = vadd.f32 %v2258, %v405
  %v2387 = vadd.f32 %v2259, %v406
  %v2388 = vadd.f32 %v2260, %v407
  %v2389 = vadd.f32 %v2261, %v408
  %v2390 = vadd.f32 %v2262, %v409
  %v2391 = vadd.f32 %v2263, %v410
  %v2392 = vadd.f32 %v2264, %v411
  %v2393 = vadd.f32 %v2265, %v412
  %v2394 = vadd.f32 %v2266, %v413
  %v2395 = vadd.f32 %v2267, %v414
  %v2396 = vadd.f32 %v2268, %v399
  %v2397 = vadd.f32 %v2269, %v400
  %v2398 = vadd.f32 %v2270, %v401
  %v2399 = vadd.f32 %v2271, %v402
  %v2400 = vadd.f32 %v2272, %v403
  %v2401 = vadd.f32 %v2273, %v404
  %v2402 = vadd.f32 %v2274, %v405
  %v2403 = vadd.f32 %v2275, %v406
  %v2404 = vadd.f32 %v2276, %v407
  %v2405 = vadd.f32 %v2277, %v408
  %v2406 = vadd.f32 %v2278, %v409
  %v2407 = vadd.f32 %v2279, %v410
  %v2408 = vadd.f32 %v2280, %v411
  %v2409 = vadd.f32 %v2281, %v412
  %v2410 = vadd.f32 %v2282, %v413
  %v2411 = vadd.f32 %v2283, %v414
  %v2412 = vadd.f32 %v2284, %v399
  %v2413 = vadd.f32 %v2285, %v400
  %v2414 = vadd.f32 %v2286, %v401
  %v2415 = vadd.f32 %v2287, %v402
  %v2416 = vadd.f32 %v2288, %v403
  %v2417 = vadd.f32 %v2289, %v404
  %v2418 = vadd.f32 %v2290, %v405
  %v2419 = vadd.f32 %v2291, %v406
  %v2420 = vadd.f32 %v2292, %v407
  %v2421 = vadd.f32 %v2293, %v408
  %v2422 = vadd.f32 %v2294, %v409
  %v2423 = vadd.f32 %v2295, %v410
  %v2424 = vadd.f32 %v2296, %v411
  %v2425 = vadd.f32 %v2297, %v412
  %v2426 = vadd.f32 %v2298, %v413
  %v2427 = vadd.f32 %v2299, %v414
  %v2428 = vadd.f32 %v2300, %v399
  %v2429 = vadd.f32 %v2301, %v400
  %v2430 = vadd.f32 %v2302, %v401
  %v2431 = vadd.f32 %v2303, %v402
  %v2432 = vadd.f32 %v2304, %v403
  %v2433 = vadd.f32 %v2305, %v404
  %v2434 = vadd.f32 %v2306, %v405
  %v2435 = vadd.f32 %v2307, %v406
  %v2436 = vadd.f32 %v2308, %v407
  %v2437 = vadd.f32 %v2309, %v408
  %v2438 = vadd.f32 %v2310, %v409
  %v2439 = vadd.f32 %v2311, %v410
  %v2440 = vadd.f32 %v2312, %v411
  %v2441 = vadd.f32 %v2313, %v412
  %v2442 = vadd.f32 %v2314, %v413
  %v2443 = vadd.f32 %v2315, %v414
  %v2444 = vadd.f32 %v2316, %v399
  %v2445 = vadd.f32 %v2317, %v400
  %v2446 = vadd.f32 %v2318, %v401
  %v2447 = vadd.f32 %v2319, %v402
  %v2448 = vadd.f32 %v2320, %v403
  %v2449 = vadd.f32 %v2321, %v404
  %v2450 = vadd.f32 %v2322, %v405
  %v2451 = vadd.f32 %v2323, %v406
  %v2452 = vadd.f32 %v2324, %v407
  %v2453 = vadd.f32 %v2325, %v408
  %v2454 = vadd.f32 %v2326, %v409
  %v2455 = vadd.f32 %v2327, %v410
  %v2456 = vadd.f32 %v2328, %v411
  %v2457 = vadd.f32 %v2329, %v412
  %v2458 = vadd.f32 %v2330, %v413
  %v2459 = vadd.f32 %v2331, %v414
  %v2460 = vadd.f32 %v2332, %v399
  %v2461 = vadd.f32 %v2333, %v400
  %v2462 = vadd.f32 %v2334, %v401
  %v2463 = vadd.f32 %v2335, %v402
  %v2464 = vadd.f32 %v2336, %v403
  %v2465 = vadd.f32 %v2337, %v404
  %v2466 = vadd.f32 %v2338, %v405
  %v2467 = vadd.f32 %v2339, %v406
  %v2468 = vadd.f32 %v2340, %v407
  %v2469 = vadd.f32 %v2341, %v408
  %v2470 = vadd.f32 %v2342, %v409
  %v2471 = vadd.f32 %v2343, %v410
  %v2472 = vadd.f32 %v2344, %v411
  %v2473 = vadd.f32 %v2345, %v412
  %v2474 = vadd.f32 %v2346, %v413
  %v2475 = vadd.f32 %v2347, %v414
  %v2476 = vadd.f32 %v2348, %v399
  %v2477 = vadd.f32 %v2349, %v400
  %v2478 = vadd.f32 %v2350, %v401
  %v2479 = vadd.f32 %v2351, %v402
  %v2480 = vadd.f32 %v2352, %v403
  %v2481 = vadd.f32 %v2353, %v404
  %v2482 = vadd.f32 %v2354, %v405
  %v2483 = vadd.f32 %v2355, %v406
  %v2484 = vadd.f32 %v2356, %v407
  %v2485 = vadd.f32 %v2357, %v408
  %v2486 = vadd.f32 %v2358, %v409
  %v2487 = vadd.f32 %v2359, %v410
  %v2488 = vadd.f32 %v2360, %v411
  %v2489 = vadd.f32 %v2361, %v412
  %v2490 = vadd.f32 %v2362, %v413
  %v2491 = vadd.f32 %v2363, %v414
  %v2492 = vadd.f32 %v2364, %v399
  %v2493 = vadd.f32 %v2365, %v400
  %v2494 = vadd.f32 %v2366, %v401
  %v2495 = vadd.f32 %v2367, %v402
  %v2496 = vadd.f32 %v2368, %v403
  %v2497 = vadd.f32 %v2369, %v404
  %v2498 = vadd.f32 %v2370, %v405
  %v2499 = vadd.f32 %v2371, %v406
  %v2500 = vadd.f32 %v2372, %v407
  %v2501 = vadd.f32 %v2373, %v408
  %v2502 = vadd.f32 %v2374, %v409
  %v2503 = vadd.f32 %v2375, %v410
  %v2504 = vadd.f32 %v2376, %v411
  %v2505 = vadd.f32 %v2377, %v412
  %v2506 = vadd.f32 %v2378, %v413
  %v2507 = vadd.f32 %v2379, %v414
  %v2508 = vsub.f32 %v2380, %v426
  %v2509 = vsub.f32 %v2381, %v432
  %v2510 = vsub.f32 %v2382, %v438
  %v2511 = vsub.f32 %v2383, %v444
  %v2512 = vsub.f32 %v2384, %v450
  %v2513 = vsub.f32 %v2385, %v456
  %v2514 = vsub.f32 %v2386, %v462
  %v2515 = vsub.f32 %v2387, %v468
  %v2516 = vsub.f32 %v2388, %v474
  %v2517 = vsub.f32 %v2389, %v480
  %v2518 = vsub.f32 %v2390, %v486
  %v2519 = vsub.f32 %v2391, %v492
  %v2520 = vsub.f32 %v2392, %v498
  %v2521 = vsub.f32 %v2393, %v504
  %v2522 = vsub.f32 %v2394, %v510
  %v2523 = vsub.f32 %v2395, %v516
  %v2524 = vsub.f32 %v2396, %v523
  %v2525 = vsub.f32 %v2397, %v529
  %v2526 = vsub.f32 %v2398, %v535
  %v2527 = vsub.f32 %v2399, %v541
  %v2528 = vsub.f32 %v2400, %v547
  %v2529 = vsub.f32 %v2401, %v553
  %v2530 = vsub.f32 %v2402, %v559
  %v2531 = vsub.f32 %v2403, %v565
  %v2532 = vsub.f32 %v2404, %v571
  %v2533 = vsub.f32 %v2405, %v577
  %v2534 = vsub.f32 %v2406, %v583
  %v2535 = vsub.f32 %v2407, %v589
  %v2536 = vsub.f32 %v2408, %v595
  %v2537 = vsub.f32 %v2409, %v601
  %v2538 = vsub.f32 %v2410, %v607
  %v2539 = vsub.f32 %v2411, %v613
  %v2540 = vsub.f32 %v2412, %v620
  %v2541 = vsub.f32 %v2413, %v626
  %v2542 = vsub.f32 %v2414, %v632
  %v2543 = vsub.f32 %v2415, %v638
  %v2544 = vsub.f32 %v2416, %v644
  %v2545 = vsub.f32 %v2417, %v650
  %v2546 = vsub.f32 %v2418, %v656
  %v2547 = vsub.f32 %v2419, %v662
  %v2548 = vsub.f32 %v2420, %v668
  %v2549 = vsub.f32 %v2421, %v674
  %v2550 = vsub.f32 %v2422, %v680
  %v2551 = vsub.f32 %v2423, %v686
  %v2552 = vsub.f32 %v2424, %v692
  %v2553 = vsub.f32 %v2425, %v698
  %v2554 = vsub.f32 %v2426, %v704
  %v2555 = vsub.f32 %v2427, %v710
  %v2556 = vsub.f32 %v2428, %v717
  %v2557 = vsub.f32 %v2429, %v723
  %v2558 = vsub.f32 %v2430, %v729
  %v2559 = vsub.f32 %v2431, %v735
  %v2560 = vsub.f32 %v2432, %v741
  %v2561 = vsub.f32 %v2433, %v747
  %v2562 = vsub.f32 %v2434, %v753
  %v2563 = vsub.f32 %v2435, %v759
  %v2564 = vsub.f32 %v2436, %v765
  %v2565 = vsub.f32 %v2437, %v771
  %v2566 = vsub.f32 %v2438, %v777
  %v2567 = vsub.f32 %v2439, %v783
  %v2568 = vsub.f32 %v2440, %v789
  %v2569 = vsub.f32 %v2441, %v795
  %v2570 = vsub.f32 %v2442, %v801
  %v2571 = vsub.f32 %v2443, %v807
  %v2572 = vsub.f32 %v2444, %v814
  %v2573 = vsub.f32 %v2445, %v820
  %v2574 = vsub.f32 %v2446, %v826
  %v2575 = vsub.f32 %v2447, %v832
  %v2576 = vsub.f32 %v2448, %v838
  %v2577 = vsub.f32 %v2449, %v844
  %v2578 = vsub.f32 %v2450, %v850
  %v2579 = vsub.f32 %v2451, %v856
  %v2580 = vsub.f32 %v2452, %v862
  %v2581 = vsub.f32 %v2453, %v868
  %v2582 = vsub.f32 %v2454, %v874
  %v2583 = vsub.f32 %v2455, %v880
  %v2584 = vsub.f32 %v2456, %v886
  %v2585 = vsub.f32 %v2457, %v892
  %v2586 = vsub.f32 %v2458, %v898
  %v2587 = vsub.f32 %v2459, %v904
  %v2588 = vsub.f32 %v2460, %v911
  %v2589 = vsub.f32 %v2461, %v917
  %v2590 = vsub.f32 %v2462, %v923
  %v2591 = vsub.f32 %v2463, %v929
  %v2592 = vsub.f32 %v2464, %v935
  %v2593 = vsub.f32 %v2465, %v941
  %v2594 = vsub.f32 %v2466, %v947
  %v2595 = vsub.f32 %v2467, %v953
  %v2596 = vsub.f32 %v2468, %v959
  %v2597 = vsub.f32 %v2469, %v965
  %v2598 = vsub.f32 %v2470, %v971
  %v2599 = vsub.f32 %v2471, %v977
  %v2600 = vsub.f32 %v2472, %v983
  %v2601 = vsub.f32 %v2473, %v989
  %v2602 = vsub.f32 %v2474, %v995
  %v2603 = vsub.f32 %v2475, %v1001
  %v2604 = vsub.f32 %v2476, %v1008
  %v2605 = vsub.f32 %v2477, %v1014
  %v2606 = vsub.f32 %v2478, %v1020
  %v2607 = vsub.f32 %v2479, %v1026
  %v2608 = vsub.f32 %v2480, %v1032
  %v2609 = vsub.f32 %v2481, %v1038
  %v2610 = vsub.f32 %v2482, %v1044
  %v2611 = vsub.f32 %v2483, %v1050
  %v2612 = vsub.f32 %v2484, %v1056
  %v2613 = vsub.f32 %v2485, %v1062
  %v2614 = vsub.f32 %v2486, %v1068
  %v2615 = vsub.f32 %v2487, %v1074
  %v2616 = vsub.f32 %v2488, %v1080
  %v2617 = vsub.f32 %v2489, %v1086
  %v2618 = vsub.f32 %v2490, %v1092
  %v2619 = vsub.f32 %v2491, %v1098
  %v2620 = vsub.f32 %v2492, %v1105
  %v2621 = vsub.f32 %v2493, %v1111
  %v2622 = vsub.f32 %v2494, %v1117
  %v2623 = vsub.f32 %v2495, %v1123
  %v2624 = vsub.f32 %v2496, %v1129
  %v2625 = vsub.f32 %v2497, %v1135
  %v2626 = vsub.f32 %v2498, %v1141
  %v2627 = vsub.f32 %v2499, %v1147
  %v2628 = vsub.f32 %v2500, %v1153
  %v2629 = vsub.f32 %v2501, %v1159
  %v2630 = vsub.f32 %v2502, %v1165
  %v2631 = vsub.f32 %v2503, %v1171
  %v2632 = vsub.f32 %v2504, %v1177
  %v2633 = vsub.f32 %v2505, %v1183
  %v2634 = vsub.f32 %v2506, %v1189
  %v2635 = vsub.f32 %v2507, %v1195
  %v2636 = vmul.f32 %v2508, 1.442695
  %v2637 = vpow.pop %v2636
  %v2638 = vmul.f32 %v2509, 1.442695
  %v2639 = vpow.pop %v2638
  %v2640 = vmul.f32 %v2510, 1.442695
  %v2641 = vpow.pop %v2640
  %v2642 = vmul.f32 %v2511, 1.442695
  %v2643 = vpow.pop %v2642
  %v2644 = vmul.f32 %v2512, 1.442695
  %v2645 = vpow.pop %v2644
  %v2646 = vmul.f32 %v2513, 1.442695
  %v2647 = vpow.pop %v2646
  %v2648 = vmul.f32 %v2514, 1.442695
  %v2649 = vpow.pop %v2648
  %v2650 = vmul.f32 %v2515, 1.442695
  %v2651 = vpow.pop %v2650
  %v2652 = vmul.f32 %v2516, 1.442695
  %v2653 = vpow.pop %v2652
  %v2654 = vmul.f32 %v2517, 1.442695
  %v2655 = vpow.pop %v2654
  %v2656 = vmul.f32 %v2518, 1.442695
  %v2657 = vpow.pop %v2656
  %v2658 = vmul.f32 %v2519, 1.442695
  %v2659 = vpow.pop %v2658
  %v2660 = vmul.f32 %v2520, 1.442695
  %v2661 = vpow.pop %v2660
  %v2662 = vmul.f32 %v2521, 1.442695
  %v2663 = vpow.pop %v2662
  %v2664 = vmul.f32 %v2522, 1.442695
  %v2665 = vpow.pop %v2664
  %v2666 = vmul.f32 %v2523, 1.442695
  %v2667 = vpow.pop %v2666
  %v2668 = vmul.f32 %v2524, 1.442695
  %v2669 = vpow.pop %v2668
  %v2670 = vmul.f32 %v2525, 1.442695
  %v2671 = vpow.pop %v2670
  %v2672 = vmul.f32 %v2526, 1.442695
  %v2673 = vpow.pop %v2672
  %v2674 = vmul.f32 %v2527, 1.442695
  %v2675 = vpow.pop %v2674
  %v2676 = vmul.f32 %v2528, 1.442695
  %v2677 = vpow.pop %v2676
  %v2678 = vmul.f32 %v2529, 1.442695
  %v2679 = vpow.pop %v2678
  %v2680 = vmul.f32 %v2530, 1.442695
  %v2681 = vpow.pop %v2680
  %v2682 = vmul.f32 %v2531, 1.442695
  %v2683 = vpow.pop %v2682
  %v2684 = vmul.f32 %v2532, 1.442695
  %v2685 = vpow.pop %v2684
  %v2686 = vmul.f32 %v2533, 1.442695
  %v2687 = vpow.pop %v2686
  %v2688 = vmul.f32 %v2534, 1.442695
  %v2689 = vpow.pop %v2688
  %v2690 = vmul.f32 %v2535, 1.442695
  %v2691 = vpow.pop %v2690
  %v2692 = vmul.f32 %v2536, 1.442695
  %v2693 = vpow.pop %v2692
  %v2694 = vmul.f32 %v2537, 1.442695
  %v2695 = vpow.pop %v2694
  %v2696 = vmul.f32 %v2538, 1.442695
  %v2697 = vpow.pop %v2696
  %v2698 = vmul.f32 %v2539, 1.442695
  %v2699 = vpow.pop %v2698
  %v2700 = vmul.f32 %v2540, 1.442695
  %v2701 = vpow.pop %v2700
  %v2702 = vmul.f32 %v2541, 1.442695
  %v2703 = vpow.pop %v2702
  %v2704 = vmul.f32 %v2542, 1.442695
  %v2705 = vpow.pop %v2704
  %v2706 = vmul.f32 %v2543, 1.442695
  %v2707 = vpow.pop %v2706
  %v2708 = vmul.f32 %v2544, 1.442695
  %v2709 = vpow.pop %v2708
  %v2710 = vmul.f32 %v2545, 1.442695
  %v2711 = vpow.pop %v2710
  %v2712 = vmul.f32 %v2546, 1.442695
  %v2713 = vpow.pop %v2712
  %v2714 = vmul.f32 %v2547, 1.442695
  %v2715 = vpow.pop %v2714
  %v2716 = vmul.f32 %v2548, 1.442695
  %v2717 = vpow.pop %v2716
  %v2718 = vmul.f32 %v2549, 1.442695
  %v2719 = vpow.pop %v2718
  %v2720 = vmul.f32 %v2550, 1.442695
  %v2721 = vpow.pop %v2720
  %v2722 = vmul.f32 %v2551, 1.442695
  %v2723 = vpow.pop %v2722
  %v2724 = vmul.f32 %v2552, 1.442695
  %v2725 = vpow.pop %v2724
  %v2726 = vmul.f32 %v2553, 1.442695
  %v2727 = vpow.pop %v2726
  %v2728 = vmul.f32 %v2554, 1.442695
  %v2729 = vpow.pop %v2728
  %v2730 = vmul.f32 %v2555, 1.442695
  %v2731 = vpow.pop %v2730
  %v2732 = vmul.f32 %v2556, 1.442695
  %v2733 = vpow.pop %v2732
  %v2734 = vmul.f32 %v2557, 1.442695
  %v2735 = vpow.pop %v2734
  %v2736 = vmul.f32 %v2558, 1.442695
  %v2737 = vpow.pop %v2736
  %v2738 = vmul.f32 %v2559, 1.442695
  %v2739 = vpow.pop %v2738
  %v2740 = vmul.f32 %v2560, 1.442695
  %v2741 = vpow.pop %v2740
  %v2742 = vmul.f32 %v2561, 1.442695
  %v2743 = vpow.pop %v2742
  %v2744 = vmul.f32 %v2562, 1.442695
  %v2745 = vpow.pop %v2744
  %v2746 = vmul.f32 %v2563, 1.442695
  %v2747 = vpow.pop %v2746
  %v2748 = vmul.f32 %v2564, 1.442695
  %v2749 = vpow.pop %v2748
  %v2750 = vmul.f32 %v2565, 1.442695
  %v2751 = vpow.pop %v2750
  %v2752 = vmul.f32 %v2566, 1.442695
  %v2753 = vpow.pop %v2752
  %v2754 = vmul.f32 %v2567, 1.442695
  %v2755 = vpow.pop %v2754
  %v2756 = vmul.f32 %v2568, 1.442695
  %v2757 = vpow.pop %v2756
  %v2758 = vmul.f32 %v2569, 1.442695
  %v2759 = vpow.pop %v2758
  %v2760 = vmul.f32 %v2570, 1.442695
  %v2761 = vpow.pop %v2760
  %v2762 = vmul.f32 %v2571, 1.442695
  %v2763 = vpow.pop %v2762
  %v2764 = vmul.f32 %v2572, 1.442695
  %v2765 = vpow.pop %v2764
  %v2766 = vmul.f32 %v2573, 1.442695
  %v2767 = vpow.pop %v2766
  %v2768 = vmul.f32 %v2574, 1.442695
  %v2769 = vpow.pop %v2768
  %v2770 = vmul.f32 %v2575, 1.442695
  %v2771 = vpow.pop %v2770
  %v2772 = vmul.f32 %v2576, 1.442695
  %v2773 = vpow.pop %v2772
  %v2774 = vmul.f32 %v2577, 1.442695
  %v2775 = vpow.pop %v2774
  %v2776 = vmul.f32 %v2578, 1.442695
  %v2777 = vpow.pop %v2776
  %v2778 = vmul.f32 %v2579, 1.442695
  %v2779 = vpow.pop %v2778
  %v2780 = vmul.f32 %v2580, 1.442695
  %v2781 = vpow.pop %v2780
  %v2782 = vmul.f32 %v2581, 1.442695
  %v2783 = vpow.pop %v2782
  %v2784 = vmul.f32 %v2582, 1.442695
  %v2785 = vpow.pop %v2784
  %v2786 = vmul.f32 %v2583, 1.442695
  %v2787 = vpow.pop %v2786
  %v2788 = vmul.f32 %v2584, 1.442695
  %v2789 = vpow.pop %v2788
  %v2790 = vmul.f32 %v2585, 1.442695
  %v2791 = vpow.pop %v2790
  %v2792 = vmul.f32 %v2586, 1.442695
  %v2793 = vpow.pop %v2792
  %v2794 = vmul.f32 %v2587, 1.442695
  %v2795 = vpow.pop %v2794
  %v2796 = vmul.f32 %v2588, 1.442695
  %v2797 = vpow.pop %v2796
  %v2798 = vmul.f32 %v2589, 1.442695
  %v2799 = vpow.pop %v2798
  %v2800 = vmul.f32 %v2590, 1.442695
  %v2801 = vpow.pop %v2800
  %v2802 = vmul.f32 %v2591, 1.442695
  %v2803 = vpow.pop %v2802
  %v2804 = vmul.f32 %v2592, 1.442695
  %v2805 = vpow.pop %v2804
  %v2806 = vmul.f32 %v2593, 1.442695
  %v2807 = vpow.pop %v2806
  %v2808 = vmul.f32 %v2594, 1.442695
  %v2809 = vpow.pop %v2808
  %v2810 = vmul.f32 %v2595, 1.442695
  %v2811 = vpow.pop %v2810
  %v2812 = vmul.f32 %v2596, 1.442695
  %v2813 = vpow.pop %v2812
  %v2814 = vmul.f32 %v2597, 1.442695
  %v2815 = vpow.pop %v2814
  %v2816 = vmul.f32 %v2598, 1.442695
  %v2817 = vpow.pop %v2816
  %v2818 = vmul.f32 %v2599, 1.442695
  %v2819 = vpow.pop %v2818
  %v2820 = vmul.f32 %v2600, 1.442695
  %v2821 = vpow.pop %v2820
  %v2822 = vmul.f32 %v2601, 1.442695
  %v2823 = vpow.pop %v2822
  %v2824 = vmul.f32 %v2602, 1.442695
  %v2825 = vpow.pop %v2824
  %v2826 = vmul.f32 %v2603, 1.442695
  %v2827 = vpow.pop %v2826
  %v2828 = vmul.f32 %v2604, 1.442695
  %v2829 = vpow.pop %v2828
  %v2830 = vmul.f32 %v2605, 1.442695
  %v2831 = vpow.pop %v2830
  %v2832 = vmul.f32 %v2606, 1.442695
  %v2833 = vpow.pop %v2832
  %v2834 = vmul.f32 %v2607, 1.442695
  %v2835 = vpow.pop %v2834
  %v2836 = vmul.f32 %v2608, 1.442695
  %v2837 = vpow.pop %v2836
  %v2838 = vmul.f32 %v2609, 1.442695
  %v2839 = vpow.pop %v2838
  %v2840 = vmul.f32 %v2610, 1.442695
  %v2841 = vpow.pop %v2840
  %v2842 = vmul.f32 %v2611, 1.442695
  %v2843 = vpow.pop %v2842
  %v2844 = vmul.f32 %v2612, 1.442695
  %v2845 = vpow.pop %v2844
  %v2846 = vmul.f32 %v2613, 1.442695
  %v2847 = vpow.pop %v2846
  %v2848 = vmul.f32 %v2614, 1.442695
  %v2849 = vpow.pop %v2848
  %v2850 = vmul.f32 %v2615, 1.442695
  %v2851 = vpow.pop %v2850
  %v2852 = vmul.f32 %v2616, 1.442695
  %v2853 = vpow.pop %v2852
  %v2854 = vmul.f32 %v2617, 1.442695
  %v2855 = vpow.pop %v2854
  %v2856 = vmul.f32 %v2618, 1.442695
  %v2857 = vpow.pop %v2856
  %v2858 = vmul.f32 %v2619, 1.442695
  %v2859 = vpow.pop %v2858
  %v2860 = vmul.f32 %v2620, 1.442695
  %v2861 = vpow.pop %v2860
  %v2862 = vmul.f32 %v2621, 1.442695
  %v2863 = vpow.pop %v2862
  %v2864 = vmul.f32 %v2622, 1.442695
  %v2865 = vpow.pop %v2864
  %v2866 = vmul.f32 %v2623, 1.442695
  %v2867 = vpow.pop %v2866
  %v2868 = vmul.f32 %v2624, 1.442695
  %v2869 = vpow.pop %v2868
  %v2870 = vmul.f32 %v2625, 1.442695
  %v2871 = vpow.pop %v2870
  %v2872 = vmul.f32 %v2626, 1.442695
  %v2873 = vpow.pop %v2872
  %v2874 = vmul.f32 %v2627, 1.442695
  %v2875 = vpow.pop %v2874
  %v2876 = vmul.f32 %v2628, 1.442695
  %v2877 = vpow.pop %v2876
  %v2878 = vmul.f32 %v2629, 1.442695
  %v2879 = vpow.pop %v2878
  %v2880 = vmul.f32 %v2630, 1.442695
  %v2881 = vpow.pop %v2880
  %v2882 = vmul.f32 %v2631, 1.442695
  %v2883 = vpow.pop %v2882
  %v2884 = vmul.f32 %v2632, 1.442695
  %v2885 = vpow.pop %v2884
  %v2886 = vmul.f32 %v2633, 1.442695
  %v2887 = vpow.pop %v2886
  %v2888 = vmul.f32 %v2634, 1.442695
  %v2889 = vpow.pop %v2888
  %v2890 = vmul.f32 %v2635, 1.442695
  %v2891 = vpow.pop %v2890
  %2892 = vmatpush.msra.mxu0 %v156
  %2893 = vmatpush.msra.mxu0 %v153
  %2894 = vmatpush.msra.mxu0 %v150
  %2895 = vmatpush.msra.mxu0 %v147
  %2896 = vmatpush.msra.mxu0 %v144
  %2897 = vmatpush.msra.mxu0 %v141
  %2898 = vmatpush.msra.mxu0 %v138
  %2899 = vmatpush.msra.mxu0 %v135
  %2900 = vmatpush.msra.mxu0 %v132
  %2901 = vmatpush.msra.mxu0 %v129
  %2902 = vmatpush.msra.mxu0 %v126
  %2903 = vmatpush.msra.mxu0 %v123
  %2904 = vmatpush.msra.mxu0 %v120
  %2905 = vmatpush.msra.mxu0 %v117
  %2906 = vmatpush.msra.mxu0 %v114
  %2907 = vmatpush.msra.mxu0 %v111
  %2908 = vmatmul.f32.gmra.mxu0 %v2637
  %v2909 = vpop.f32.mrf.mxu0
  %v2910 = vadd.f32 0.0, %v2909
  %2911 = vmatmul.f32.gmra.mxu0 %v2639
  %v2912 = vpop.f32.mrf.mxu0
  %v2913 = vadd.f32 0.0, %v2912
  %2914 = vmatmul.f32.gmra.mxu0 %v2641
  %v2915 = vpop.f32.mrf.mxu0
  %v2916 = vadd.f32 0.0, %v2915
  %2917 = vmatmul.f32.gmra.mxu0 %v2643
  %v2918 = vpop.f32.mrf.mxu0
  %v2919 = vadd.f32 0.0, %v2918
  %2920 = vmatmul.f32.gmra.mxu0 %v2645
  %v2921 = vpop.f32.mrf.mxu0
  %v2922 = vadd.f32 0.0, %v2921
  %2923 = vmatmul.f32.gmra.mxu0 %v2647
  %v2924 = vpop.f32.mrf.mxu0
  %v2925 = vadd.f32 0.0, %v2924
  %2926 = vmatmul.f32.gmra.mxu0 %v2649
  %v2927 = vpop.f32.mrf.mxu0
  %v2928 = vadd.f32 0.0, %v2927
  %2929 = vmatmul.f32.gmra.mxu0 %v2651
  %v2930 = vpop.f32.mrf.mxu0
  %v2931 = vadd.f32 0.0, %v2930
  %2932 = vmatmul.f32.gmra.mxu0 %v2653
  %v2933 = vpop.f32.mrf.mxu0
  %v2934 = vadd.f32 0.0, %v2933
  %2935 = vmatmul.f32.gmra.mxu0 %v2655
  %v2936 = vpop.f32.mrf.mxu0
  %v2937 = vadd.f32 0.0, %v2936
  %2938 = vmatmul.f32.gmra.mxu0 %v2657
  %v2939 = vpop.f32.mrf.mxu0
  %v2940 = vadd.f32 0.0, %v2939
  %2941 = vmatmul.f32.gmra.mxu0 %v2659
  %v2942 = vpop.f32.mrf.mxu0
  %v2943 = vadd.f32 0.0, %v2942
  %2944 = vmatmul.f32.gmra.mxu0 %v2661
  %v2945 = vpop.f32.mrf.mxu0
  %v2946 = vadd.f32 0.0, %v2945
  %2947 = vmatmul.f32.gmra.mxu0 %v2663
  %v2948 = vpop.f32.mrf.mxu0
  %v2949 = vadd.f32 0.0, %v2948
  %2950 = vmatmul.f32.gmra.mxu0 %v2665
  %v2951 = vpop.f32.mrf.mxu0
  %v2952 = vadd.f32 0.0, %v2951
  %2953 = vmatmul.f32.gmra.mxu0 %v2667
  %v2954 = vpop.f32.mrf.mxu0
  %v2955 = vadd.f32 0.0, %v2954
  %2956 = vmatmul.f32.gmra.mxu0 %v2669
  %v2957 = vpop.f32.mrf.mxu0
  %v2958 = vadd.f32 0.0, %v2957
  %2959 = vmatmul.f32.gmra.mxu0 %v2671
  %v2960 = vpop.f32.mrf.mxu0
  %v2961 = vadd.f32 0.0, %v2960
  %2962 = vmatmul.f32.gmra.mxu0 %v2673
  %v2963 = vpop.f32.mrf.mxu0
  %v2964 = vadd.f32 0.0, %v2963
  %2965 = vmatmul.f32.gmra.mxu0 %v2675
  %v2966 = vpop.f32.mrf.mxu0
  %v2967 = vadd.f32 0.0, %v2966
  %2968 = vmatmul.f32.gmra.mxu0 %v2677
  %v2969 = vpop.f32.mrf.mxu0
  %v2970 = vadd.f32 0.0, %v2969
  %2971 = vmatmul.f32.gmra.mxu0 %v2679
  %v2972 = vpop.f32.mrf.mxu0
  %v2973 = vadd.f32 0.0, %v2972
  %2974 = vmatmul.f32.gmra.mxu0 %v2681
  %v2975 = vpop.f32.mrf.mxu0
  %v2976 = vadd.f32 0.0, %v2975
  %2977 = vmatmul.f32.gmra.mxu0 %v2683
  %v2978 = vpop.f32.mrf.mxu0
  %v2979 = vadd.f32 0.0, %v2978
  %2980 = vmatmul.f32.gmra.mxu0 %v2685
  %v2981 = vpop.f32.mrf.mxu0
  %v2982 = vadd.f32 0.0, %v2981
  %2983 = vmatmul.f32.gmra.mxu0 %v2687
  %v2984 = vpop.f32.mrf.mxu0
  %v2985 = vadd.f32 0.0, %v2984
  %2986 = vmatmul.f32.gmra.mxu0 %v2689
  %v2987 = vpop.f32.mrf.mxu0
  %v2988 = vadd.f32 0.0, %v2987
  %2989 = vmatmul.f32.gmra.mxu0 %v2691
  %v2990 = vpop.f32.mrf.mxu0
  %v2991 = vadd.f32 0.0, %v2990
  %2992 = vmatmul.f32.gmra.mxu0 %v2693
  %v2993 = vpop.f32.mrf.mxu0
  %v2994 = vadd.f32 0.0, %v2993
  %2995 = vmatmul.f32.gmra.mxu0 %v2695
  %v2996 = vpop.f32.mrf.mxu0
  %v2997 = vadd.f32 0.0, %v2996
  %2998 = vmatmul.f32.gmra.mxu0 %v2697
  %v2999 = vpop.f32.mrf.mxu0
  %v3000 = vadd.f32 0.0, %v2999
  %3001 = vmatmul.f32.gmra.mxu0 %v2699
  %v3002 = vpop.f32.mrf.mxu0
  %v3003 = vadd.f32 0.0, %v3002
  %3004 = vmatmul.f32.gmra.mxu0 %v2701
  %v3005 = vpop.f32.mrf.mxu0
  %v3006 = vadd.f32 0.0, %v3005
  %3007 = vmatmul.f32.gmra.mxu0 %v2703
  %v3008 = vpop.f32.mrf.mxu0
  %v3009 = vadd.f32 0.0, %v3008
  %3010 = vmatmul.f32.gmra.mxu0 %v2705
  %v3011 = vpop.f32.mrf.mxu0
  %v3012 = vadd.f32 0.0, %v3011
  %3013 = vmatmul.f32.gmra.mxu0 %v2707
  %v3014 = vpop.f32.mrf.mxu0
  %v3015 = vadd.f32 0.0, %v3014
  %3016 = vmatmul.f32.gmra.mxu0 %v2709
  %v3017 = vpop.f32.mrf.mxu0
  %v3018 = vadd.f32 0.0, %v3017
  %3019 = vmatmul.f32.gmra.mxu0 %v2711
  %v3020 = vpop.f32.mrf.mxu0
  %v3021 = vadd.f32 0.0, %v3020
  %3022 = vmatmul.f32.gmra.mxu0 %v2713
  %v3023 = vpop.f32.mrf.mxu0
  %v3024 = vadd.f32 0.0, %v3023
  %3025 = vmatmul.f32.gmra.mxu0 %v2715
  %v3026 = vpop.f32.mrf.mxu0
  %v3027 = vadd.f32 0.0, %v3026
  %3028 = vmatmul.f32.gmra.mxu0 %v2717
  %v3029 = vpop.f32.mrf.mxu0
  %v3030 = vadd.f32 0.0, %v3029
  %3031 = vmatmul.f32.gmra.mxu0 %v2719
  %v3032 = vpop.f32.mrf.mxu0
  %v3033 = vadd.f32 0.0, %v3032
  %3034 = vmatmul.f32.gmra.mxu0 %v2721
  %v3035 = vpop.f32.mrf.mxu0
  %v3036 = vadd.f32 0.0, %v3035
  %3037 = vmatmul.f32.gmra.mxu0 %v2723
  %v3038 = vpop.f32.mrf.mxu0
  %v3039 = vadd.f32 0.0, %v3038
  %3040 = vmatmul.f32.gmra.mxu0 %v2725
  %v3041 = vpop.f32.mrf.mxu0
  %v3042 = vadd.f32 0.0, %v3041
  %3043 = vmatmul.f32.gmra.mxu0 %v2727
  %v3044 = vpop.f32.mrf.mxu0
  %v3045 = vadd.f32 0.0, %v3044
  %3046 = vmatmul.f32.gmra.mxu0 %v2729
  %v3047 = vpop.f32.mrf.mxu0
  %v3048 = vadd.f32 0.0, %v3047
  %3049 = vmatmul.f32.gmra.mxu0 %v2731
  %v3050 = vpop.f32.mrf.mxu0
  %v3051 = vadd.f32 0.0, %v3050
  %3052 = vmatmul.f32.gmra.mxu0 %v2733
  %v3053 = vpop.f32.mrf.mxu0
  %v3054 = vadd.f32 0.0, %v3053
  %3055 = vmatmul.f32.gmra.mxu0 %v2735
  %v3056 = vpop.f32.mrf.mxu0
  %v3057 = vadd.f32 0.0, %v3056
  %3058 = vmatmul.f32.gmra.mxu0 %v2737
  %v3059 = vpop.f32.mrf.mxu0
  %v3060 = vadd.f32 0.0, %v3059
  %3061 = vmatmul.f32.gmra.mxu0 %v2739
  %v3062 = vpop.f32.mrf.mxu0
  %v3063 = vadd.f32 0.0, %v3062
  %3064 = vmatmul.f32.gmra.mxu0 %v2741
  %v3065 = vpop.f32.mrf.mxu0
  %v3066 = vadd.f32 0.0, %v3065
  %3067 = vmatmul.f32.gmra.mxu0 %v2743
  %v3068 = vpop.f32.mrf.mxu0
  %v3069 = vadd.f32 0.0, %v3068
  %3070 = vmatmul.f32.gmra.mxu0 %v2745
  %v3071 = vpop.f32.mrf.mxu0
  %v3072 = vadd.f32 0.0, %v3071
  %3073 = vmatmul.f32.gmra.mxu0 %v2747
  %v3074 = vpop.f32.mrf.mxu0
  %v3075 = vadd.f32 0.0, %v3074
  %3076 = vmatmul.f32.gmra.mxu0 %v2749
  %v3077 = vpop.f32.mrf.mxu0
  %v3078 = vadd.f32 0.0, %v3077
  %3079 = vmatmul.f32.gmra.mxu0 %v2751
  %v3080 = vpop.f32.mrf.mxu0
  %v3081 = vadd.f32 0.0, %v3080
  %3082 = vmatmul.f32.gmra.mxu0 %v2753
  %v3083 = vpop.f32.mrf.mxu0
  %v3084 = vadd.f32 0.0, %v3083
  %3085 = vmatmul.f32.gmra.mxu0 %v2755
  %v3086 = vpop.f32.mrf.mxu0
  %v3087 = vadd.f32 0.0, %v3086
  %3088 = vmatmul.f32.gmra.mxu0 %v2757
  %v3089 = vpop.f32.mrf.mxu0
  %v3090 = vadd.f32 0.0, %v3089
  %3091 = vmatmul.f32.gmra.mxu0 %v2759
  %v3092 = vpop.f32.mrf.mxu0
  %v3093 = vadd.f32 0.0, %v3092
  %3094 = vmatmul.f32.gmra.mxu0 %v2761
  %v3095 = vpop.f32.mrf.mxu0
  %v3096 = vadd.f32 0.0, %v3095
  %3097 = vmatmul.f32.gmra.mxu0 %v2763
  %v3098 = vpop.f32.mrf.mxu0
  %v3099 = vadd.f32 0.0, %v3098
  %3100 = vmatmul.f32.gmra.mxu0 %v2765
  %v3101 = vpop.f32.mrf.mxu0
  %v3102 = vadd.f32 0.0, %v3101
  %3103 = vmatmul.f32.gmra.mxu0 %v2767
  %v3104 = vpop.f32.mrf.mxu0
  %v3105 = vadd.f32 0.0, %v3104
  %3106 = vmatmul.f32.gmra.mxu0 %v2769
  %v3107 = vpop.f32.mrf.mxu0
  %v3108 = vadd.f32 0.0, %v3107
  %3109 = vmatmul.f32.gmra.mxu0 %v2771
  %v3110 = vpop.f32.mrf.mxu0
  %v3111 = vadd.f32 0.0, %v3110
  %3112 = vmatmul.f32.gmra.mxu0 %v2773
  %v3113 = vpop.f32.mrf.mxu0
  %v3114 = vadd.f32 0.0, %v3113
  %3115 = vmatmul.f32.gmra.mxu0 %v2775
  %v3116 = vpop.f32.mrf.mxu0
  %v3117 = vadd.f32 0.0, %v3116
  %3118 = vmatmul.f32.gmra.mxu0 %v2777
  %v3119 = vpop.f32.mrf.mxu0
  %v3120 = vadd.f32 0.0, %v3119
  %3121 = vmatmul.f32.gmra.mxu0 %v2779
  %v3122 = vpop.f32.mrf.mxu0
  %v3123 = vadd.f32 0.0, %v3122
  %3124 = vmatmul.f32.gmra.mxu0 %v2781
  %v3125 = vpop.f32.mrf.mxu0
  %v3126 = vadd.f32 0.0, %v3125
  %3127 = vmatmul.f32.gmra.mxu0 %v2783
  %v3128 = vpop.f32.mrf.mxu0
  %v3129 = vadd.f32 0.0, %v3128
  %3130 = vmatmul.f32.gmra.mxu0 %v2785
  %v3131 = vpop.f32.mrf.mxu0
  %v3132 = vadd.f32 0.0, %v3131
  %3133 = vmatmul.f32.gmra.mxu0 %v2787
  %v3134 = vpop.f32.mrf.mxu0
  %v3135 = vadd.f32 0.0, %v3134
  %3136 = vmatmul.f32.gmra.mxu0 %v2789
  %v3137 = vpop.f32.mrf.mxu0
  %v3138 = vadd.f32 0.0, %v3137
  %3139 = vmatmul.f32.gmra.mxu0 %v2791
  %v3140 = vpop.f32.mrf.mxu0
  %v3141 = vadd.f32 0.0, %v3140
  %3142 = vmatmul.f32.gmra.mxu0 %v2793
  %v3143 = vpop.f32.mrf.mxu0
  %v3144 = vadd.f32 0.0, %v3143
  %3145 = vmatmul.f32.gmra.mxu0 %v2795
  %v3146 = vpop.f32.mrf.mxu0
  %v3147 = vadd.f32 0.0, %v3146
  %3148 = vmatmul.f32.gmra.mxu0 %v2797
  %v3149 = vpop.f32.mrf.mxu0
  %v3150 = vadd.f32 0.0, %v3149
  %3151 = vmatmul.f32.gmra.mxu0 %v2799
  %v3152 = vpop.f32.mrf.mxu0
  %v3153 = vadd.f32 0.0, %v3152
  %3154 = vmatmul.f32.gmra.mxu0 %v2801
  %v3155 = vpop.f32.mrf.mxu0
  %v3156 = vadd.f32 0.0, %v3155
  %3157 = vmatmul.f32.gmra.mxu0 %v2803
  %v3158 = vpop.f32.mrf.mxu0
  %v3159 = vadd.f32 0.0, %v3158
  %3160 = vmatmul.f32.gmra.mxu0 %v2805
  %v3161 = vpop.f32.mrf.mxu0
  %v3162 = vadd.f32 0.0, %v3161
  %3163 = vmatmul.f32.gmra.mxu0 %v2807
  %v3164 = vpop.f32.mrf.mxu0
  %v3165 = vadd.f32 0.0, %v3164
  %3166 = vmatmul.f32.gmra.mxu0 %v2809
  %v3167 = vpop.f32.mrf.mxu0
  %v3168 = vadd.f32 0.0, %v3167
  %3169 = vmatmul.f32.gmra.mxu0 %v2811
  %v3170 = vpop.f32.mrf.mxu0
  %v3171 = vadd.f32 0.0, %v3170
  %3172 = vmatmul.f32.gmra.mxu0 %v2813
  %v3173 = vpop.f32.mrf.mxu0
  %v3174 = vadd.f32 0.0, %v3173
  %3175 = vmatmul.f32.gmra.mxu0 %v2815
  %v3176 = vpop.f32.mrf.mxu0
  %v3177 = vadd.f32 0.0, %v3176
  %3178 = vmatmul.f32.gmra.mxu0 %v2817
  %v3179 = vpop.f32.mrf.mxu0
  %v3180 = vadd.f32 0.0, %v3179
  %3181 = vmatmul.f32.gmra.mxu0 %v2819
  %v3182 = vpop.f32.mrf.mxu0
  %v3183 = vadd.f32 0.0, %v3182
  %3184 = vmatmul.f32.gmra.mxu0 %v2821
  %v3185 = vpop.f32.mrf.mxu0
  %v3186 = vadd.f32 0.0, %v3185
  %3187 = vmatmul.f32.gmra.mxu0 %v2823
  %v3188 = vpop.f32.mrf.mxu0
  %v3189 = vadd.f32 0.0, %v3188
  %3190 = vmatmul.f32.gmra.mxu0 %v2825
  %v3191 = vpop.f32.mrf.mxu0
  %v3192 = vadd.f32 0.0, %v3191
  %3193 = vmatmul.f32.gmra.mxu0 %v2827
  %v3194 = vpop.f32.mrf.mxu0
  %v3195 = vadd.f32 0.0, %v3194
  %3196 = vmatmul.f32.gmra.mxu0 %v2829
  %v3197 = vpop.f32.mrf.mxu0
  %v3198 = vadd.f32 0.0, %v3197
  %3199 = vmatmul.f32.gmra.mxu0 %v2831
  %v3200 = vpop.f32.mrf.mxu0
  %v3201 = vadd.f32 0.0, %v3200
  %3202 = vmatmul.f32.gmra.mxu0 %v2833
  %v3203 = vpop.f32.mrf.mxu0
  %v3204 = vadd.f32 0.0, %v3203
  %3205 = vmatmul.f32.gmra.mxu0 %v2835
  %v3206 = vpop.f32.mrf.mxu0
  %v3207 = vadd.f32 0.0, %v3206
  %3208 = vmatmul.f32.gmra.mxu0 %v2837
  %v3209 = vpop.f32.mrf.mxu0
  %v3210 = vadd.f32 0.0, %v3209
  %3211 = vmatmul.f32.gmra.mxu0 %v2839
  %v3212 = vpop.f32.mrf.mxu0
  %v3213 = vadd.f32 0.0, %v3212
  %3214 = vmatmul.f32.gmra.mxu0 %v2841
  %v3215 = vpop.f32.mrf.mxu0
  %v3216 = vadd.f32 0.0, %v3215
  %3217 = vmatmul.f32.gmra.mxu0 %v2843
  %v3218 = vpop.f32.mrf.mxu0
  %v3219 = vadd.f32 0.0, %v3218
  %3220 = vmatmul.f32.gmra.mxu0 %v2845
  %v3221 = vpop.f32.mrf.mxu0
  %v3222 = vadd.f32 0.0, %v3221
  %3223 = vmatmul.f32.gmra.mxu0 %v2847
  %v3224 = vpop.f32.mrf.mxu0
  %v3225 = vadd.f32 0.0, %v3224
  %3226 = vmatmul.f32.gmra.mxu0 %v2849
  %v3227 = vpop.f32.mrf.mxu0
  %v3228 = vadd.f32 0.0, %v3227
  %3229 = vmatmul.f32.gmra.mxu0 %v2851
  %v3230 = vpop.f32.mrf.mxu0
  %v3231 = vadd.f32 0.0, %v3230
  %3232 = vmatmul.f32.gmra.mxu0 %v2853
  %v3233 = vpop.f32.mrf.mxu0
  %v3234 = vadd.f32 0.0, %v3233
  %3235 = vmatmul.f32.gmra.mxu0 %v2855
  %v3236 = vpop.f32.mrf.mxu0
  %v3237 = vadd.f32 0.0, %v3236
  %3238 = vmatmul.f32.gmra.mxu0 %v2857
  %v3239 = vpop.f32.mrf.mxu0
  %v3240 = vadd.f32 0.0, %v3239
  %3241 = vmatmul.f32.gmra.mxu0 %v2859
  %v3242 = vpop.f32.mrf.mxu0
  %v3243 = vadd.f32 0.0, %v3242
  %3244 = vmatmul.f32.gmra.mxu0 %v2861
  %v3245 = vpop.f32.mrf.mxu0
  %v3246 = vadd.f32 0.0, %v3245
  %3247 = vmatmul.f32.gmra.mxu0 %v2863
  %v3248 = vpop.f32.mrf.mxu0
  %v3249 = vadd.f32 0.0, %v3248
  %3250 = vmatmul.f32.gmra.mxu0 %v2865
  %v3251 = vpop.f32.mrf.mxu0
  %v3252 = vadd.f32 0.0, %v3251
  %3253 = vmatmul.f32.gmra.mxu0 %v2867
  %v3254 = vpop.f32.mrf.mxu0
  %v3255 = vadd.f32 0.0, %v3254
  %3256 = vmatmul.f32.gmra.mxu0 %v2869
  %v3257 = vpop.f32.mrf.mxu0
  %v3258 = vadd.f32 0.0, %v3257
  %3259 = vmatmul.f32.gmra.mxu0 %v2871
  %v3260 = vpop.f32.mrf.mxu0
  %v3261 = vadd.f32 0.0, %v3260
  %3262 = vmatmul.f32.gmra.mxu0 %v2873
  %v3263 = vpop.f32.mrf.mxu0
  %v3264 = vadd.f32 0.0, %v3263
  %3265 = vmatmul.f32.gmra.mxu0 %v2875
  %v3266 = vpop.f32.mrf.mxu0
  %v3267 = vadd.f32 0.0, %v3266
  %3268 = vmatmul.f32.gmra.mxu0 %v2877
  %v3269 = vpop.f32.mrf.mxu0
  %v3270 = vadd.f32 0.0, %v3269
  %3271 = vmatmul.f32.gmra.mxu0 %v2879
  %v3272 = vpop.f32.mrf.mxu0
  %v3273 = vadd.f32 0.0, %v3272
  %3274 = vmatmul.f32.gmra.mxu0 %v2881
  %v3275 = vpop.f32.mrf.mxu0
  %v3276 = vadd.f32 0.0, %v3275
  %3277 = vmatmul.f32.gmra.mxu0 %v2883
  %v3278 = vpop.f32.mrf.mxu0
  %v3279 = vadd.f32 0.0, %v3278
  %3280 = vmatmul.f32.gmra.mxu0 %v2885
  %v3281 = vpop.f32.mrf.mxu0
  %v3282 = vadd.f32 0.0, %v3281
  %3283 = vmatmul.f32.gmra.mxu0 %v2887
  %v3284 = vpop.f32.mrf.mxu0
  %v3285 = vadd.f32 0.0, %v3284
  %3286 = vmatmul.f32.gmra.mxu0 %v2889
  %v3287 = vpop.f32.mrf.mxu0
  %v3288 = vadd.f32 0.0, %v3287
  %3289 = vmatmul.f32.gmra.mxu0 %v2891
  %v3290 = vpop.f32.mrf.mxu0
  %v3291 = vadd.f32 0.0, %v3290
  %3292 = vdwg.mxu0
  %v3293 = vrcp.pop %v2910
  %v3294 = vrcp.pop %v2913
  %v3295 = vrcp.pop %v2916
  %v3296 = vrcp.pop %v2919
  %v3297 = vrcp.pop %v2922
  %v3298 = vrcp.pop %v2925
  %v3299 = vrcp.pop %v2928
  %v3300 = vrcp.pop %v2931
  %v3301 = vrcp.pop %v2934
  %v3302 = vrcp.pop %v2937
  %v3303 = vrcp.pop %v2940
  %v3304 = vrcp.pop %v2943
  %v3305 = vrcp.pop %v2946
  %v3306 = vrcp.pop %v2949
  %v3307 = vrcp.pop %v2952
  %v3308 = vrcp.pop %v2955
  %v3309 = vrcp.pop %v2958
  %v3310 = vrcp.pop %v2961
  %v3311 = vrcp.pop %v2964
  %v3312 = vrcp.pop %v2967
  %v3313 = vrcp.pop %v2970
  %v3314 = vrcp.pop %v2973
  %v3315 = vrcp.pop %v2976
  %v3316 = vrcp.pop %v2979
  %v3317 = vrcp.pop %v2982
  %v3318 = vrcp.pop %v2985
  %v3319 = vrcp.pop %v2988
  %v3320 = vrcp.pop %v2991
  %v3321 = vrcp.pop %v2994
  %v3322 = vrcp.pop %v2997
  %v3323 = vrcp.pop %v3000
  %v3324 = vrcp.pop %v3003
  %v3325 = vrcp.pop %v3006
  %v3326 = vrcp.pop %v3009
  %v3327 = vrcp.pop %v3012
  %v3328 = vrcp.pop %v3015
  %v3329 = vrcp.pop %v3018
  %v3330 = vrcp.pop %v3021
  %v3331 = vrcp.pop %v3024
  %v3332 = vrcp.pop %v3027
  %v3333 = vrcp.pop %v3030
  %v3334 = vrcp.pop %v3033
  %v3335 = vrcp.pop %v3036
  %v3336 = vrcp.pop %v3039
  %v3337 = vrcp.pop %v3042
  %v3338 = vrcp.pop %v3045
  %v3339 = vrcp.pop %v3048
  %v3340 = vrcp.pop %v3051
  %v3341 = vrcp.pop %v3054
  %v3342 = vrcp.pop %v3057
  %v3343 = vrcp.pop %v3060
  %v3344 = vrcp.pop %v3063
  %v3345 = vrcp.pop %v3066
  %v3346 = vrcp.pop %v3069
  %v3347 = vrcp.pop %v3072
  %v3348 = vrcp.pop %v3075
  %v3349 = vrcp.pop %v3078
  %v3350 = vrcp.pop %v3081
  %v3351 = vrcp.pop %v3084
  %v3352 = vrcp.pop %v3087
  %v3353 = vrcp.pop %v3090
  %v3354 = vrcp.pop %v3093
  %v3355 = vrcp.pop %v3096
  %v3356 = vrcp.pop %v3099
  %v3357 = vrcp.pop %v3102
  %v3358 = vrcp.pop %v3105
  %v3359 = vrcp.pop %v3108
  %v3360 = vrcp.pop %v3111
  %v3361 = vrcp.pop %v3114
  %v3362 = vrcp.pop %v3117
  %v3363 = vrcp.pop %v3120
  %v3364 = vrcp.pop %v3123
  %v3365 = vrcp.pop %v3126
  %v3366 = vrcp.pop %v3129
  %v3367 = vrcp.pop %v3132
  %v3368 = vrcp.pop %v3135
  %v3369 = vrcp.pop %v3138
  %v3370 = vrcp.pop %v3141
  %v3371 = vrcp.pop %v3144
  %v3372 = vrcp.pop %v3147
  %v3373 = vrcp.pop %v3150
  %v3374 = vrcp.pop %v3153
  %v3375 = vrcp.pop %v3156
  %v3376 = vrcp.pop %v3159
  %v3377 = vrcp.pop %v3162
  %v3378 = vrcp.pop %v3165
  %v3379 = vrcp.pop %v3168
  %v3380 = vrcp.pop %v3171
  %v3381 = vrcp.pop %v3174
  %v3382 = vrcp.pop %v3177
  %v3383 = vrcp.pop %v3180
  %v3384 = vrcp.pop %v3183
  %v3385 = vrcp.pop %v3186
  %v3386 = vrcp.pop %v3189
  %v3387 = vrcp.pop %v3192
  %v3388 = vrcp.pop %v3195
  %v3389 = vrcp.pop %v3198
  %v3390 = vrcp.pop %v3201
  %v3391 = vrcp.pop %v3204
  %v3392 = vrcp.pop %v3207
  %v3393 = vrcp.pop %v3210
  %v3394 = vrcp.pop %v3213
  %v3395 = vrcp.pop %v3216
  %v3396 = vrcp.pop %v3219
  %v3397 = vrcp.pop %v3222
  %v3398 = vrcp.pop %v3225
  %v3399 = vrcp.pop %v3228
  %v3400 = vrcp.pop %v3231
  %v3401 = vrcp.pop %v3234
  %v3402 = vrcp.pop %v3237
  %v3403 = vrcp.pop %v3240
  %v3404 = vrcp.pop %v3243
  %v3405 = vrcp.pop %v3246
  %v3406 = vrcp.pop %v3249
  %v3407 = vrcp.pop %v3252
  %v3408 = vrcp.pop %v3255
  %v3409 = vrcp.pop %v3258
  %v3410 = vrcp.pop %v3261
  %v3411 = vrcp.pop %v3264
  %v3412 = vrcp.pop %v3267
  %v3413 = vrcp.pop %v3270
  %v3414 = vrcp.pop %v3273
  %v3415 = vrcp.pop %v3276
  %v3416 = vrcp.pop %v3279
  %v3417 = vrcp.pop %v3282
  %v3418 = vrcp.pop %v3285
  %v3419 = vrcp.pop %v3288
  %v3420 = vrcp.pop %v3291
  %v3421 = vmul.f32 %v2910, %v3293
  %v3422 = vmul.f32 %v2913, %v3294
  %v3423 = vmul.f32 %v2916, %v3295
  %v3424 = vmul.f32 %v2919, %v3296
  %v3425 = vmul.f32 %v2922, %v3297
  %v3426 = vmul.f32 %v2925, %v3298
  %v3427 = vmul.f32 %v2928, %v3299
  %v3428 = vmul.f32 %v2931, %v3300
  %v3429 = vmul.f32 %v2934, %v3301
  %v3430 = vmul.f32 %v2937, %v3302
  %v3431 = vmul.f32 %v2940, %v3303
  %v3432 = vmul.f32 %v2943, %v3304
  %v3433 = vmul.f32 %v2946, %v3305
  %v3434 = vmul.f32 %v2949, %v3306
  %v3435 = vmul.f32 %v2952, %v3307
  %v3436 = vmul.f32 %v2955, %v3308
  %v3437 = vmul.f32 %v2958, %v3309
  %v3438 = vmul.f32 %v2961, %v3310
  %v3439 = vmul.f32 %v2964, %v3311
  %v3440 = vmul.f32 %v2967, %v3312
  %v3441 = vmul.f32 %v2970, %v3313
  %v3442 = vmul.f32 %v2973, %v3314
  %v3443 = vmul.f32 %v2976, %v3315
  %v3444 = vmul.f32 %v2979, %v3316
  %v3445 = vmul.f32 %v2982, %v3317
  %v3446 = vmul.f32 %v2985, %v3318
  %v3447 = vmul.f32 %v2988, %v3319
  %v3448 = vmul.f32 %v2991, %v3320
  %v3449 = vmul.f32 %v2994, %v3321
  %v3450 = vmul.f32 %v2997, %v3322
  %v3451 = vmul.f32 %v3000, %v3323
  %v3452 = vmul.f32 %v3003, %v3324
  %v3453 = vmul.f32 %v3006, %v3325
  %v3454 = vmul.f32 %v3009, %v3326
  %v3455 = vmul.f32 %v3012, %v3327
  %v3456 = vmul.f32 %v3015, %v3328
  %v3457 = vmul.f32 %v3018, %v3329
  %v3458 = vmul.f32 %v3021, %v3330
  %v3459 = vmul.f32 %v3024, %v3331
  %v3460 = vmul.f32 %v3027, %v3332
  %v3461 = vmul.f32 %v3030, %v3333
  %v3462 = vmul.f32 %v3033, %v3334
  %v3463 = vmul.f32 %v3036, %v3335
  %v3464 = vmul.f32 %v3039, %v3336
  %v3465 = vmul.f32 %v3042, %v3337
  %v3466 = vmul.f32 %v3045, %v3338
  %v3467 = vmul.f32 %v3048, %v3339
  %v3468 = vmul.f32 %v3051, %v3340
  %v3469 = vmul.f32 %v3054, %v3341
  %v3470 = vmul.f32 %v3057, %v3342
  %v3471 = vmul.f32 %v3060, %v3343
  %v3472 = vmul.f32 %v3063, %v3344
  %v3473 = vmul.f32 %v3066, %v3345
  %v3474 = vmul.f32 %v3069, %v3346
  %v3475 = vmul.f32 %v3072, %v3347
  %v3476 = vmul.f32 %v3075, %v3348
  %v3477 = vmul.f32 %v3078, %v3349
  %v3478 = vmul.f32 %v3081, %v3350
  %v3479 = vmul.f32 %v3084, %v3351
  %v3480 = vmul.f32 %v3087, %v3352
  %v3481 = vmul.f32 %v3090, %v3353
  %v3482 = vmul.f32 %v3093, %v3354
  %v3483 = vmul.f32 %v3096, %v3355
  %v3484 = vmul.f32 %v3099, %v3356
  %v3485 = vmul.f32 %v3102, %v3357
  %v3486 = vmul.f32 %v3105, %v3358
  %v3487 = vmul.f32 %v3108, %v3359
  %v3488 = vmul.f32 %v3111, %v3360
  %v3489 = vmul.f32 %v3114, %v3361
  %v3490 = vmul.f32 %v3117, %v3362
  %v3491 = vmul.f32 %v3120, %v3363
  %v3492 = vmul.f32 %v3123, %v3364
  %v3493 = vmul.f32 %v3126, %v3365
  %v3494 = vmul.f32 %v3129, %v3366
  %v3495 = vmul.f32 %v3132, %v3367
  %v3496 = vmul.f32 %v3135, %v3368
  %v3497 = vmul.f32 %v3138, %v3369
  %v3498 = vmul.f32 %v3141, %v3370
  %v3499 = vmul.f32 %v3144, %v3371
  %v3500 = vmul.f32 %v3147, %v3372
  %v3501 = vmul.f32 %v3150, %v3373
  %v3502 = vmul.f32 %v3153, %v3374
  %v3503 = vmul.f32 %v3156, %v3375
  %v3504 = vmul.f32 %v3159, %v3376
  %v3505 = vmul.f32 %v3162, %v3377
  %v3506 = vmul.f32 %v3165, %v3378
  %v3507 = vmul.f32 %v3168, %v3379
  %v3508 = vmul.f32 %v3171, %v3380
  %v3509 = vmul.f32 %v3174, %v3381
  %v3510 = vmul.f32 %v3177, %v3382
  %v3511 = vmul.f32 %v3180, %v3383
  %v3512 = vmul.f32 %v3183, %v3384
  %v3513 = vmul.f32 %v3186, %v3385
  %v3514 = vmul.f32 %v3189, %v3386
  %v3515 = vmul.f32 %v3192, %v3387
  %v3516 = vmul.f32 %v3195, %v3388
  %v3517 = vmul.f32 %v3198, %v3389
  %v3518 = vmul.f32 %v3201, %v3390
  %v3519 = vmul.f32 %v3204, %v3391
  %v3520 = vmul.f32 %v3207, %v3392
  %v3521 = vmul.f32 %v3210, %v3393
  %v3522 = vmul.f32 %v3213, %v3394
  %v3523 = vmul.f32 %v3216, %v3395
  %v3524 = vmul.f32 %v3219, %v3396
  %v3525 = vmul.f32 %v3222, %v3397
  %v3526 = vmul.f32 %v3225, %v3398
  %v3527 = vmul.f32 %v3228, %v3399
  %v3528 = vmul.f32 %v3231, %v3400
  %v3529 = vmul.f32 %v3234, %v3401
  %v3530 = vmul.f32 %v3237, %v3402
  %v3531 = vmul.f32 %v3240, %v3403
  %v3532 = vmul.f32 %v3243, %v3404
  %v3533 = vmul.f32 %v3246, %v3405
  %v3534 = vmul.f32 %v3249, %v3406
  %v3535 = vmul.f32 %v3252, %v3407
  %v3536 = vmul.f32 %v3255, %v3408
  %v3537 = vmul.f32 %v3258, %v3409
  %v3538 = vmul.f32 %v3261, %v3410
  %v3539 = vmul.f32 %v3264, %v3411
  %v3540 = vmul.f32 %v3267, %v3412
  %v3541 = vmul.f32 %v3270, %v3413
  %v3542 = vmul.f32 %v3273, %v3414
  %v3543 = vmul.f32 %v3276, %v3415
  %v3544 = vmul.f32 %v3279, %v3416
  %v3545 = vmul.f32 %v3282, %v3417
  %v3546 = vmul.f32 %v3285, %v3418
  %v3547 = vmul.f32 %v3288, %v3419
  %v3548 = vmul.f32 %v3291, %v3420
  %v3549 = vsub.f32 2.0, %v3421
  %v3550 = vsub.f32 2.0, %v3422
  %v3551 = vsub.f32 2.0, %v3423
  %v3552 = vsub.f32 2.0, %v3424
  %v3553 = vsub.f32 2.0, %v3425
  %v3554 = vsub.f32 2.0, %v3426
  %v3555 = vsub.f32 2.0, %v3427
  %v3556 = vsub.f32 2.0, %v3428
  %v3557 = vsub.f32 2.0, %v3429
  %v3558 = vsub.f32 2.0, %v3430
  %v3559 = vsub.f32 2.0, %v3431
  %v3560 = vsub.f32 2.0, %v3432
  %v3561 = vsub.f32 2.0, %v3433
  %v3562 = vsub.f32 2.0, %v3434
  %v3563 = vsub.f32 2.0, %v3435
  %v3564 = vsub.f32 2.0, %v3436
  %v3565 = vsub.f32 2.0, %v3437
  %v3566 = vsub.f32 2.0, %v3438
  %v3567 = vsub.f32 2.0, %v3439
  %v3568 = vsub.f32 2.0, %v3440
  %v3569 = vsub.f32 2.0, %v3441
  %v3570 = vsub.f32 2.0, %v3442
  %v3571 = vsub.f32 2.0, %v3443
  %v3572 = vsub.f32 2.0, %v3444
  %v3573 = vsub.f32 2.0, %v3445
  %v3574 = vsub.f32 2.0, %v3446
  %v3575 = vsub.f32 2.0, %v3447
  %v3576 = vsub.f32 2.0, %v3448
  %v3577 = vsub.f32 2.0, %v3449
  %v3578 = vsub.f32 2.0, %v3450
  %v3579 = vsub.f32 2.0, %v3451
  %v3580 = vsub.f32 2.0, %v3452
  %v3581 = vsub.f32 2.0, %v3453
  %v3582 = vsub.f32 2.0, %v3454
  %v3583 = vsub.f32 2.0, %v3455
  %v3584 = vsub.f32 2.0, %v3456
  %v3585 = vsub.f32 2.0, %v3457
  %v3586 = vsub.f32 2.0, %v3458
  %v3587 = vsub.f32 2.0, %v3459
  %v3588 = vsub.f32 2.0, %v3460
  %v3589 = vsub.f32 2.0, %v3461
  %v3590 = vsub.f32 2.0, %v3462
  %v3591 = vsub.f32 2.0, %v3463
  %v3592 = vsub.f32 2.0, %v3464
  %v3593 = vsub.f32 2.0, %v3465
  %v3594 = vsub.f32 2.0, %v3466
  %v3595 = vsub.f32 2.0, %v3467
  %v3596 = vsub.f32 2.0, %v3468
  %v3597 = vsub.f32 2.0, %v3469
  %v3598 = vsub.f32 2.0, %v3470
  %v3599 = vsub.f32 2.0, %v3471
  %v3600 = vsub.f32 2.0, %v3472
  %v3601 = vsub.f32 2.0, %v3473
  %v3602 = vsub.f32 2.0, %v3474
  %v3603 = vsub.f32 2.0, %v3475
  %v3604 = vsub.f32 2.0, %v3476
  %v3605 = vsub.f32 2.0, %v3477
  %v3606 = vsub.f32 2.0, %v3478
  %v3607 = vsub.f32 2.0, %v3479
  %v3608 = vsub.f32 2.0, %v3480
  %v3609 = vsub.f32 2.0, %v3481
  %v3610 = vsub.f32 2.0, %v3482
  %v3611 = vsub.f32 2.0, %v3483
  %v3612 = vsub.f32 2.0, %v3484
  %v3613 = vsub.f32 2.0, %v3485
  %v3614 = vsub.f32 2.0, %v3486
  %v3615 = vsub.f32 2.0, %v3487
  %v3616 = vsub.f32 2.0, %v3488
  %v3617 = vsub.f32 2.0, %v3489
  %v3618 = vsub.f32 2.0, %v3490
  %v3619 = vsub.f32 2.0, %v3491
  %v3620 = vsub.f32 2.0, %v3492
  %v3621 = vsub.f32 2.0, %v3493
  %v3622 = vsub.f32 2.0, %v3494
  %v3623 = vsub.f32 2.0, %v3495
  %v3624 = vsub.f32 2.0, %v3496
  %v3625 = vsub.f32 2.0, %v3497
  %v3626 = vsub.f32 2.0, %v3498
  %v3627 = vsub.f32 2.0, %v3499
  %v3628 = vsub.f32 2.0, %v3500
  %v3629 = vsub.f32 2.0, %v3501
  %v3630 = vsub.f32 2.0, %v3502
  %v3631 = vsub.f32 2.0, %v3503
  %v3632 = vsub.f32 2.0, %v3504
  %v3633 = vsub.f32 2.0, %v3505
  %v3634 = vsub.f32 2.0, %v3506
  %v3635 = vsub.f32 2.0, %v3507
  %v3636 = vsub.f32 2.0, %v3508
  %v3637 = vsub.f32 2.0, %v3509
  %v3638 = vsub.f32 2.0, %v3510
  %v3639 = vsub.f32 2.0, %v3511
  %v3640 = vsub.f32 2.0, %v3512
  %v3641 = vsub.f32 2.0, %v3513
  %v3642 = vsub.f32 2.0, %v3514
  %v3643 = vsub.f32 2.0, %v3515
  %v3644 = vsub.f32 2.0, %v3516
  %v3645 = vsub.f32 2.0, %v3517
  %v3646 = vsub.f32 2.0, %v3518
  %v3647 = vsub.f32 2.0, %v3519
  %v3648 = vsub.f32 2.0, %v3520
  %v3649 = vsub.f32 2.0, %v3521
  %v3650 = vsub.f32 2.0, %v3522
  %v3651 = vsub.f32 2.0, %v3523
  %v3652 = vsub.f32 2.0, %v3524
  %v3653 = vsub.f32 2.0, %v3525
  %v3654 = vsub.f32 2.0, %v3526
  %v3655 = vsub.f32 2.0, %v3527
  %v3656 = vsub.f32 2.0, %v3528
  %v3657 = vsub.f32 2.0, %v3529
  %v3658 = vsub.f32 2.0, %v3530
  %v3659 = vsub.f32 2.0, %v3531
  %v3660 = vsub.f32 2.0, %v3532
  %v3661 = vsub.f32 2.0, %v3533
  %v3662 = vsub.f32 2.0, %v3534
  %v3663 = vsub.f32 2.0, %v3535
  %v3664 = vsub.f32 2.0, %v3536
  %v3665 = vsub.f32 2.0, %v3537
  %v3666 = vsub.f32 2.0, %v3538
  %v3667 = vsub.f32 2.0, %v3539
  %v3668 = vsub.f32 2.0, %v3540
  %v3669 = vsub.f32 2.0, %v3541
  %v3670 = vsub.f32 2.0, %v3542
  %v3671 = vsub.f32 2.0, %v3543
  %v3672 = vsub.f32 2.0, %v3544
  %v3673 = vsub.f32 2.0, %v3545
  %v3674 = vsub.f32 2.0, %v3546
  %v3675 = vsub.f32 2.0, %v3547
  %v3676 = vsub.f32 2.0, %v3548
  %v3677 = vmul.f32 %v3293, %v3549
  %v3678 = vmul.f32 %v3294, %v3550
  %v3679 = vmul.f32 %v3295, %v3551
  %v3680 = vmul.f32 %v3296, %v3552
  %v3681 = vmul.f32 %v3297, %v3553
  %v3682 = vmul.f32 %v3298, %v3554
  %v3683 = vmul.f32 %v3299, %v3555
  %v3684 = vmul.f32 %v3300, %v3556
  %v3685 = vmul.f32 %v3301, %v3557
  %v3686 = vmul.f32 %v3302, %v3558
  %v3687 = vmul.f32 %v3303, %v3559
  %v3688 = vmul.f32 %v3304, %v3560
  %v3689 = vmul.f32 %v3305, %v3561
  %v3690 = vmul.f32 %v3306, %v3562
  %v3691 = vmul.f32 %v3307, %v3563
  %v3692 = vmul.f32 %v3308, %v3564
  %v3693 = vmul.f32 %v3309, %v3565
  %v3694 = vmul.f32 %v3310, %v3566
  %v3695 = vmul.f32 %v3311, %v3567
  %v3696 = vmul.f32 %v3312, %v3568
  %v3697 = vmul.f32 %v3313, %v3569
  %v3698 = vmul.f32 %v3314, %v3570
  %v3699 = vmul.f32 %v3315, %v3571
  %v3700 = vmul.f32 %v3316, %v3572
  %v3701 = vmul.f32 %v3317, %v3573
  %v3702 = vmul.f32 %v3318, %v3574
  %v3703 = vmul.f32 %v3319, %v3575
  %v3704 = vmul.f32 %v3320, %v3576
  %v3705 = vmul.f32 %v3321, %v3577
  %v3706 = vmul.f32 %v3322, %v3578
  %v3707 = vmul.f32 %v3323, %v3579
  %v3708 = vmul.f32 %v3324, %v3580
  %v3709 = vmul.f32 %v3325, %v3581
  %v3710 = vmul.f32 %v3326, %v3582
  %v3711 = vmul.f32 %v3327, %v3583
  %v3712 = vmul.f32 %v3328, %v3584
  %v3713 = vmul.f32 %v3329, %v3585
  %v3714 = vmul.f32 %v3330, %v3586
  %v3715 = vmul.f32 %v3331, %v3587
  %v3716 = vmul.f32 %v3332, %v3588
  %v3717 = vmul.f32 %v3333, %v3589
  %v3718 = vmul.f32 %v3334, %v3590
  %v3719 = vmul.f32 %v3335, %v3591
  %v3720 = vmul.f32 %v3336, %v3592
  %v3721 = vmul.f32 %v3337, %v3593
  %v3722 = vmul.f32 %v3338, %v3594
  %v3723 = vmul.f32 %v3339, %v3595
  %v3724 = vmul.f32 %v3340, %v3596
  %v3725 = vmul.f32 %v3341, %v3597
  %v3726 = vmul.f32 %v3342, %v3598
  %v3727 = vmul.f32 %v3343, %v3599
  %v3728 = vmul.f32 %v3344, %v3600
  %v3729 = vmul.f32 %v3345, %v3601
  %v3730 = vmul.f32 %v3346, %v3602
  %v3731 = vmul.f32 %v3347, %v3603
  %v3732 = vmul.f32 %v3348, %v3604
  %v3733 = vmul.f32 %v3349, %v3605
  %v3734 = vmul.f32 %v3350, %v3606
  %v3735 = vmul.f32 %v3351, %v3607
  %v3736 = vmul.f32 %v3352, %v3608
  %v3737 = vmul.f32 %v3353, %v3609
  %v3738 = vmul.f32 %v3354, %v3610
  %v3739 = vmul.f32 %v3355, %v3611
  %v3740 = vmul.f32 %v3356, %v3612
  %v3741 = vmul.f32 %v3357, %v3613
  %v3742 = vmul.f32 %v3358, %v3614
  %v3743 = vmul.f32 %v3359, %v3615
  %v3744 = vmul.f32 %v3360, %v3616
  %v3745 = vmul.f32 %v3361, %v3617
  %v3746 = vmul.f32 %v3362, %v3618
  %v3747 = vmul.f32 %v3363, %v3619
  %v3748 = vmul.f32 %v3364, %v3620
  %v3749 = vmul.f32 %v3365, %v3621
  %v3750 = vmul.f32 %v3366, %v3622
  %v3751 = vmul.f32 %v3367, %v3623
  %v3752 = vmul.f32 %v3368, %v3624
  %v3753 = vmul.f32 %v3369, %v3625
  %v3754 = vmul.f32 %v3370, %v3626
  %v3755 = vmul.f32 %v3371, %v3627
  %v3756 = vmul.f32 %v3372, %v3628
  %v3757 = vmul.f32 %v3373, %v3629
  %v3758 = vmul.f32 %v3374, %v3630
  %v3759 = vmul.f32 %v3375, %v3631
  %v3760 = vmul.f32 %v3376, %v3632
  %v3761 = vmul.f32 %v3377, %v3633
  %v3762 = vmul.f32 %v3378, %v3634
  %v3763 = vmul.f32 %v3379, %v3635
  %v3764 = vmul.f32 %v3380, %v3636
  %v3765 = vmul.f32 %v3381, %v3637
  %v3766 = vmul.f32 %v3382, %v3638
  %v3767 = vmul.f32 %v3383, %v3639
  %v3768 = vmul.f32 %v3384, %v3640
  %v3769 = vmul.f32 %v3385, %v3641
  %v3770 = vmul.f32 %v3386, %v3642
  %v3771 = vmul.f32 %v3387, %v3643
  %v3772 = vmul.f32 %v3388, %v3644
  %v3773 = vmul.f32 %v3389, %v3645
  %v3774 = vmul.f32 %v3390, %v3646
  %v3775 = vmul.f32 %v3391, %v3647
  %v3776 = vmul.f32 %v3392, %v3648
  %v3777 = vmul.f32 %v3393, %v3649
  %v3778 = vmul.f32 %v3394, %v3650
  %v3779 = vmul.f32 %v3395, %v3651
  %v3780 = vmul.f32 %v3396, %v3652
  %v3781 = vmul.f32 %v3397, %v3653
  %v3782 = vmul.f32 %v3398, %v3654
  %v3783 = vmul.f32 %v3399, %v3655
  %v3784 = vmul.f32 %v3400, %v3656
  %v3785 = vmul.f32 %v3401, %v3657
  %v3786 = vmul.f32 %v3402, %v3658
  %v3787 = vmul.f32 %v3403, %v3659
  %v3788 = vmul.f32 %v3404, %v3660
  %v3789 = vmul.f32 %v3405, %v3661
  %v3790 = vmul.f32 %v3406, %v3662
  %v3791 = vmul.f32 %v3407, %v3663
  %v3792 = vmul.f32 %v3408, %v3664
  %v3793 = vmul.f32 %v3409, %v3665
  %v3794 = vmul.f32 %v3410, %v3666
  %v3795 = vmul.f32 %v3411, %v3667
  %v3796 = vmul.f32 %v3412, %v3668
  %v3797 = vmul.f32 %v3413, %v3669
  %v3798 = vmul.f32 %v3414, %v3670
  %v3799 = vmul.f32 %v3415, %v3671
  %v3800 = vmul.f32 %v3416, %v3672
  %v3801 = vmul.f32 %v3417, %v3673
  %v3802 = vmul.f32 %v3418, %v3674
  %v3803 = vmul.f32 %v3419, %v3675
  %v3804 = vmul.f32 %v3420, %v3676
  %3806 = vset.pattern.permute.xlu0 64
  %3807 = vperm.xlu0 %3806, %v3677
  %v3808 = vpop.permute.xlu0 %3807
  %3811 = vset.pattern.permute.xlu0 64
  %3812 = vperm.xlu0 %3811, %v3678
  %v3813 = vpop.permute.xlu0 %3812
  %3816 = vset.pattern.permute.xlu0 64
  %3817 = vperm.xlu0 %3816, %v3679
  %v3818 = vpop.permute.xlu0 %3817
  %3821 = vset.pattern.permute.xlu0 64
  %3822 = vperm.xlu0 %3821, %v3680
  %v3823 = vpop.permute.xlu0 %3822
  %3826 = vset.pattern.permute.xlu0 64
  %3827 = vperm.xlu0 %3826, %v3681
  %v3828 = vpop.permute.xlu0 %3827
  %3831 = vset.pattern.permute.xlu0 64
  %3832 = vperm.xlu0 %3831, %v3682
  %v3833 = vpop.permute.xlu0 %3832
  %3836 = vset.pattern.permute.xlu0 64
  %3837 = vperm.xlu0 %3836, %v3683
  %v3838 = vpop.permute.xlu0 %3837
  %3841 = vset.pattern.permute.xlu0 64
  %3842 = vperm.xlu0 %3841, %v3684
  %v3843 = vpop.permute.xlu0 %3842
  %3846 = vset.pattern.permute.xlu0 64
  %3847 = vperm.xlu0 %3846, %v3685
  %v3848 = vpop.permute.xlu0 %3847
  %3851 = vset.pattern.permute.xlu0 64
  %3852 = vperm.xlu0 %3851, %v3686
  %v3853 = vpop.permute.xlu0 %3852
  %3856 = vset.pattern.permute.xlu0 64
  %3857 = vperm.xlu0 %3856, %v3687
  %v3858 = vpop.permute.xlu0 %3857
  %3861 = vset.pattern.permute.xlu0 64
  %3862 = vperm.xlu0 %3861, %v3688
  %v3863 = vpop.permute.xlu0 %3862
  %3866 = vset.pattern.permute.xlu0 64
  %3867 = vperm.xlu0 %3866, %v3689
  %v3868 = vpop.permute.xlu0 %3867
  %3871 = vset.pattern.permute.xlu0 64
  %3872 = vperm.xlu0 %3871, %v3690
  %v3873 = vpop.permute.xlu0 %3872
  %3876 = vset.pattern.permute.xlu0 64
  %3877 = vperm.xlu0 %3876, %v3691
  %v3878 = vpop.permute.xlu0 %3877
  %3881 = vset.pattern.permute.xlu0 64
  %3882 = vperm.xlu0 %3881, %v3692
  %v3883 = vpop.permute.xlu0 %3882
  %v3885 = vmul.f32 %v2910, %v3808
  %v3886 = vmul.f32 %v2913, %v3813
  %v3887 = vmul.f32 %v2916, %v3818
  %v3888 = vmul.f32 %v2919, %v3823
  %v3889 = vmul.f32 %v2922, %v3828
  %v3890 = vmul.f32 %v2925, %v3833
  %v3891 = vmul.f32 %v2928, %v3838
  %v3892 = vmul.f32 %v2931, %v3843
  %v3893 = vmul.f32 %v2934, %v3848
  %v3894 = vmul.f32 %v2937, %v3853
  %v3895 = vmul.f32 %v2940, %v3858
  %v3896 = vmul.f32 %v2943, %v3863
  %v3897 = vmul.f32 %v2946, %v3868
  %v3898 = vmul.f32 %v2949, %v3873
  %v3899 = vmul.f32 %v2952, %v3878
  %v3900 = vmul.f32 %v2955, %v3883
  %3902 = vset.pattern.permute.xlu0 64
  %3903 = vperm.xlu0 %3902, %v3693
  %v3904 = vpop.permute.xlu0 %3903
  %3907 = vset.pattern.permute.xlu0 64
  %3908 = vperm.xlu0 %3907, %v3694
  %v3909 = vpop.permute.xlu0 %3908
  %3912 = vset.pattern.permute.xlu0 64
  %3913 = vperm.xlu0 %3912, %v3695
  %v3914 = vpop.permute.xlu0 %3913
  %3917 = vset.pattern.permute.xlu0 64
  %3918 = vperm.xlu0 %3917, %v3696
  %v3919 = vpop.permute.xlu0 %3918
  %3922 = vset.pattern.permute.xlu0 64
  %3923 = vperm.xlu0 %3922, %v3697
  %v3924 = vpop.permute.xlu0 %3923
  %3927 = vset.pattern.permute.xlu0 64
  %3928 = vperm.xlu0 %3927, %v3698
  %v3929 = vpop.permute.xlu0 %3928
  %3932 = vset.pattern.permute.xlu0 64
  %3933 = vperm.xlu0 %3932, %v3699
  %v3934 = vpop.permute.xlu0 %3933
  %3937 = vset.pattern.permute.xlu0 64
  %3938 = vperm.xlu0 %3937, %v3700
  %v3939 = vpop.permute.xlu0 %3938
  %3942 = vset.pattern.permute.xlu0 64
  %3943 = vperm.xlu0 %3942, %v3701
  %v3944 = vpop.permute.xlu0 %3943
  %3947 = vset.pattern.permute.xlu0 64
  %3948 = vperm.xlu0 %3947, %v3702
  %v3949 = vpop.permute.xlu0 %3948
  %3952 = vset.pattern.permute.xlu0 64
  %3953 = vperm.xlu0 %3952, %v3703
  %v3954 = vpop.permute.xlu0 %3953
  %3957 = vset.pattern.permute.xlu0 64
  %3958 = vperm.xlu0 %3957, %v3704
  %v3959 = vpop.permute.xlu0 %3958
  %3962 = vset.pattern.permute.xlu0 64
  %3963 = vperm.xlu0 %3962, %v3705
  %v3964 = vpop.permute.xlu0 %3963
  %3967 = vset.pattern.permute.xlu0 64
  %3968 = vperm.xlu0 %3967, %v3706
  %v3969 = vpop.permute.xlu0 %3968
  %3972 = vset.pattern.permute.xlu0 64
  %3973 = vperm.xlu0 %3972, %v3707
  %v3974 = vpop.permute.xlu0 %3973
  %3977 = vset.pattern.permute.xlu0 64
  %3978 = vperm.xlu0 %3977, %v3708
  %v3979 = vpop.permute.xlu0 %3978
  %v3981 = vmul.f32 %v2958, %v3904
  %v3982 = vmul.f32 %v2961, %v3909
  %v3983 = vmul.f32 %v2964, %v3914
  %v3984 = vmul.f32 %v2967, %v3919
  %v3985 = vmul.f32 %v2970, %v3924
  %v3986 = vmul.f32 %v2973, %v3929
  %v3987 = vmul.f32 %v2976, %v3934
  %v3988 = vmul.f32 %v2979, %v3939
  %v3989 = vmul.f32 %v2982, %v3944
  %v3990 = vmul.f32 %v2985, %v3949
  %v3991 = vmul.f32 %v2988, %v3954
  %v3992 = vmul.f32 %v2991, %v3959
  %v3993 = vmul.f32 %v2994, %v3964
  %v3994 = vmul.f32 %v2997, %v3969
  %v3995 = vmul.f32 %v3000, %v3974
  %v3996 = vmul.f32 %v3003, %v3979
  %3998 = vset.pattern.permute.xlu0 64
  %3999 = vperm.xlu0 %3998, %v3709
  %v4000 = vpop.permute.xlu0 %3999
  %4003 = vset.pattern.permute.xlu0 64
  %4004 = vperm.xlu0 %4003, %v3710
  %v4005 = vpop.permute.xlu0 %4004
  %4008 = vset.pattern.permute.xlu0 64
  %4009 = vperm.xlu0 %4008, %v3711
  %v4010 = vpop.permute.xlu0 %4009
  %4013 = vset.pattern.permute.xlu0 64
  %4014 = vperm.xlu0 %4013, %v3712
  %v4015 = vpop.permute.xlu0 %4014
  %4018 = vset.pattern.permute.xlu0 64
  %4019 = vperm.xlu0 %4018, %v3713
  %v4020 = vpop.permute.xlu0 %4019
  %4023 = vset.pattern.permute.xlu0 64
  %4024 = vperm.xlu0 %4023, %v3714
  %v4025 = vpop.permute.xlu0 %4024
  %4028 = vset.pattern.permute.xlu0 64
  %4029 = vperm.xlu0 %4028, %v3715
  %v4030 = vpop.permute.xlu0 %4029
  %4033 = vset.pattern.permute.xlu0 64
  %4034 = vperm.xlu0 %4033, %v3716
  %v4035 = vpop.permute.xlu0 %4034
  %4038 = vset.pattern.permute.xlu0 64
  %4039 = vperm.xlu0 %4038, %v3717
  %v4040 = vpop.permute.xlu0 %4039
  %4043 = vset.pattern.permute.xlu0 64
  %4044 = vperm.xlu0 %4043, %v3718
  %v4045 = vpop.permute.xlu0 %4044
  %4048 = vset.pattern.permute.xlu0 64
  %4049 = vperm.xlu0 %4048, %v3719
  %v4050 = vpop.permute.xlu0 %4049
  %4053 = vset.pattern.permute.xlu0 64
  %4054 = vperm.xlu0 %4053, %v3720
  %v4055 = vpop.permute.xlu0 %4054
  %4058 = vset.pattern.permute.xlu0 64
  %4059 = vperm.xlu0 %4058, %v3721
  %v4060 = vpop.permute.xlu0 %4059
  %4063 = vset.pattern.permute.xlu0 64
  %4064 = vperm.xlu0 %4063, %v3722
  %v4065 = vpop.permute.xlu0 %4064
  %4068 = vset.pattern.permute.xlu0 64
  %4069 = vperm.xlu0 %4068, %v3723
  %v4070 = vpop.permute.xlu0 %4069
  %4073 = vset.pattern.permute.xlu0 64
  %4074 = vperm.xlu0 %4073, %v3724
  %v4075 = vpop.permute.xlu0 %4074
  %v4077 = vmul.f32 %v3006, %v4000
  %v4078 = vmul.f32 %v3009, %v4005
  %v4079 = vmul.f32 %v3012, %v4010
  %v4080 = vmul.f32 %v3015, %v4015
  %v4081 = vmul.f32 %v3018, %v4020
  %v4082 = vmul.f32 %v3021, %v4025
  %v4083 = vmul.f32 %v3024, %v4030
  %v4084 = vmul.f32 %v3027, %v4035
  %v4085 = vmul.f32 %v3030, %v4040
  %v4086 = vmul.f32 %v3033, %v4045
  %v4087 = vmul.f32 %v3036, %v4050
  %v4088 = vmul.f32 %v3039, %v4055
  %v4089 = vmul.f32 %v3042, %v4060
  %v4090 = vmul.f32 %v3045, %v4065
  %v4091 = vmul.f32 %v3048, %v4070
  %v4092 = vmul.f32 %v3051, %v4075
  %4094 = vset.pattern.permute.xlu0 64
  %4095 = vperm.xlu0 %4094, %v3725
  %v4096 = vpop.permute.xlu0 %4095
  %4099 = vset.pattern.permute.xlu0 64
  %4100 = vperm.xlu0 %4099, %v3726
  %v4101 = vpop.permute.xlu0 %4100
  %4104 = vset.pattern.permute.xlu0 64
  %4105 = vperm.xlu0 %4104, %v3727
  %v4106 = vpop.permute.xlu0 %4105
  %4109 = vset.pattern.permute.xlu0 64
  %4110 = vperm.xlu0 %4109, %v3728
  %v4111 = vpop.permute.xlu0 %4110
  %4114 = vset.pattern.permute.xlu0 64
  %4115 = vperm.xlu0 %4114, %v3729
  %v4116 = vpop.permute.xlu0 %4115
  %4119 = vset.pattern.permute.xlu0 64
  %4120 = vperm.xlu0 %4119, %v3730
  %v4121 = vpop.permute.xlu0 %4120
  %4124 = vset.pattern.permute.xlu0 64
  %4125 = vperm.xlu0 %4124, %v3731
  %v4126 = vpop.permute.xlu0 %4125
  %4129 = vset.pattern.permute.xlu0 64
  %4130 = vperm.xlu0 %4129, %v3732
  %v4131 = vpop.permute.xlu0 %4130
  %4134 = vset.pattern.permute.xlu0 64
  %4135 = vperm.xlu0 %4134, %v3733
  %v4136 = vpop.permute.xlu0 %4135
  %4139 = vset.pattern.permute.xlu0 64
  %4140 = vperm.xlu0 %4139, %v3734
  %v4141 = vpop.permute.xlu0 %4140
  %4144 = vset.pattern.permute.xlu0 64
  %4145 = vperm.xlu0 %4144, %v3735
  %v4146 = vpop.permute.xlu0 %4145
  %4149 = vset.pattern.permute.xlu0 64
  %4150 = vperm.xlu0 %4149, %v3736
  %v4151 = vpop.permute.xlu0 %4150
  %4154 = vset.pattern.permute.xlu0 64
  %4155 = vperm.xlu0 %4154, %v3737
  %v4156 = vpop.permute.xlu0 %4155
  %4159 = vset.pattern.permute.xlu0 64
  %4160 = vperm.xlu0 %4159, %v3738
  %v4161 = vpop.permute.xlu0 %4160
  %4164 = vset.pattern.permute.xlu0 64
  %4165 = vperm.xlu0 %4164, %v3739
  %v4166 = vpop.permute.xlu0 %4165
  %4169 = vset.pattern.permute.xlu0 64
  %4170 = vperm.xlu0 %4169, %v3740
  %v4171 = vpop.permute.xlu0 %4170
  %v4173 = vmul.f32 %v3054, %v4096
  %v4174 = vmul.f32 %v3057, %v4101
  %v4175 = vmul.f32 %v3060, %v4106
  %v4176 = vmul.f32 %v3063, %v4111
  %v4177 = vmul.f32 %v3066, %v4116
  %v4178 = vmul.f32 %v3069, %v4121
  %v4179 = vmul.f32 %v3072, %v4126
  %v4180 = vmul.f32 %v3075, %v4131
  %v4181 = vmul.f32 %v3078, %v4136
  %v4182 = vmul.f32 %v3081, %v4141
  %v4183 = vmul.f32 %v3084, %v4146
  %v4184 = vmul.f32 %v3087, %v4151
  %v4185 = vmul.f32 %v3090, %v4156
  %v4186 = vmul.f32 %v3093, %v4161
  %v4187 = vmul.f32 %v3096, %v4166
  %v4188 = vmul.f32 %v3099, %v4171
  %4190 = vset.pattern.permute.xlu0 64
  %4191 = vperm.xlu0 %4190, %v3741
  %v4192 = vpop.permute.xlu0 %4191
  %4195 = vset.pattern.permute.xlu0 64
  %4196 = vperm.xlu0 %4195, %v3742
  %v4197 = vpop.permute.xlu0 %4196
  %4200 = vset.pattern.permute.xlu0 64
  %4201 = vperm.xlu0 %4200, %v3743
  %v4202 = vpop.permute.xlu0 %4201
  %4205 = vset.pattern.permute.xlu0 64
  %4206 = vperm.xlu0 %4205, %v3744
  %v4207 = vpop.permute.xlu0 %4206
  %4210 = vset.pattern.permute.xlu0 64
  %4211 = vperm.xlu0 %4210, %v3745
  %v4212 = vpop.permute.xlu0 %4211
  %4215 = vset.pattern.permute.xlu0 64
  %4216 = vperm.xlu0 %4215, %v3746
  %v4217 = vpop.permute.xlu0 %4216
  %4220 = vset.pattern.permute.xlu0 64
  %4221 = vperm.xlu0 %4220, %v3747
  %v4222 = vpop.permute.xlu0 %4221
  %4225 = vset.pattern.permute.xlu0 64
  %4226 = vperm.xlu0 %4225, %v3748
  %v4227 = vpop.permute.xlu0 %4226
  %4230 = vset.pattern.permute.xlu0 64
  %4231 = vperm.xlu0 %4230, %v3749
  %v4232 = vpop.permute.xlu0 %4231
  %4235 = vset.pattern.permute.xlu0 64
  %4236 = vperm.xlu0 %4235, %v3750
  %v4237 = vpop.permute.xlu0 %4236
  %4240 = vset.pattern.permute.xlu0 64
  %4241 = vperm.xlu0 %4240, %v3751
  %v4242 = vpop.permute.xlu0 %4241
  %4245 = vset.pattern.permute.xlu0 64
  %4246 = vperm.xlu0 %4245, %v3752
  %v4247 = vpop.permute.xlu0 %4246
  %4250 = vset.pattern.permute.xlu0 64
  %4251 = vperm.xlu0 %4250, %v3753
  %v4252 = vpop.permute.xlu0 %4251
  %4255 = vset.pattern.permute.xlu0 64
  %4256 = vperm.xlu0 %4255, %v3754
  %v4257 = vpop.permute.xlu0 %4256
  %4260 = vset.pattern.permute.xlu0 64
  %4261 = vperm.xlu0 %4260, %v3755
  %v4262 = vpop.permute.xlu0 %4261
  %4265 = vset.pattern.permute.xlu0 64
  %4266 = vperm.xlu0 %4265, %v3756
  %v4267 = vpop.permute.xlu0 %4266
  %v4269 = vmul.f32 %v3102, %v4192
  %v4270 = vmul.f32 %v3105, %v4197
  %v4271 = vmul.f32 %v3108, %v4202
  %v4272 = vmul.f32 %v3111, %v4207
  %v4273 = vmul.f32 %v3114, %v4212
  %v4274 = vmul.f32 %v3117, %v4217
  %v4275 = vmul.f32 %v3120, %v4222
  %v4276 = vmul.f32 %v3123, %v4227
  %v4277 = vmul.f32 %v3126, %v4232
  %v4278 = vmul.f32 %v3129, %v4237
  %v4279 = vmul.f32 %v3132, %v4242
  %v4280 = vmul.f32 %v3135, %v4247
  %v4281 = vmul.f32 %v3138, %v4252
  %v4282 = vmul.f32 %v3141, %v4257
  %v4283 = vmul.f32 %v3144, %v4262
  %v4284 = vmul.f32 %v3147, %v4267
  %4286 = vset.pattern.permute.xlu0 64
  %4287 = vperm.xlu0 %4286, %v3757
  %v4288 = vpop.permute.xlu0 %4287
  %4291 = vset.pattern.permute.xlu0 64
  %4292 = vperm.xlu0 %4291, %v3758
  %v4293 = vpop.permute.xlu0 %4292
  %4296 = vset.pattern.permute.xlu0 64
  %4297 = vperm.xlu0 %4296, %v3759
  %v4298 = vpop.permute.xlu0 %4297
  %4301 = vset.pattern.permute.xlu0 64
  %4302 = vperm.xlu0 %4301, %v3760
  %v4303 = vpop.permute.xlu0 %4302
  %4306 = vset.pattern.permute.xlu0 64
  %4307 = vperm.xlu0 %4306, %v3761
  %v4308 = vpop.permute.xlu0 %4307
  %4311 = vset.pattern.permute.xlu0 64
  %4312 = vperm.xlu0 %4311, %v3762
  %v4313 = vpop.permute.xlu0 %4312
  %4316 = vset.pattern.permute.xlu0 64
  %4317 = vperm.xlu0 %4316, %v3763
  %v4318 = vpop.permute.xlu0 %4317
  %4321 = vset.pattern.permute.xlu0 64
  %4322 = vperm.xlu0 %4321, %v3764
  %v4323 = vpop.permute.xlu0 %4322
  %4326 = vset.pattern.permute.xlu0 64
  %4327 = vperm.xlu0 %4326, %v3765
  %v4328 = vpop.permute.xlu0 %4327
  %4331 = vset.pattern.permute.xlu0 64
  %4332 = vperm.xlu0 %4331, %v3766
  %v4333 = vpop.permute.xlu0 %4332
  %4336 = vset.pattern.permute.xlu0 64
  %4337 = vperm.xlu0 %4336, %v3767
  %v4338 = vpop.permute.xlu0 %4337
  %4341 = vset.pattern.permute.xlu0 64
  %4342 = vperm.xlu0 %4341, %v3768
  %v4343 = vpop.permute.xlu0 %4342
  %4346 = vset.pattern.permute.xlu0 64
  %4347 = vperm.xlu0 %4346, %v3769
  %v4348 = vpop.permute.xlu0 %4347
  %4351 = vset.pattern.permute.xlu0 64
  %4352 = vperm.xlu0 %4351, %v3770
  %v4353 = vpop.permute.xlu0 %4352
  %4356 = vset.pattern.permute.xlu0 64
  %4357 = vperm.xlu0 %4356, %v3771
  %v4358 = vpop.permute.xlu0 %4357
  %4361 = vset.pattern.permute.xlu0 64
  %4362 = vperm.xlu0 %4361, %v3772
  %v4363 = vpop.permute.xlu0 %4362
  %v4365 = vmul.f32 %v3150, %v4288
  %v4366 = vmul.f32 %v3153, %v4293
  %v4367 = vmul.f32 %v3156, %v4298
  %v4368 = vmul.f32 %v3159, %v4303
  %v4369 = vmul.f32 %v3162, %v4308
  %v4370 = vmul.f32 %v3165, %v4313
  %v4371 = vmul.f32 %v3168, %v4318
  %v4372 = vmul.f32 %v3171, %v4323
  %v4373 = vmul.f32 %v3174, %v4328
  %v4374 = vmul.f32 %v3177, %v4333
  %v4375 = vmul.f32 %v3180, %v4338
  %v4376 = vmul.f32 %v3183, %v4343
  %v4377 = vmul.f32 %v3186, %v4348
  %v4378 = vmul.f32 %v3189, %v4353
  %v4379 = vmul.f32 %v3192, %v4358
  %v4380 = vmul.f32 %v3195, %v4363
  %4382 = vset.pattern.permute.xlu0 64
  %4383 = vperm.xlu0 %4382, %v3773
  %v4384 = vpop.permute.xlu0 %4383
  %4387 = vset.pattern.permute.xlu0 64
  %4388 = vperm.xlu0 %4387, %v3774
  %v4389 = vpop.permute.xlu0 %4388
  %4392 = vset.pattern.permute.xlu0 64
  %4393 = vperm.xlu0 %4392, %v3775
  %v4394 = vpop.permute.xlu0 %4393
  %4397 = vset.pattern.permute.xlu0 64
  %4398 = vperm.xlu0 %4397, %v3776
  %v4399 = vpop.permute.xlu0 %4398
  %4402 = vset.pattern.permute.xlu0 64
  %4403 = vperm.xlu0 %4402, %v3777
  %v4404 = vpop.permute.xlu0 %4403
  %4407 = vset.pattern.permute.xlu0 64
  %4408 = vperm.xlu0 %4407, %v3778
  %v4409 = vpop.permute.xlu0 %4408
  %4412 = vset.pattern.permute.xlu0 64
  %4413 = vperm.xlu0 %4412, %v3779
  %v4414 = vpop.permute.xlu0 %4413
  %4417 = vset.pattern.permute.xlu0 64
  %4418 = vperm.xlu0 %4417, %v3780
  %v4419 = vpop.permute.xlu0 %4418
  %4422 = vset.pattern.permute.xlu0 64
  %4423 = vperm.xlu0 %4422, %v3781
  %v4424 = vpop.permute.xlu0 %4423
  %4427 = vset.pattern.permute.xlu0 64
  %4428 = vperm.xlu0 %4427, %v3782
  %v4429 = vpop.permute.xlu0 %4428
  %4432 = vset.pattern.permute.xlu0 64
  %4433 = vperm.xlu0 %4432, %v3783
  %v4434 = vpop.permute.xlu0 %4433
  %4437 = vset.pattern.permute.xlu0 64
  %4438 = vperm.xlu0 %4437, %v3784
  %v4439 = vpop.permute.xlu0 %4438
  %4442 = vset.pattern.permute.xlu0 64
  %4443 = vperm.xlu0 %4442, %v3785
  %v4444 = vpop.permute.xlu0 %4443
  %4447 = vset.pattern.permute.xlu0 64
  %4448 = vperm.xlu0 %4447, %v3786
  %v4449 = vpop.permute.xlu0 %4448
  %4452 = vset.pattern.permute.xlu0 64
  %4453 = vperm.xlu0 %4452, %v3787
  %v4454 = vpop.permute.xlu0 %4453
  %4457 = vset.pattern.permute.xlu0 64
  %4458 = vperm.xlu0 %4457, %v3788
  %v4459 = vpop.permute.xlu0 %4458
  %v4461 = vmul.f32 %v3198, %v4384
  %v4462 = vmul.f32 %v3201, %v4389
  %v4463 = vmul.f32 %v3204, %v4394
  %v4464 = vmul.f32 %v3207, %v4399
  %v4465 = vmul.f32 %v3210, %v4404
  %v4466 = vmul.f32 %v3213, %v4409
  %v4467 = vmul.f32 %v3216, %v4414
  %v4468 = vmul.f32 %v3219, %v4419
  %v4469 = vmul.f32 %v3222, %v4424
  %v4470 = vmul.f32 %v3225, %v4429
  %v4471 = vmul.f32 %v3228, %v4434
  %v4472 = vmul.f32 %v3231, %v4439
  %v4473 = vmul.f32 %v3234, %v4444
  %v4474 = vmul.f32 %v3237, %v4449
  %v4475 = vmul.f32 %v3240, %v4454
  %v4476 = vmul.f32 %v3243, %v4459
  %4478 = vset.pattern.permute.xlu0 64
  %4479 = vperm.xlu0 %4478, %v3789
  %v4480 = vpop.permute.xlu0 %4479
  %4483 = vset.pattern.permute.xlu0 64
  %4484 = vperm.xlu0 %4483, %v3790
  %v4485 = vpop.permute.xlu0 %4484
  %4488 = vset.pattern.permute.xlu0 64
  %4489 = vperm.xlu0 %4488, %v3791
  %v4490 = vpop.permute.xlu0 %4489
  %4493 = vset.pattern.permute.xlu0 64
  %4494 = vperm.xlu0 %4493, %v3792
  %v4495 = vpop.permute.xlu0 %4494
  %4498 = vset.pattern.permute.xlu0 64
  %4499 = vperm.xlu0 %4498, %v3793
  %v4500 = vpop.permute.xlu0 %4499
  %4503 = vset.pattern.permute.xlu0 64
  %4504 = vperm.xlu0 %4503, %v3794
  %v4505 = vpop.permute.xlu0 %4504
  %4508 = vset.pattern.permute.xlu0 64
  %4509 = vperm.xlu0 %4508, %v3795
  %v4510 = vpop.permute.xlu0 %4509
  %4513 = vset.pattern.permute.xlu0 64
  %4514 = vperm.xlu0 %4513, %v3796
  %v4515 = vpop.permute.xlu0 %4514
  %4518 = vset.pattern.permute.xlu0 64
  %4519 = vperm.xlu0 %4518, %v3797
  %v4520 = vpop.permute.xlu0 %4519
  %4523 = vset.pattern.permute.xlu0 64
  %4524 = vperm.xlu0 %4523, %v3798
  %v4525 = vpop.permute.xlu0 %4524
  %4528 = vset.pattern.permute.xlu0 64
  %4529 = vperm.xlu0 %4528, %v3799
  %v4530 = vpop.permute.xlu0 %4529
  %4533 = vset.pattern.permute.xlu0 64
  %4534 = vperm.xlu0 %4533, %v3800
  %v4535 = vpop.permute.xlu0 %4534
  %4538 = vset.pattern.permute.xlu0 64
  %4539 = vperm.xlu0 %4538, %v3801
  %v4540 = vpop.permute.xlu0 %4539
  %4543 = vset.pattern.permute.xlu0 64
  %4544 = vperm.xlu0 %4543, %v3802
  %v4545 = vpop.permute.xlu0 %4544
  %4548 = vset.pattern.permute.xlu0 64
  %4549 = vperm.xlu0 %4548, %v3803
  %v4550 = vpop.permute.xlu0 %4549
  %4553 = vset.pattern.permute.xlu0 64
  %4554 = vperm.xlu0 %4553, %v3804
  %v4555 = vpop.permute.xlu0 %4554
  %v4557 = vmul.f32 %v3246, %v4480
  %v4558 = vmul.f32 %v3249, %v4485
  %v4559 = vmul.f32 %v3252, %v4490
  %v4560 = vmul.f32 %v3255, %v4495
  %v4561 = vmul.f32 %v3258, %v4500
  %v4562 = vmul.f32 %v3261, %v4505
  %v4563 = vmul.f32 %v3264, %v4510
  %v4564 = vmul.f32 %v3267, %v4515
  %v4565 = vmul.f32 %v3270, %v4520
  %v4566 = vmul.f32 %v3273, %v4525
  %v4567 = vmul.f32 %v3276, %v4530
  %v4568 = vmul.f32 %v3279, %v4535
  %v4569 = vmul.f32 %v3282, %v4540
  %v4570 = vmul.f32 %v3285, %v4545
  %v4571 = vmul.f32 %v3288, %v4550
  %v4572 = vmul.f32 %v3291, %v4555
  %vm4573 = vcmask 64512
  %v4574 = vsel %vm4573, %v3885, %v3981
  %v4575 = vsel %vm4573, %v3886, %v3982
  %v4576 = vsel %vm4573, %v3887, %v3983
  %v4577 = vsel %vm4573, %v3888, %v3984
  %v4578 = vsel %vm4573, %v3889, %v3985
  %v4579 = vsel %vm4573, %v3890, %v3986
  %v4580 = vsel %vm4573, %v3891, %v3987
  %v4581 = vsel %vm4573, %v3892, %v3988
  %v4582 = vsel %vm4573, %v3893, %v3989
  %v4583 = vsel %vm4573, %v3894, %v3990
  %v4584 = vsel %vm4573, %v3895, %v3991
  %v4585 = vsel %vm4573, %v3896, %v3992
  %v4586 = vsel %vm4573, %v3897, %v3993
  %v4587 = vsel %vm4573, %v3898, %v3994
  %v4588 = vsel %vm4573, %v3899, %v3995
  %v4589 = vsel %vm4573, %v3900, %v3996
  %vm4590 = vcmask 130048
  %v4591 = vsel %vm4590, %v4574, %v4077
  %v4592 = vsel %vm4590, %v4575, %v4078
  %v4593 = vsel %vm4590, %v4576, %v4079
  %v4594 = vsel %vm4590, %v4577, %v4080
  %v4595 = vsel %vm4590, %v4578, %v4081
  %v4596 = vsel %vm4590, %v4579, %v4082
  %v4597 = vsel %vm4590, %v4580, %v4083
  %v4598 = vsel %vm4590, %v4581, %v4084
  %v4599 = vsel %vm4590, %v4582, %v4085
  %v4600 = vsel %vm4590, %v4583, %v4086
  %v4601 = vsel %vm4590, %v4584, %v4087
  %v4602 = vsel %vm4590, %v4585, %v4088
  %v4603 = vsel %vm4590, %v4586, %v4089
  %v4604 = vsel %vm4590, %v4587, %v4090
  %v4605 = vsel %vm4590, %v4588, %v4091
  %v4606 = vsel %vm4590, %v4589, %v4092
  %vm4607 = vcmask 195584
  %v4608 = vsel %vm4607, %v4591, %v4173
  %v4609 = vsel %vm4607, %v4592, %v4174
  %v4610 = vsel %vm4607, %v4593, %v4175
  %v4611 = vsel %vm4607, %v4594, %v4176
  %v4612 = vsel %vm4607, %v4595, %v4177
  %v4613 = vsel %vm4607, %v4596, %v4178
  %v4614 = vsel %vm4607, %v4597, %v4179
  %v4615 = vsel %vm4607, %v4598, %v4180
  %v4616 = vsel %vm4607, %v4599, %v4181
  %v4617 = vsel %vm4607, %v4600, %v4182
  %v4618 = vsel %vm4607, %v4601, %v4183
  %v4619 = vsel %vm4607, %v4602, %v4184
  %v4620 = vsel %vm4607, %v4603, %v4185
  %v4621 = vsel %vm4607, %v4604, %v4186
  %v4622 = vsel %vm4607, %v4605, %v4187
  %v4623 = vsel %vm4607, %v4606, %v4188
  %v4624 = vsel %vm44, %v4608, %v4269
  %v4625 = vsel %vm44, %v4609, %v4270
  %v4626 = vsel %vm44, %v4610, %v4271
  %v4627 = vsel %vm44, %v4611, %v4272
  %v4628 = vsel %vm44, %v4612, %v4273
  %v4629 = vsel %vm44, %v4613, %v4274
  %v4630 = vsel %vm44, %v4614, %v4275
  %v4631 = vsel %vm44, %v4615, %v4276
  %v4632 = vsel %vm44, %v4616, %v4277
  %v4633 = vsel %vm44, %v4617, %v4278
  %v4634 = vsel %vm44, %v4618, %v4279
  %v4635 = vsel %vm44, %v4619, %v4280
  %v4636 = vsel %vm44, %v4620, %v4281
  %v4637 = vsel %vm44, %v4621, %v4282
  %v4638 = vsel %vm44, %v4622, %v4283
  %v4639 = vsel %vm44, %v4623, %v4284
  %vm4640 = vcmask 326656
  %v4641 = vsel %vm4640, %v4624, %v4365
  %v4642 = vsel %vm4640, %v4625, %v4366
  %v4643 = vsel %vm4640, %v4626, %v4367
  %v4644 = vsel %vm4640, %v4627, %v4368
  %v4645 = vsel %vm4640, %v4628, %v4369
  %v4646 = vsel %vm4640, %v4629, %v4370
  %v4647 = vsel %vm4640, %v4630, %v4371
  %v4648 = vsel %vm4640, %v4631, %v4372
  %v4649 = vsel %vm4640, %v4632, %v4373
  %v4650 = vsel %vm4640, %v4633, %v4374
  %v4651 = vsel %vm4640, %v4634, %v4375
  %v4652 = vsel %vm4640, %v4635, %v4376
  %v4653 = vsel %vm4640, %v4636, %v4377
  %v4654 = vsel %vm4640, %v4637, %v4378
  %v4655 = vsel %vm4640, %v4638, %v4379
  %v4656 = vsel %vm4640, %v4639, %v4380
  %vm4657 = vcmask 392192
  %v4658 = vsel %vm4657, %v4641, %v4461
  %v4659 = vsel %vm4657, %v4642, %v4462
  %v4660 = vsel %vm4657, %v4643, %v4463
  %v4661 = vsel %vm4657, %v4644, %v4464
  %v4662 = vsel %vm4657, %v4645, %v4465
  %v4663 = vsel %vm4657, %v4646, %v4466
  %v4664 = vsel %vm4657, %v4647, %v4467
  %v4665 = vsel %vm4657, %v4648, %v4468
  %v4666 = vsel %vm4657, %v4649, %v4469
  %v4667 = vsel %vm4657, %v4650, %v4470
  %v4668 = vsel %vm4657, %v4651, %v4471
  %v4669 = vsel %vm4657, %v4652, %v4472
  %v4670 = vsel %vm4657, %v4653, %v4473
  %v4671 = vsel %vm4657, %v4654, %v4474
  %v4672 = vsel %vm4657, %v4655, %v4475
  %v4673 = vsel %vm4657, %v4656, %v4476
  %vm4674 = vcmask 457728
  %v4675 = vsel %vm4674, %v4658, %v4557
  %v4676 = vsel %vm4674, %v4659, %v4558
  %v4677 = vsel %vm4674, %v4660, %v4559
  %v4678 = vsel %vm4674, %v4661, %v4560
  %v4679 = vsel %vm4674, %v4662, %v4561
  %v4680 = vsel %vm4674, %v4663, %v4562
  %v4681 = vsel %vm4674, %v4664, %v4563
  %v4682 = vsel %vm4674, %v4665, %v4564
  %v4683 = vsel %vm4674, %v4666, %v4565
  %v4684 = vsel %vm4674, %v4667, %v4566
  %v4685 = vsel %vm4674, %v4668, %v4567
  %v4686 = vsel %vm4674, %v4669, %v4568
  %v4687 = vsel %vm4674, %v4670, %v4569
  %v4688 = vsel %vm4674, %v4671, %v4570
  %v4689 = vsel %vm4674, %v4672, %v4571
  %v4690 = vsel %vm4674, %v4673, %v4572
  %vm4691 = vcmask 523264
  %v4692 = vsel %vm4691, %v4675, 0.0
  %v4693 = vsel %vm4691, %v4676, 0.0
  %v4694 = vsel %vm4691, %v4677, 0.0
  %v4695 = vsel %vm4691, %v4678, 0.0
  %v4696 = vsel %vm4691, %v4679, 0.0
  %v4697 = vsel %vm4691, %v4680, 0.0
  %v4698 = vsel %vm4691, %v4681, 0.0
  %v4699 = vsel %vm4691, %v4682, 0.0
  %v4700 = vsel %vm4691, %v4683, 0.0
  %v4701 = vsel %vm4691, %v4684, 0.0
  %v4702 = vsel %vm4691, %v4685, 0.0
  %v4703 = vsel %vm4691, %v4686, 0.0
  %v4704 = vsel %vm4691, %v4687, 0.0
  %v4705 = vsel %vm4691, %v4688, 0.0
  %v4706 = vsel %vm4691, %v4689, 0.0
  %v4707 = vsel %vm4691, %v4690, 0.0
  %4708 = vst [vmem:[%s5] sm:$0xff] %v4692
  %4709 = vst [vmem:[%s5 + $0x8] sm:$0xff] %v4693
  %4710 = vst [vmem:[%s5 + $0x10] sm:$0xff] %v4694
  %4711 = vst [vmem:[%s5 + $0x18] sm:$0xff] %v4695
  %4712 = vst [vmem:[%s5 + $0x20] sm:$0xff] %v4696
  %4713 = vst [vmem:[%s5 + $0x28] sm:$0xff] %v4697
  %4714 = vst [vmem:[%s5 + $0x30] sm:$0xff] %v4698
  %4715 = vst [vmem:[%s5 + $0x38] sm:$0xff] %v4699
  %4716 = vst [vmem:[%s5 + $0x40] sm:$0xff] %v4700
  %4717 = vst [vmem:[%s5 + $0x48] sm:$0xff] %v4701
  %4718 = vst [vmem:[%s5 + $0x50] sm:$0xff] %v4702
  %4719 = vst [vmem:[%s5 + $0x58] sm:$0xff] %v4703
  %4720 = vst [vmem:[%s5 + $0x60] sm:$0xff] %v4704
  %4721 = vst [vmem:[%s5 + $0x68] sm:$0xff] %v4705
  %4722 = vst [vmem:[%s5 + $0x70] sm:$0xff] %v4706
  %4723 = vst [vmem:[%s5 + $0x78] sm:$0xff] %v4707
  // Predicated region
  $region22: #{gat_forward.1} parent=0 // pred_check
    _
  $region23: #{gat_forward.1} parent=0 // pred_check_branch
    %4725 = sbr.rel (0) target = $region25
  $region24: #{gat_forward.1} parent=0 // pred_region
    _
  $region25: #{gat_forward.1} parent=0 // pred_fallthru
    _
  // Predicated region
  $region26: #{gat_forward.1} parent=0 // pred_check
    _
  $region27: #{gat_forward.1} parent=0 // pred_check_branch
    %4727 = sbr.rel (0) target = $region29
  $region28: #{gat_forward.1} parent=0 // pred_region
    _
  $region29: #{gat_forward.1} parent=0 // pred_fallthru
    _

</llo_original>
